<compile_context>
chip_gen: v7x
topology: tpu7x:2x2x1
jax: 0.10.0
libtpu: 0.0.40
codegen_flags: <defaults>
</compile_context>

<pallas_src>
import functools
from typing import NamedTuple

import jax
import jax.numpy as jnp
from jax.experimental import pallas as pl
from jax.experimental.pallas import tpu as pltpu

_LANE = 128


def _round_up(x, m):
    return ((x + m - 1) // m) * m


def _leaky_relu(x, negative_slope=0.01):
    # matches torch.nn.LeakyReLU() default slope
    return jnp.where(x >= 0, x, negative_slope * x)


def _vmem_budget_bytes():
    """Generation-aware scoped-VMEM budget (~75% of per-core physical VMEM)."""
    try:
        cap = int(pltpu.get_tpu_info().vmem_capacity_bytes)
    except Exception:
        cap = 64 * 1024 * 1024        # conservative fallback (v7x: 64 MiB / TC)
    return cap * 3 // 4               # v5e/v6e -> ~96 MiB, v7x -> ~48 MiB


class AggregatorPlan(NamedTuple):
    tm: int          # row tile of A / output
    tk: int          # contraction tile (A columns / ego rows)
    rows_pad: int    # A rows / output rows padded to a multiple of tm
    cols_pad: int    # A cols / contraction length padded to a multiple of tk
    d_pad: int       # in_dim padded to lane width
    o_pad: int       # out_dim padded to lane width
    grid_k: int      # number of contraction steps (1 => fused one-pass kernel)
    vmem_limit: int  # scoped-VMEM limit handed to the compiler


def plan_aggregator(n, in_dim, out_dim, *, compute_dtype=jnp.bfloat16,
                    out_dtype=jnp.float32, tile_k=None):
    """Pick tiles / padding. Callers can reuse the plan to pre-pad A (see
    prepare_adjacency) and amortize the cast across KGAT layers/iterations."""
    ib = jnp.dtype(compute_dtype).itemsize
    ob = jnp.dtype(out_dtype).itemsize
    d_pad = _round_up(in_dim, _LANE)
    o_pad = _round_up(out_dim, _LANE)
    budget = _vmem_budget_bytes()

    # Row tile: >=2 row tiles at small N (megacore balance), large tiles at big N
    # so the ego contraction operand is re-streamed as few times as possible.
    if n <= 256:
        tm = 128
    elif n <= 1024:
        tm = 256
    else:
        tm = 512
    rows_pad = _round_up(n, tm)

    def vmem_est(tk_cols, ego_k_rows, with_acc):
        return (2 * tm * tk_cols * ib              # A tiles (double-buffered)
                + 2 * ego_k_rows * d_pad * ib      # ego contraction operand
                + 2 * tm * d_pad * ib              # ego row tiles (epilogue)
                + 2 * 2 * d_pad * o_pad * ib       # W1^T, W2^T
                + 2 * 2 * o_pad * 4                # biases
                + 2 * tm * o_pad * ob              # output tiles
                + (tm * d_pad * 4 if with_acc else 0))   # f32 side accumulator

    if tile_k is None:
        # Preferred: whole contraction in one step, ego fully resident (its block
        # index never changes so Pallas fetches it exactly once).
        cols_one = _round_up(n, _LANE)
        if vmem_est(cols_one, cols_one, False) <= budget:
            return AggregatorPlan(tm, cols_one, rows_pad, cols_one,
                                  d_pad, o_pad, 1, budget)
        candidates = (2048, 1024, 512, 256, 128)
    else:
        candidates = (max(_LANE, _round_up(int(tile_k), _LANE)),)

    for tk in candidates:
        cols_pad = _round_up(n, tk)
        if vmem_est(tk, tk, True) <= budget or tk == candidates[-1]:
            return AggregatorPlan(tm, tk, rows_pad, cols_pad, d_pad, o_pad,
                                  cols_pad // tk, budget)


def _pad2d(x, rows, cols, dtype):
    x = jnp.asarray(x)
    if x.shape == (rows, cols) and x.dtype == dtype:
        return x          # already prepared: skip the pad/cast copy entirely
    out = jnp.zeros((rows, cols), dtype)
    return out.at[:x.shape[0], :x.shape[1]].set(x.astype(dtype))


def prepare_adjacency(A_in, plan, compute_dtype=jnp.bfloat16):
    """Pad + cast the dense adjacency once. KGAT reuses A across layers and
    training steps; amortizing this copy removes ~3x the kernel's own A traffic."""
    return _pad2d(A_in, plan.rows_pad, plan.cols_pad, jnp.dtype(compute_dtype))


# ------------------------------- kernels ------------------------------------


def _epilogue(side_f32, ego_i_ref, w1_ref, b1_ref, w2_ref, b2_ref, o_ref, precision):
    ego = ego_i_ref[...].astype(jnp.float32)
    wdt = w1_ref.dtype
    s = (ego + side_f32).astype(wdt)      # sum branch            (VPU)
    p = (ego * side_f32).astype(wdt)      # bi-interaction branch (VPU)
    h1 = jnp.dot(s, w1_ref[...], preferred_element_type=jnp.float32,
                 precision=precision) + b1_ref[...]
    h2 = jnp.dot(p, w2_ref[...], preferred_element_type=jnp.float32,
                 precision=precision) + b2_ref[...]
    o_ref[...] = (_leaky_relu(h1) + _leaky_relu(h2)).astype(o_ref.dtype)
    # TODO(synk): nn.Dropout (message_dropout) is training-only; eval-mode dropout
    # is the identity, so no pltpu.prng_* masking is emitted here.


def _agg_kernel_onepass(a_ref, ego_k_ref, ego_i_ref,
                        w1_ref, b1_ref, w2_ref, b2_ref, o_ref, *, precision):
    # side = A[row-stripe] @ ego   -- single MXU pass over the full contraction.
    side = jnp.dot(a_ref[...], ego_k_ref[...],
                   preferred_element_type=jnp.float32, precision=precision)
    _epilogue(side, ego_i_ref, w1_ref, b1_ref, w2_ref, b2_ref, o_ref, precision)


def _agg_kernel_streamk(a_ref, ego_k_ref, ego_i_ref,
                        w1_ref, b1_ref, w2_ref, b2_ref, o_ref, side_acc,
                        *, precision):
    k = pl.program_id(1)

    @pl.when(k == 0)
    def _():
        side_acc[...] = jnp.zeros_like(side_acc)

    # side += A[i-block, k-block] @ ego[k-block]   (MXU, f32 accumulation)
    side_acc[...] += jnp.dot(a_ref[...], ego_k_ref[...],
                             preferred_element_type=jnp.float32,
                             precision=precision)

    @pl.when(k == pl.num_programs(1) - 1)
    def _():
        _epilogue(side_acc[...], ego_i_ref, w1_ref, b1_ref, w2_ref, b2_ref,
                  o_ref, precision)


# ------------------------------- wrapper ------------------------------------


def aggregator_bi_interaction(A_in, ego, W1, b1, W2, b2, *,
                              compute_dtype=jnp.bfloat16,
                              out_dtype=jnp.float32,
                              tile_k=None, plan=None):
    """KGAT bi-interaction aggregator forward (eval mode).

    W1, W2 are PyTorch nn.Linear layout [out_dim, in_dim]; b1, b2 are [out_dim].
    A_in is a dense row-normalized [N, N] adjacency -- or an already-prepared
    padded/cast adjacency from prepare_adjacency(plan) (no copy in that case).
    """
    ego = jnp.asarray(ego)
    N, D = ego.shape
    O = W1.shape[0]
    cdt = jnp.dtype(compute_dtype)
    odt = jnp.dtype(out_dtype)
    if plan is None:
        plan = plan_aggregator(N, D, O, compute_dtype=cdt, out_dtype=odt,
                               tile_k=tile_k)
    tm, tk = plan.tm, plan.tk
    rows_pad, cols_pad = plan.rows_pad, plan.cols_pad
    d_pad, o_pad = plan.d_pad, plan.o_pad

    # Zero padding: padded A columns / ego rows contribute 0 to `side`; padded
    # feature lanes of ego and padded weight rows are 0 so nothing leaks into
    # real output lanes; padded output rows/cols are sliced off at the end.
    a_p = _pad2d(A_in, rows_pad, cols_pad, cdt)          # no-op if pre-prepared
    ego_k_p = _pad2d(ego, cols_pad, d_pad, cdt)          # contraction operand
    ego_i_p = (ego_k_p if rows_pad == cols_pad
               else _pad2d(ego, rows_pad, d_pad, cdt))   # row operand (epilogue)

    w1t = _pad2d(jnp.asarray(W1).T, d_pad, o_pad, cdt)
    w2t = _pad2d(jnp.asarray(W2).T, d_pad, o_pad, cdt)
    b1r = jnp.zeros((1, o_pad), jnp.float32).at[0, :O].set(
        jnp.asarray(b1, jnp.float32))
    b2r = jnp.zeros((1, o_pad), jnp.float32).at[0, :O].set(
        jnp.asarray(b2, jnp.float32))

    # bf16 fast path: default MXU precision (single pass); f32 check path keeps
    # HIGHEST so the fused math matches the reference tightly.
    precision = jax.lax.Precision.HIGHEST if cdt == jnp.float32 else None

    grid_m = rows_pad // tm
    cost = pl.CostEstimate(
        flops=2 * rows_pad * cols_pad * d_pad + 4 * rows_pad * d_pad * o_pad,
        transcendentals=0,
        bytes_accessed=int(
            rows_pad * cols_pad * cdt.itemsize                               # A once
            + (grid_m if plan.grid_k > 1 else 1) * cols_pad * d_pad * cdt.itemsize
            + rows_pad * d_pad * cdt.itemsize                                # ego rows
            + 2 * d_pad * o_pad * cdt.itemsize + 2 * o_pad * 4               # weights/bias
            + rows_pad * o_pad * odt.itemsize))                              # output

    if plan.grid_k == 1:
        kernel = functools.partial(_agg_kernel_onepass, precision=precision)
        grid = (grid_m,)
        in_specs = [
            pl.BlockSpec((tm, cols_pad), lambda i: (i, 0)),      # A row stripe
            pl.BlockSpec((cols_pad, d_pad), lambda i: (0, 0)),   # ego (resident, fetched once)
            pl.BlockSpec((tm, d_pad), lambda i: (i, 0)),         # ego row block (epilogue)
            pl.BlockSpec((d_pad, o_pad), lambda i: (0, 0)),      # W1^T
            pl.BlockSpec((1, o_pad), lambda i: (0, 0)),          # b1
            pl.BlockSpec((d_pad, o_pad), lambda i: (0, 0)),      # W2^T
            pl.BlockSpec((1, o_pad), lambda i: (0, 0)),          # b2
        ]
        out_specs = pl.BlockSpec((tm, o_pad), lambda i: (i, 0))
        scratch_shapes = []
        dims = ("parallel",)
    else:
        kernel = functools.partial(_agg_kernel_streamk, precision=precision)
        grid = (grid_m, plan.grid_k)                             # reduction axis last
        in_specs = [
            pl.BlockSpec((tm, tk), lambda i, k: (i, k)),         # A tile
            pl.BlockSpec((tk, d_pad), lambda i, k: (k, 0)),      # ego (contraction operand)
            pl.BlockSpec((tm, d_pad), lambda i, k: (i, 0)),      # ego row block (epilogue)
            pl.BlockSpec((d_pad, o_pad), lambda i, k: (0, 0)),   # W1^T
            pl.BlockSpec((1, o_pad), lambda i, k: (0, 0)),       # b1
            pl.BlockSpec((d_pad, o_pad), lambda i, k: (0, 0)),   # W2^T
            pl.BlockSpec((1, o_pad), lambda i, k: (0, 0)),       # b2
        ]
        out_specs = pl.BlockSpec((tm, o_pad), lambda i, k: (i, 0))
        scratch_shapes = [pltpu.VMEM((tm, d_pad), jnp.float32)]
        dims = ("parallel", "arbitrary")

    out = pl.pallas_call(
        kernel,
        out_shape=jax.ShapeDtypeStruct((rows_pad, o_pad), odt),
        grid=grid,
        in_specs=in_specs,
        out_specs=out_specs,
        scratch_shapes=scratch_shapes,
        compiler_params=pltpu.CompilerParams(
            dimension_semantics=dims,
            vmem_limit_bytes=plan.vmem_limit),
        cost_estimate=cost,
    )(a_p, ego_k_p, ego_i_p, w1t, b1r, w2t, b2r)

    # TODO(synk): deeper A buffering (pipeline_mode=pl.Buffered(3)) and an
    # fp8(e4m3)/int8 quantized A stream (v7x / v5e-v6e) would cut the dominant
    # HBM bytes further; left out of this correctness-checked reference.
    # NOTE: this slice must never be removed -- padded rows/cols hold
    # lrelu(b1)+lrelu(b2) garbage. bf16 A also makes row sums only approximately 1.
    return out[:N, :O]


# ------------------------------ reference -----------------------------------


def _reference(A_in, ego, W1, b1, W2, b2):
    dot = functools.partial(jnp.dot, precision=jax.lax.Precision.HIGHEST)
    side = dot(A_in, ego)
    lrelu = lambda x: jnp.where(x >= 0, x, 0.01 * x)
    return lrelu(dot(ego + side, W1.T) + b1) + lrelu(dot(ego * side, W2.T) + b2)


if __name__ == "__main__":
    # small, deterministic synthetic problem
    N, in_dim, out_dim = 200, 40, 48
    dropout = 0.1  # eval-mode: unused
    key = jax.random.PRNGKey(0)
    k_a, k_e, k_w1, k_b1, k_w2, k_b2 = jax.random.split(key, 6)

    A_in = jax.random.uniform(k_a, (N, N), jnp.float32)
    A_in = A_in / jnp.sum(A_in, axis=1, keepdims=True)        # row-normalized adjacency
    ego = jax.random.normal(k_e, (N, in_dim), jnp.float32)

    # nn.Linear-shaped params: W [out, in], b [out]
    W1 = jax.random.normal(k_w1, (out_dim, in_dim), jnp.float32) * 0.1
    b1 = jax.random.normal(k_b1, (out_dim,), jnp.float32) * 0.1
    W2 = jax.random.normal(k_w2, (out_dim, in_dim), jnp.float32) * 0.1
    b2 = jax.random.normal(k_b2, (out_dim,), jnp.float32) * 0.1

    ref = _reference(A_in, ego, W1, b1, W2, b2)

    # (1) f32 compute path, one-pass kernel, adjacency prepared once (amortized
    #     pad/cast -- the wrapper detects the prepared array and skips the copy).
    plan32 = plan_aggregator(N, in_dim, out_dim, compute_dtype=jnp.float32)
    A_prep32 = prepare_adjacency(A_in, plan32, jnp.float32)
    out_f32 = jax.block_until_ready(
        aggregator_bi_interaction(A_prep32, ego, W1, b1, W2, b2,
                                  compute_dtype=jnp.float32, plan=plan32))
    assert out_f32.shape == (N, out_dim)
    assert jnp.allclose(out_f32, ref, atol=1e-3, rtol=1e-3)

    # (2) default bf16 fast path (one-pass kernel, f32 accumulation).
    out_bf16 = jax.block_until_ready(
        aggregator_bi_interaction(A_in, ego, W1, b1, W2, b2))
    assert out_bf16.shape == (N, out_dim)
    assert jnp.allclose(out_bf16, ref, atol=5e-2, rtol=5e-2)

    # (3) forced streamed-contraction path (exercises the accumulator kernel /
    #     2-D grid that large-N problems take).
    out_stream = jax.block_until_ready(
        aggregator_bi_interaction(A_in, ego, W1, b1, W2, b2, tile_k=128))
    assert out_stream.shape == (N, out_dim)
    assert jnp.allclose(out_stream, ref, atol=5e-2, rtol=5e-2)

    print("KERNEL_OK")
</pallas_src>

<mosaic_0001>
module attributes {stable_mosaic.version = 11 : i64} {
  func.func @_agg_kernel_onepass(%arg0: i32, %arg1: memref<128x256xf32, #tpu.memory_space<vmem>>, %arg2: memref<256x128xf32, #tpu.memory_space<vmem>>, %arg3: memref<128x128xf32, #tpu.memory_space<vmem>>, %arg4: memref<128x128xf32, #tpu.memory_space<vmem>>, %arg5: memref<1x128xf32, #tpu.memory_space<vmem>>, %arg6: memref<128x128xf32, #tpu.memory_space<vmem>>, %arg7: memref<1x128xf32, #tpu.memory_space<vmem>>, %arg8: memref<128x128xf32, #tpu.memory_space<vmem>>) attributes {dimension_semantics = [#tpu.dimension_semantics<parallel>], iteration_bounds = array<i64: 2>, scalar_prefetch = 0 : i64, scratch_operands = 0 : i64, tpu.core_type = #tpu.core_type<tc>, window_params = [{transform_indices = @transform_0, window_bounds = array<i64: 128, 256>}, {pipeline_mode = #tpu.pipeline_mode<synchronous>, transform_indices = @transform_1, window_bounds = array<i64: 256, 128>}, {transform_indices = @transform_2, window_bounds = array<i64: 128, 128>}, {pipeline_mode = #tpu.pipeline_mode<synchronous>, transform_indices = @transform_3, window_bounds = array<i64: 128, 128>}, {pipeline_mode = #tpu.pipeline_mode<synchronous>, transform_indices = @transform_4, window_bounds = array<i64: 1, 128>}, {pipeline_mode = #tpu.pipeline_mode<synchronous>, transform_indices = @transform_5, window_bounds = array<i64: 128, 128>}, {pipeline_mode = #tpu.pipeline_mode<synchronous>, transform_indices = @transform_6, window_bounds = array<i64: 1, 128>}, {transform_indices = @transform_7, window_bounds = array<i64: 128, 128>}]} {
    %c0 = arith.constant 0 : index
    %c0_0 = arith.constant 0 : index
    %0 = vector.load %arg1[%c0, %c0_0] : memref<128x256xf32, #tpu.memory_space<vmem>>, vector<128x256xf32>
    %c0_1 = arith.constant 0 : index
    %c0_2 = arith.constant 0 : index
    %1 = vector.load %arg2[%c0_1, %c0_2] : memref<256x128xf32, #tpu.memory_space<vmem>>, vector<256x128xf32>
    %cst = arith.constant dense<0.000000e+00> : vector<128x128xf32>
    %2 = tpu.matmul %0, %1, %cst {dimension_numbers = #tpu.dot_dimension_numbers<[1], [0], [0], [1], [0, 0, 1, 1], [], []>, precision = #tpu.contract_precision<fp32>} : vector<128x256xf32>, vector<256x128xf32>, vector<128x128xf32> -> vector<128x128xf32>
    %c0_3 = arith.constant 0 : index
    %c0_4 = arith.constant 0 : index
    %3 = vector.load %arg3[%c0_3, %c0_4] : memref<128x128xf32, #tpu.memory_space<vmem>>, vector<128x128xf32>
    %4 = arith.addf %3, %2 : vector<128x128xf32>
    %5 = arith.mulf %3, %2 : vector<128x128xf32>
    %c0_5 = arith.constant 0 : index
    %c0_6 = arith.constant 0 : index
    %6 = vector.load %arg4[%c0_5, %c0_6] : memref<128x128xf32, #tpu.memory_space<vmem>>, vector<128x128xf32>
    %cst_7 = arith.constant dense<0.000000e+00> : vector<128x128xf32>
    %7 = tpu.matmul %4, %6, %cst_7 {dimension_numbers = #tpu.dot_dimension_numbers<[1], [0], [0], [1], [0, 0, 1, 1], [], []>, precision = #tpu.contract_precision<fp32>} : vector<128x128xf32>, vector<128x128xf32>, vector<128x128xf32> -> vector<128x128xf32>
    %c0_8 = arith.constant 0 : index
    %c0_9 = arith.constant 0 : index
    %8 = vector.load %arg5[%c0_8, %c0_9] : memref<1x128xf32, #tpu.memory_space<vmem>>, vector<1x128xf32>
    %9 = vector.broadcast %8 : vector<1x128xf32> to vector<128x128xf32>
    %10 = arith.addf %7, %9 : vector<128x128xf32>
    %c0_10 = arith.constant 0 : index
    %c0_11 = arith.constant 0 : index
    %11 = vector.load %arg6[%c0_10, %c0_11] : memref<128x128xf32, #tpu.memory_space<vmem>>, vector<128x128xf32>
    %cst_12 = arith.constant dense<0.000000e+00> : vector<128x128xf32>
    %12 = tpu.matmul %5, %11, %cst_12 {dimension_numbers = #tpu.dot_dimension_numbers<[1], [0], [0], [1], [0, 0, 1, 1], [], []>, precision = #tpu.contract_precision<fp32>} : vector<128x128xf32>, vector<128x128xf32>, vector<128x128xf32> -> vector<128x128xf32>
    %c0_13 = arith.constant 0 : index
    %c0_14 = arith.constant 0 : index
    %13 = vector.load %arg7[%c0_13, %c0_14] : memref<1x128xf32, #tpu.memory_space<vmem>>, vector<1x128xf32>
    %14 = vector.broadcast %13 : vector<1x128xf32> to vector<128x128xf32>
    %15 = arith.addf %12, %14 : vector<128x128xf32>
    %cst_15 = arith.constant 0.000000e+00 : f32
    %16 = vector.broadcast %cst_15 : f32 to vector<128x128xf32>
    %17 = arith.cmpf oge, %10, %16 : vector<128x128xf32>
    %cst_16 = arith.constant 0.00999999977 : f32
    %18 = vector.broadcast %cst_16 : f32 to vector<128x128xf32>
    %19 = arith.mulf %18, %10 : vector<128x128xf32>
    %20 = arith.select %17, %10, %19 : vector<128x128xi1>, vector<128x128xf32>
    %cst_17 = arith.constant 0.000000e+00 : f32
    %21 = vector.broadcast %cst_17 : f32 to vector<128x128xf32>
    %22 = arith.cmpf oge, %15, %21 : vector<128x128xf32>
    %cst_18 = arith.constant 0.00999999977 : f32
    %23 = vector.broadcast %cst_18 : f32 to vector<128x128xf32>
    %24 = arith.mulf %23, %15 : vector<128x128xf32>
    %25 = arith.select %22, %15, %24 : vector<128x128xi1>, vector<128x128xf32>
    %26 = arith.addf %20, %25 : vector<128x128xf32>
    %c0_19 = arith.constant 0 : index
    %c0_20 = arith.constant 0 : index
    %27 = vector.load %arg8[%c0_19, %c0_20] : memref<128x128xf32, #tpu.memory_space<vmem>>, vector<128x128xf32>
    tpu.vector_store %arg8[%c0_19, %c0_20], %26 {strides = array<i32>} : memref<128x128xf32, #tpu.memory_space<vmem>>, vector<128x128xf32>,
    return
  }
  func.func @transform_0(%arg0: i32) -> (i32, i32) {
    %c0_i32 = arith.constant 0 : i32
    %c0_i32_0 = arith.constant 0 : i32
    return %arg0, %c0_i32 : i32, i32
  }
  func.func @transform_1(%arg0: i32) -> (i32, i32) {
    %c0_i32 = arith.constant 0 : i32
    %c0_i32_0 = arith.constant 0 : i32
    %c0_i32_1 = arith.constant 0 : i32
    return %c0_i32, %c0_i32_0 : i32, i32
  }
  func.func @transform_2(%arg0: i32) -> (i32, i32) {
    %c0_i32 = arith.constant 0 : i32
    %c0_i32_0 = arith.constant 0 : i32
    return %arg0, %c0_i32 : i32, i32
  }
  func.func @transform_3(%arg0: i32) -> (i32, i32) {
    %c0_i32 = arith.constant 0 : i32
    %c0_i32_0 = arith.constant 0 : i32
    %c0_i32_1 = arith.constant 0 : i32
    return %c0_i32, %c0_i32_0 : i32, i32
  }
  func.func @transform_4(%arg0: i32) -> (i32, i32) {
    %c0_i32 = arith.constant 0 : i32
    %c0_i32_0 = arith.constant 0 : i32
    %c0_i32_1 = arith.constant 0 : i32
    return %c0_i32, %c0_i32_0 : i32, i32
  }
  func.func @transform_5(%arg0: i32) -> (i32, i32) {
    %c0_i32 = arith.constant 0 : i32
    %c0_i32_0 = arith.constant 0 : i32
    %c0_i32_1 = arith.constant 0 : i32
    return %c0_i32, %c0_i32_0 : i32, i32
  }
  func.func @transform_6(%arg0: i32) -> (i32, i32) {
    %c0_i32 = arith.constant 0 : i32
    %c0_i32_0 = arith.constant 0 : i32
    %c0_i32_1 = arith.constant 0 : i32
    return %c0_i32, %c0_i32_0 : i32, i32
  }
  func.func @transform_7(%arg0: i32) -> (i32, i32) {
    %c0_i32 = arith.constant 0 : i32
    %c0_i32_0 = arith.constant 0 : i32
    return %arg0, %c0_i32 : i32, i32
  }
}

</mosaic_0001>

<llo_original>
// kernel: tpu_custom_call.1
$region0: #{tpu_custom_call.1}
  #allocation0 [shape = 'u32[]', space=smem, size = 0x4, offset = 0x4, fixed_abs, tag = 'smem constant byte address 0x4 - core index']
  #allocation1 [shape = 'u32[144,128]{1,0:T(1,128)}', space=vmem, size = 0x12000, scoped, tag = 'internal scratch']
  %s0 = inlined_call_operand.hbm [shape: f32[256,256], index: 0, kind: input, shape index: {}]
  %s1 = inlined_call_operand.hbm [shape: f32[256,128], index: 1, kind: input, shape index: {}]
  %s2 = inlined_call_operand.hbm [shape: f32[256,128], index: 2, kind: input, shape index: {}]
  %s3 = inlined_call_operand.hbm [shape: f32[128,128], index: 3, kind: input, shape index: {}]
  %s4 = inlined_call_operand.vmem [shape: f32[1,128], index: 4, kind: input, shape index: {}]
  %s5 = inlined_call_operand.hbm [shape: f32[128,128], index: 5, kind: input, shape index: {}]
  %s6 = inlined_call_operand.vmem [shape: f32[1,128], index: 6, kind: input, shape index: {}]
  %s7 = inlined_call_operand.hbm [shape: f32[256,128], index: 7, kind: output, shape index: {}]
  %s8 = sld [smem:[#allocation0]]
  $region81: #{tpu_custom_call.1} parent=0
    _
  %s10 = ssub.s32 1, %s8
  %s11 = scalar_select 0, %s10, %s8
  $region1: #{tpu_custom_call.1} parent=0
    #allocation2 [shape = 'u8[262144]{0}', space=vmem, size = 0x40000, scoped, tag = 'input window, operand 0']
    #allocation3 [shape = 's32[2]{0}', space=sflag, size = 0x8, scoped, tag = 'scoped memory for tpu_custom_call.1']
    #allocation4 [shape = 's32[2]{0}', space=sflag, size = 0x8, scoped, tag = 'scoped memory for tpu_custom_call.1']
    #allocation5 [shape = 'u8[131072]{0}', space=vmem, size = 0x20000, scoped, tag = 'input window, operand 1, single buffered']
    #allocation6 [shape = 's32[1]{0}', space=sflag, size = 0x4, scoped, tag = 'scoped memory for tpu_custom_call.1']
    #allocation7 [shape = 'u8[131072]{0}', space=vmem, size = 0x20000, scoped, tag = 'input window, operand 2']
    #allocation8 [shape = 'u8[65536]{0}', space=vmem, size = 0x10000, scoped, tag = 'input window, operand 3, single buffered']
    #allocation9 [shape = 'u8[65536]{0}', space=vmem, size = 0x10000, scoped, tag = 'input window, operand 5, single buffered']
    #allocation10 [shape = 's32[1]{0}', space=sflag, size = 0x4, scoped, tag = 'scoped memory for tpu_custom_call.1']
    #allocation11 [shape = 'u8[131072]{0}', space=vmem, size = 0x20000, scoped, tag = 'output window, operand 0']
    %12 = vsyncpa [#allocation3], 0
    %s13 = scalar_lea.sflag [#allocation3], 1
    %14 = vsyncpa %s13, 0
    %15 = vsyncpa [#allocation6], 0
    %16 = vsyncpa [#allocation10], 0
    %17 = vsyncpa [#allocation4], 0
    %s18 = scalar_lea.sflag [#allocation4], 1
    %19 = vsyncpa %s18, 0
    loop: start=0, step=1, limit=4
    $region2: #{tpu_custom_call.1} parent=1 // loop_pre_header
      _
    $region3: #{tpu_custom_call.1} parent=1 // loop_header
      %s21 = sphi 0, %s25
      %p22 = scmp.ge.s32.totalorder %s21, 4
      %s31 = sphi 0, %s33
      %s34 = sphi 0, %s31
      %s35 = sphi 0, %s34
      %s51 = sphi 0, %s35
      %s55 = sphi 0, %s55
      %s57 = sphi 0, %s55
      %s58 = sphi 0, %s57
      %s72 = sphi 0, %s58
      %s78 = sphi 0, %s80
      %s81 = sphi 0, %s78
      %s82 = sphi 0, %s81
      %s98 = sphi 0, %s82
      %s102 = sphi 0, %s102
      %s104 = sphi 0, %s102
      %s105 = sphi 0, %s104
      %s119 = sphi 0, %s105
      %s123 = sphi 0, %s123
      %s125 = sphi 0, %s123
      %s126 = sphi 0, %s125
      %s140 = sphi 0, %s126
      %s144 = sphi 0, %s144
      %s146 = sphi 0, %s144
      %s147 = sphi 0, %s146
      %s161 = sphi 0, %s147
      %s165 = sphi 0, %s165
      %s167 = sphi 0, %s165
      %s168 = sphi 0, %s167
      %s182 = sphi 0, %s168
      %s188 = sphi 0, %s190
      %s191 = sphi 0, %s188
      %s192 = sphi 0, %s191
      %s208 = sphi 0, %s192
    $region4: #{tpu_custom_call.1} parent=1 // loop_header_branch
      %24 = sbr.rel (%p22) target = $region8
    $region5: #{tpu_custom_call.1} parent=1 // loop_body
      %s26 = ssub.s32 %s21, 1
      %s27 = ssub.s32 %s21, 2
      %s28 = sadd.s32 %s21, 1
      %s29 = ssub.s32 %s21, %s28
      %p30 = scmp.eq.s32.totalorder %s29, 0
      %s32 = sadd.s32 %s31, 1
      %s33 = scalar_select %p30, %s31, %s32
      %p36 = pneg %p30
      %p37 = scmp.eq.s32.totalorder %s21, 1
      %p38 = por %p36, %p37
      %p39 = scmp.ne.s32.totalorder %s31, %s34
      %p40 = scmp.eq.s32.totalorder %s21, 0
      %p41 = por %p39, %p40
      %p42 = scmp.ne.s32.totalorder %s31, %s34
      %p43 = scmp.eq.s32.totalorder %s26, 1
      %p44 = por %p42, %p43
      %p45 = scmp.ne.s32.totalorder %s34, %s35
      %p46 = scmp.eq.s32.totalorder %s26, 0
      %p47 = por %p45, %p46
      %p48 = scmp.ne.s32.totalorder %s34, %s35
      %p49 = scmp.eq.s32.totalorder %s27, 1
      %p50 = por %p48, %p49
      %p52 = scmp.ne.s32.totalorder %s35, %s51
      %p53 = scmp.eq.s32.totalorder %s27, 0
      %p54 = por %p52, %p53
      %s56 = sadd.s32 %s55, 1
      %p59 = scmp.eq.s32.totalorder %s21, 1
      %p60 = scmp.ne.s32.totalorder %s55, %s57
      %p61 = scmp.eq.s32.totalorder %s21, 0
      %p62 = por %p60, %p61
      %p63 = scmp.ne.s32.totalorder %s55, %s57
      %p64 = scmp.eq.s32.totalorder %s26, 1
      %p65 = por %p63, %p64
      %p66 = scmp.ne.s32.totalorder %s57, %s58
      %p67 = scmp.eq.s32.totalorder %s26, 0
      %p68 = por %p66, %p67
      %p69 = scmp.ne.s32.totalorder %s57, %s58
      %p70 = scmp.eq.s32.totalorder %s27, 1
      %p71 = por %p69, %p70
      %p73 = scmp.ne.s32.totalorder %s58, %s72
      %p74 = scmp.eq.s32.totalorder %s27, 0
      %p75 = por %p73, %p74
      %s76 = ssub.s32 %s21, %s28
      %p77 = scmp.eq.s32.totalorder %s76, 0
      %s79 = sadd.s32 %s78, 1
      %s80 = scalar_select %p77, %s78, %s79
      %p83 = pneg %p77
      %p84 = scmp.eq.s32.totalorder %s21, 1
      %p85 = por %p83, %p84
      %p86 = scmp.ne.s32.totalorder %s78, %s81
      %p87 = scmp.eq.s32.totalorder %s21, 0
      %p88 = por %p86, %p87
      %p89 = scmp.ne.s32.totalorder %s78, %s81
      %p90 = scmp.eq.s32.totalorder %s26, 1
      %p91 = por %p89, %p90
      %p92 = scmp.ne.s32.totalorder %s81, %s82
      %p93 = scmp.eq.s32.totalorder %s26, 0
      %p94 = por %p92, %p93
      %p95 = scmp.ne.s32.totalorder %s81, %s82
      %p96 = scmp.eq.s32.totalorder %s27, 1
      %p97 = por %p95, %p96
      %p99 = scmp.ne.s32.totalorder %s82, %s98
      %p100 = scmp.eq.s32.totalorder %s27, 0
      %p101 = por %p99, %p100
      %s103 = sadd.s32 %s102, 1
      %p106 = scmp.eq.s32.totalorder %s21, 1
      %p107 = scmp.ne.s32.totalorder %s102, %s104
      %p108 = scmp.eq.s32.totalorder %s21, 0
      %p109 = por %p107, %p108
      %p110 = scmp.ne.s32.totalorder %s102, %s104
      %p111 = scmp.eq.s32.totalorder %s26, 1
      %p112 = por %p110, %p111
      %p113 = scmp.ne.s32.totalorder %s104, %s105
      %p114 = scmp.eq.s32.totalorder %s26, 0
      %p115 = por %p113, %p114
      %p116 = scmp.ne.s32.totalorder %s104, %s105
      %p117 = scmp.eq.s32.totalorder %s27, 1
      %p118 = por %p116, %p117
      %p120 = scmp.ne.s32.totalorder %s105, %s119
      %p121 = scmp.eq.s32.totalorder %s27, 0
      %p122 = por %p120, %p121
      %s124 = sadd.s32 %s123, 1
      %p127 = scmp.eq.s32.totalorder %s21, 1
      %p128 = scmp.ne.s32.totalorder %s123, %s125
      %p129 = scmp.eq.s32.totalorder %s21, 0
      %p130 = por %p128, %p129
      %p131 = scmp.ne.s32.totalorder %s123, %s125
      %p132 = scmp.eq.s32.totalorder %s26, 1
      %p133 = por %p131, %p132
      %p134 = scmp.ne.s32.totalorder %s125, %s126
      %p135 = scmp.eq.s32.totalorder %s26, 0
      %p136 = por %p134, %p135
      %p137 = scmp.ne.s32.totalorder %s125, %s126
      %p138 = scmp.eq.s32.totalorder %s27, 1
      %p139 = por %p137, %p138
      %p141 = scmp.ne.s32.totalorder %s126, %s140
      %p142 = scmp.eq.s32.totalorder %s27, 0
      %p143 = por %p141, %p142
      %s145 = sadd.s32 %s144, 1
      %p148 = scmp.eq.s32.totalorder %s21, 1
      %p149 = scmp.ne.s32.totalorder %s144, %s146
      %p150 = scmp.eq.s32.totalorder %s21, 0
      %p151 = por %p149, %p150
      %p152 = scmp.ne.s32.totalorder %s144, %s146
      %p153 = scmp.eq.s32.totalorder %s26, 1
      %p154 = por %p152, %p153
      %p155 = scmp.ne.s32.totalorder %s146, %s147
      %p156 = scmp.eq.s32.totalorder %s26, 0
      %p157 = por %p155, %p156
      %p158 = scmp.ne.s32.totalorder %s146, %s147
      %p159 = scmp.eq.s32.totalorder %s27, 1
      %p160 = por %p158, %p159
      %p162 = scmp.ne.s32.totalorder %s147, %s161
      %p163 = scmp.eq.s32.totalorder %s27, 0
      %p164 = por %p162, %p163
      %s166 = sadd.s32 %s165, 1
      %p169 = scmp.eq.s32.totalorder %s21, 1
      %p170 = scmp.ne.s32.totalorder %s165, %s167
      %p171 = scmp.eq.s32.totalorder %s21, 0
      %p172 = por %p170, %p171
      %p173 = scmp.ne.s32.totalorder %s165, %s167
      %p174 = scmp.eq.s32.totalorder %s26, 1
      %p175 = por %p173, %p174
      %p176 = scmp.ne.s32.totalorder %s167, %s168
      %p177 = scmp.eq.s32.totalorder %s26, 0
      %p178 = por %p176, %p177
      %p179 = scmp.ne.s32.totalorder %s167, %s168
      %p180 = scmp.eq.s32.totalorder %s27, 1
      %p181 = por %p179, %p180
      %p183 = scmp.ne.s32.totalorder %s168, %s182
      %p184 = scmp.eq.s32.totalorder %s27, 0
      %p185 = por %p183, %p184
      %s186 = ssub.s32 %s21, %s28
      %p187 = scmp.eq.s32.totalorder %s186, 0
      %s189 = sadd.s32 %s188, 1
      %s190 = scalar_select %p187, %s188, %s189
      %p193 = pneg %p187
      %p194 = scmp.eq.s32.totalorder %s21, 1
      %p195 = por %p193, %p194
      %p196 = scmp.ne.s32.totalorder %s188, %s191
      %p197 = scmp.eq.s32.totalorder %s21, 0
      %p198 = por %p196, %p197
      %p199 = scmp.ne.s32.totalorder %s188, %s191
      %p200 = scmp.eq.s32.totalorder %s26, 1
      %p201 = por %p199, %p200
      %p202 = scmp.ne.s32.totalorder %s191, %s192
      %p203 = scmp.eq.s32.totalorder %s26, 0
      %p204 = por %p202, %p203
      %p205 = scmp.ne.s32.totalorder %s191, %s192
      %p206 = scmp.eq.s32.totalorder %s27, 1
      %p207 = por %p205, %p206
      %p209 = scmp.ne.s32.totalorder %s192, %s208
      %p210 = scmp.eq.s32.totalorder %s27, 0
      %p211 = por %p209, %p210
      %p212 = scmp.le.s32.totalorder 1, %s21
      %p213 = scmp.lt.s32.totalorder %s21, 3
      %p214 = pnand %p212, %p213
      %p215 = pneg %p214
      // Predicated region
      $region9: #{tpu_custom_call.1} parent=5 // pred_check
        _
      $region10: #{tpu_custom_call.1} parent=5 // pred_check_branch
        %217 = sbr.rel (%p214) target = $region12
      $region11: #{tpu_custom_call.1} parent=5 // pred_region
        %s218 = ssub.s32 %s21, 1
        // Predicated region
        $region13: #{tpu_custom_call.1} parent=11 // pred_check
          %p219 = pneg %p68
        $region14: #{tpu_custom_call.1} parent=11 // pred_check_branch
          %221 = sbr.rel (%p219) target = $region16
        $region15: #{tpu_custom_call.1} parent=11 // pred_region
          %s223 = ssub.s32 4096, 4096
          %224 = vsyncadd [#allocation6], %s223
          %s225 = sshll.u32 [#allocation5], 4
          %s226 = int_to_ptr.vmem [resolvable:$true] %s225
          %231 = dma.hbm_to_vmem [thread:$0]  %s1, 4096, %s226, [#allocation6], 128, 128, 8
        $region16: #{tpu_custom_call.1} parent=11 // pred_fallthru
          _
        // Predicated region
        $region17: #{tpu_custom_call.1} parent=11 // pred_check
          %p232 = pneg %p115
        $region18: #{tpu_custom_call.1} parent=11 // pred_check_branch
          %234 = sbr.rel (%p232) target = $region20
        $region19: #{tpu_custom_call.1} parent=11 // pred_region
          %s236 = ssub.s32 2048, 2048
          %237 = vsyncadd [#allocation6], %s236
          %s238 = sshll.u32 [#allocation8], 4
          %s239 = int_to_ptr.vmem [resolvable:$true] %s238
          %244 = dma.hbm_to_vmem [thread:$0]  %s3, 2048, %s239, [#allocation6], 128, 128, 8
        $region20: #{tpu_custom_call.1} parent=11 // pred_fallthru
          _
        // Predicated region
        $region21: #{tpu_custom_call.1} parent=11 // pred_check
          %p245 = pneg %p136
        $region22: #{tpu_custom_call.1} parent=11 // pred_check_branch
          %247 = sbr.rel (%p245) target = $region24
        $region23: #{tpu_custom_call.1} parent=11 // pred_region
          _
        $region24: #{tpu_custom_call.1} parent=11 // pred_fallthru
          _
        // Predicated region
        $region25: #{tpu_custom_call.1} parent=11 // pred_check
          %p248 = pneg %p157
        $region26: #{tpu_custom_call.1} parent=11 // pred_check_branch
          %250 = sbr.rel (%p248) target = $region28
        $region27: #{tpu_custom_call.1} parent=11 // pred_region
          %s252 = ssub.s32 2048, 2048
          %253 = vsyncadd [#allocation10], %s252
          %s254 = sshll.u32 [#allocation9], 4
          %s255 = int_to_ptr.vmem [resolvable:$true] %s254
          %260 = dma.hbm_to_vmem [thread:$0]  %s5, 2048, %s255, [#allocation10], 128, 128, 8
        $region28: #{tpu_custom_call.1} parent=11 // pred_fallthru
          _
        // Predicated region
        $region29: #{tpu_custom_call.1} parent=11 // pred_check
          %p261 = pneg %p178
        $region30: #{tpu_custom_call.1} parent=11 // pred_check_branch
          %263 = sbr.rel (%p261) target = $region32
        $region31: #{tpu_custom_call.1} parent=11 // pred_region
          _
        $region32: #{tpu_custom_call.1} parent=11 // pred_fallthru
          _
      $region12: #{tpu_custom_call.1} parent=5 // pred_fallthru
        _
      %p264 = scmp.lt.s32.totalorder %s21, 2
      // Predicated region
      $region33: #{tpu_custom_call.1} parent=5 // pred_check
        %p265 = pneg %p264
      $region34: #{tpu_custom_call.1} parent=5 // pred_check_branch
        %267 = sbr.rel (%p265) target = $region36
      $region35: #{tpu_custom_call.1} parent=5 // pred_region
        // Predicated region
        $region37: #{tpu_custom_call.1} parent=35 // pred_check
          %p268 = pneg %p41
        $region38: #{tpu_custom_call.1} parent=35 // pred_check_branch
          %270 = sbr.rel (%p268) target = $region40
        $region39: #{tpu_custom_call.1} parent=35 // pred_region
          %s271 = sand.u32 %s21, 1
          %s272 = scalar_lea.sflag [#allocation3], %s271
          %s273 = sand.u32 %s31, 1
          %s274 = smul.addr %s273, 256
          %s275 = scalar_lea.vmem [#allocation2], %s274
          %s276 = smul.u32 16, %s21
          %s278 = ssub.s32 4096, 4096
          %279 = vsyncadd %s272, %s278
          %s280 = smul.addr %s276, 2
          %s281 = smul.addr %s280, 128
          %s282 = scalar_lea.hbm %s0, %s281
          %s283 = sshll.u32 %s275, 4
          %s284 = int_to_ptr.vmem [resolvable:$true] %s283
          %289 = dma.hbm_to_vmem [thread:$0]  %s282, 4096, %s284, %s272, 256, 256, 16
        $region40: #{tpu_custom_call.1} parent=35 // pred_fallthru
          _
        // Predicated region
        $region41: #{tpu_custom_call.1} parent=35 // pred_check
          %p290 = pneg %p88
        $region42: #{tpu_custom_call.1} parent=35 // pred_check_branch
          %292 = sbr.rel (%p290) target = $region44
        $region43: #{tpu_custom_call.1} parent=35 // pred_region
          %s293 = sand.u32 %s21, 1
          %s294 = scalar_lea.sflag [#allocation3], %s293
          %s295 = sand.u32 %s78, 1
          %s296 = smul.addr %s295, 128
          %s297 = scalar_lea.vmem [#allocation7], %s296
          %s298 = smul.u32 16, %s21
          %s300 = ssub.s32 2048, 2048
          %301 = vsyncadd %s294, %s300
          %s302 = smul.addr %s298, 128
          %s303 = scalar_lea.hbm %s2, %s302
          %s304 = sshll.u32 %s297, 4
          %s305 = int_to_ptr.vmem [resolvable:$true] %s304
          %310 = dma.hbm_to_vmem [thread:$0]  %s303, 2048, %s305, %s294, 128, 128, 8
        $region44: #{tpu_custom_call.1} parent=35 // pred_fallthru
          _
      $region36: #{tpu_custom_call.1} parent=5 // pred_fallthru
        _
      %p311 = scmp.le.s32.totalorder 1, %s21
      %p312 = scmp.lt.s32.totalorder %s21, 3
      %p313 = pnand %p311, %p312
      %p314 = pneg %p313
      // Predicated region
      $region45: #{tpu_custom_call.1} parent=5 // pred_check
        _
      $region46: #{tpu_custom_call.1} parent=5 // pred_check_branch
        %316 = sbr.rel (%p313) target = $region48
      $region47: #{tpu_custom_call.1} parent=5 // pred_region
        %s317 = ssub.s32 %s21, 1
        %s318 = sand.u32 %s26, 1
        %s319 = scalar_lea.sflag [#allocation3], %s318
        %s320 = sand.u32 %s34, 1
        %s321 = smul.addr %s320, 256
        %s322 = scalar_lea.vmem [#allocation2], %s321
        // Predicated region
        $region49: #{tpu_custom_call.1} parent=47 // pred_check
          %p323 = pneg %p47
        $region50: #{tpu_custom_call.1} parent=47 // pred_check_branch
          %325 = sbr.rel (%p323) target = $region52
        $region51: #{tpu_custom_call.1} parent=47 // pred_region
          %326 = dma.done %s319, 4096
        $region52: #{tpu_custom_call.1} parent=47 // pred_fallthru
          _
        // Predicated region
        $region53: #{tpu_custom_call.1} parent=47 // pred_check
          %p327 = pneg %p68
        $region54: #{tpu_custom_call.1} parent=47 // pred_check_branch
          %329 = sbr.rel (%p327) target = $region56
        $region55: #{tpu_custom_call.1} parent=47 // pred_region
          %330 = dma.done [#allocation6], 4096
        $region56: #{tpu_custom_call.1} parent=47 // pred_fallthru
          _
        %s331 = sand.u32 %s26, 1
        %s332 = scalar_lea.sflag [#allocation3], %s331
        %s333 = sand.u32 %s81, 1
        %s334 = smul.addr %s333, 128
        %s335 = scalar_lea.vmem [#allocation7], %s334
        // Predicated region
        $region57: #{tpu_custom_call.1} parent=47 // pred_check
          %p336 = pneg %p94
        $region58: #{tpu_custom_call.1} parent=47 // pred_check_branch
          %338 = sbr.rel (%p336) target = $region60
        $region59: #{tpu_custom_call.1} parent=47 // pred_region
          %339 = dma.done %s332, 2048
        $region60: #{tpu_custom_call.1} parent=47 // pred_fallthru
          _
        // Predicated region
        $region61: #{tpu_custom_call.1} parent=47 // pred_check
          %p340 = pneg %p115
        $region62: #{tpu_custom_call.1} parent=47 // pred_check_branch
          %342 = sbr.rel (%p340) target = $region64
        $region63: #{tpu_custom_call.1} parent=47 // pred_region
          %343 = dma.done [#allocation6], 2048
        $region64: #{tpu_custom_call.1} parent=47 // pred_fallthru
          _
        // Predicated region
        $region65: #{tpu_custom_call.1} parent=47 // pred_check
          %p344 = pneg %p157
        $region66: #{tpu_custom_call.1} parent=47 // pred_check_branch
          %346 = sbr.rel (%p344) target = $region68
        $region67: #{tpu_custom_call.1} parent=47 // pred_region
          %347 = dma.done [#allocation10], 2048
        $region68: #{tpu_custom_call.1} parent=47 // pred_fallthru
          _
        %s348 = sand.u32 %s26, 1
        %s349 = scalar_lea.sflag [#allocation3], %s348
        %s350 = sand.u32 %s34, 1
        %s351 = smul.addr %s350, 256
        %s352 = scalar_lea.vmem [#allocation2], %s351
        %p353 = pneg %p47
        %p354 = pneg %p44
        %p355 = pneg %p68
        %p356 = pneg %p65
        %s357 = sand.u32 %s26, 1
        %s358 = scalar_lea.sflag [#allocation3], %s357
        %s359 = sand.u32 %s81, 1
        %s360 = smul.addr %s359, 128
        %s361 = scalar_lea.vmem [#allocation7], %s360
        %p362 = pneg %p94
        %p363 = pneg %p91
        %p364 = pneg %p115
        %p365 = pneg %p112
        %p366 = pneg %p136
        %p367 = pneg %p133
        %p368 = pneg %p157
        %p369 = pneg %p154
        %p370 = pneg %p178
        %p371 = pneg %p175
        %p372 = pneg %p204
        %p373 = pneg %p201
        %s374 = sand.u32 %s191, 1
        %s375 = scalar_lea.sflag [#allocation4], %s374
        %s376 = sand.u32 %s191, 1
        %s377 = smul.addr %s376, 128
        %s378 = scalar_lea.vmem [#allocation11], %s377
        %s379 = smul.u32 16, %s26
        %s380 = smul.u32 16, %s26
        %s381 = smul.u32 16, %s26
        %v382 = vld [vmem:[%s322] sm:$0xff]
        %v383 = vld [vmem:[%s322 + $0x8] sm:$0xff]
        %v384 = vld [vmem:[%s322 + $0x10] sm:$0xff]
        %v385 = vld [vmem:[%s322 + $0x18] sm:$0xff]
        %v386 = vld [vmem:[%s322 + $0x20] sm:$0xff]
        %v387 = vld [vmem:[%s322 + $0x28] sm:$0xff]
        %v388 = vld [vmem:[%s322 + $0x30] sm:$0xff]
        %v389 = vld [vmem:[%s322 + $0x38] sm:$0xff]
        %v390 = vld [vmem:[%s322 + $0x40] sm:$0xff]
        %v391 = vld [vmem:[%s322 + $0x48] sm:$0xff]
        %v392 = vld [vmem:[%s322 + $0x50] sm:$0xff]
        %v393 = vld [vmem:[%s322 + $0x58] sm:$0xff]
        %v394 = vld [vmem:[%s322 + $0x60] sm:$0xff]
        %v395 = vld [vmem:[%s322 + $0x68] sm:$0xff]
        %v396 = vld [vmem:[%s322 + $0x70] sm:$0xff]
        %v397 = vld [vmem:[%s322 + $0x78] sm:$0xff]
        %v398 = vld [vmem:[%s322 + $0x80] sm:$0xff]
        %v399 = vld [vmem:[%s322 + $0x88] sm:$0xff]
        %v400 = vld [vmem:[%s322 + $0x90] sm:$0xff]
        %v401 = vld [vmem:[%s322 + $0x98] sm:$0xff]
        %v402 = vld [vmem:[%s322 + $0xa0] sm:$0xff]
        %v403 = vld [vmem:[%s322 + $0xa8] sm:$0xff]
        %v404 = vld [vmem:[%s322 + $0xb0] sm:$0xff]
        %v405 = vld [vmem:[%s322 + $0xb8] sm:$0xff]
        %v406 = vld [vmem:[%s322 + $0xc0] sm:$0xff]
        %v407 = vld [vmem:[%s322 + $0xc8] sm:$0xff]
        %v408 = vld [vmem:[%s322 + $0xd0] sm:$0xff]
        %v409 = vld [vmem:[%s322 + $0xd8] sm:$0xff]
        %v410 = vld [vmem:[%s322 + $0xe0] sm:$0xff]
        %v411 = vld [vmem:[%s322 + $0xe8] sm:$0xff]
        %v412 = vld [vmem:[%s322 + $0xf0] sm:$0xff]
        %v413 = vld [vmem:[%s322 + $0xf8] sm:$0xff]
        %v414 = vld [vmem:[#allocation5] sm:$0xff]
        %v415 = vld [vmem:[#allocation5 + $0x8] sm:$0xff]
        %v416 = vld [vmem:[#allocation5 + $0x10] sm:$0xff]
        %v417 = vld [vmem:[#allocation5 + $0x18] sm:$0xff]
        %v418 = vld [vmem:[#allocation5 + $0x20] sm:$0xff]
        %v419 = vld [vmem:[#allocation5 + $0x28] sm:$0xff]
        %v420 = vld [vmem:[#allocation5 + $0x30] sm:$0xff]
        %v421 = vld [vmem:[#allocation5 + $0x38] sm:$0xff]
        %v422 = vld [vmem:[#allocation5 + $0x40] sm:$0xff]
        %v423 = vld [vmem:[#allocation5 + $0x48] sm:$0xff]
        %v424 = vld [vmem:[#allocation5 + $0x50] sm:$0xff]
        %v425 = vld [vmem:[#allocation5 + $0x58] sm:$0xff]
        %v426 = vld [vmem:[#allocation5 + $0x60] sm:$0xff]
        %v427 = vld [vmem:[#allocation5 + $0x68] sm:$0xff]
        %v428 = vld [vmem:[#allocation5 + $0x70] sm:$0xff]
        %v429 = vld [vmem:[#allocation5 + $0x78] sm:$0xff]
        %v430 = vld [vmem:[#allocation5 + $0x80] sm:$0xff]
        %v431 = vld [vmem:[#allocation5 + $0x88] sm:$0xff]
        %v432 = vld [vmem:[#allocation5 + $0x90] sm:$0xff]
        %v433 = vld [vmem:[#allocation5 + $0x98] sm:$0xff]
        %v434 = vld [vmem:[#allocation5 + $0xa0] sm:$0xff]
        %v435 = vld [vmem:[#allocation5 + $0xa8] sm:$0xff]
        %v436 = vld [vmem:[#allocation5 + $0xb0] sm:$0xff]
        %v437 = vld [vmem:[#allocation5 + $0xb8] sm:$0xff]
        %v438 = vld [vmem:[#allocation5 + $0xc0] sm:$0xff]
        %v439 = vld [vmem:[#allocation5 + $0xc8] sm:$0xff]
        %v440 = vld [vmem:[#allocation5 + $0xd0] sm:$0xff]
        %v441 = vld [vmem:[#allocation5 + $0xd8] sm:$0xff]
        %v442 = vld [vmem:[#allocation5 + $0xe0] sm:$0xff]
        %v443 = vld [vmem:[#allocation5 + $0xe8] sm:$0xff]
        %v444 = vld [vmem:[#allocation5 + $0xf0] sm:$0xff]
        %v445 = vld [vmem:[#allocation5 + $0xf8] sm:$0xff]
        %446 = vmatprep.subr.mxu0 0.0
        %v447 = vand.u32 %v414, 4294901760
        %448 = vmatpush1.msra.mxu0 %v447
        %449 = vmatprep.subr.mxu0 0.0
        %v450 = vand.u32 %v415, 4294901760
        %451 = vmatpush1.msra.mxu0 %v450
        %452 = vmatprep.subr.mxu0 0.0
        %v453 = vand.u32 %v416, 4294901760
        %454 = vmatpush1.msra.mxu0 %v453
        %455 = vmatprep.subr.mxu0 0.0
        %v456 = vand.u32 %v417, 4294901760
        %457 = vmatpush1.msra.mxu0 %v456
        %458 = vmatprep.subr.mxu0 0.0
        %v459 = vand.u32 %v418, 4294901760
        %460 = vmatpush1.msra.mxu0 %v459
        %461 = vmatprep.subr.mxu0 0.0
        %v462 = vand.u32 %v419, 4294901760
        %463 = vmatpush1.msra.mxu0 %v462
        %464 = vmatprep.subr.mxu0 0.0
        %v465 = vand.u32 %v420, 4294901760
        %466 = vmatpush1.msra.mxu0 %v465
        %467 = vmatprep.subr.mxu0 0.0
        %v468 = vand.u32 %v421, 4294901760
        %469 = vmatpush1.msra.mxu0 %v468
        %470 = vmatprep.subr.mxu0 0.0
        %v471 = vand.u32 %v422, 4294901760
        %472 = vmatpush1.msra.mxu0 %v471
        %473 = vmatprep.subr.mxu0 0.0
        %v474 = vand.u32 %v423, 4294901760
        %475 = vmatpush1.msra.mxu0 %v474
        %476 = vmatprep.subr.mxu0 0.0
        %v477 = vand.u32 %v424, 4294901760
        %478 = vmatpush1.msra.mxu0 %v477
        %479 = vmatprep.subr.mxu0 0.0
        %v480 = vand.u32 %v425, 4294901760
        %481 = vmatpush1.msra.mxu0 %v480
        %482 = vmatprep.subr.mxu0 0.0
        %v483 = vand.u32 %v426, 4294901760
        %484 = vmatpush1.msra.mxu0 %v483
        %485 = vmatprep.subr.mxu0 0.0
        %v486 = vand.u32 %v427, 4294901760
        %487 = vmatpush1.msra.mxu0 %v486
        %488 = vmatprep.subr.mxu0 0.0
        %v489 = vand.u32 %v428, 4294901760
        %490 = vmatpush1.msra.mxu0 %v489
        %491 = vmatprep.subr.mxu0 0.0
        %v492 = vand.u32 %v429, 4294901760
        %493 = vmatpush1.msra.mxu0 %v492
        %494 = vmatprep.subr.mxu0 0.0
        %v495 = vand.u32 %v430, 4294901760
        %496 = vmatpush1.msra.mxu0 %v495
        %497 = vmatprep.subr.mxu0 0.0
        %v498 = vand.u32 %v431, 4294901760
        %499 = vmatpush1.msra.mxu0 %v498
        %500 = vmatprep.subr.mxu0 0.0
        %v501 = vand.u32 %v432, 4294901760
        %502 = vmatpush1.msra.mxu0 %v501
        %503 = vmatprep.subr.mxu0 0.0
        %v504 = vand.u32 %v433, 4294901760
        %505 = vmatpush1.msra.mxu0 %v504
        %506 = vmatprep.subr.mxu0 0.0
        %v507 = vand.u32 %v434, 4294901760
        %508 = vmatpush1.msra.mxu0 %v507
        %509 = vmatprep.subr.mxu0 0.0
        %v510 = vand.u32 %v435, 4294901760
        %511 = vmatpush1.msra.mxu0 %v510
        %512 = vmatprep.subr.mxu0 0.0
        %v513 = vand.u32 %v436, 4294901760
        %514 = vmatpush1.msra.mxu0 %v513
        %515 = vmatprep.subr.mxu0 0.0
        %v516 = vand.u32 %v437, 4294901760
        %517 = vmatpush1.msra.mxu0 %v516
        %518 = vmatprep.subr.mxu0 0.0
        %v519 = vand.u32 %v438, 4294901760
        %520 = vmatpush1.msra.mxu0 %v519
        %521 = vmatprep.subr.mxu0 0.0
        %v522 = vand.u32 %v439, 4294901760
        %523 = vmatpush1.msra.mxu0 %v522
        %524 = vmatprep.subr.mxu0 0.0
        %v525 = vand.u32 %v440, 4294901760
        %526 = vmatpush1.msra.mxu0 %v525
        %527 = vmatprep.subr.mxu0 0.0
        %v528 = vand.u32 %v441, 4294901760
        %529 = vmatpush1.msra.mxu0 %v528
        %530 = vmatprep.subr.mxu0 0.0
        %v531 = vand.u32 %v442, 4294901760
        %532 = vmatpush1.msra.mxu0 %v531
        %533 = vmatprep.subr.mxu0 0.0
        %v534 = vand.u32 %v443, 4294901760
        %535 = vmatpush1.msra.mxu0 %v534
        %536 = vmatprep.subr.mxu0 0.0
        %v537 = vand.u32 %v444, 4294901760
        %538 = vmatpush1.msra.mxu0 %v537
        %539 = vmatprep.subr.mxu0 0.0
        %v540 = vand.u32 %v445, 4294901760
        %541 = vmatpush1.msra.mxu0 %v540
        %v542 = vand.u32 %v383, 4294901760
        %v543 = vsub.f32 %v383, %v542
        %v544 = vand.u32 %v543, 4294901760
        %v545 = vsub.f32 %v543, %v544
        %v546 = vand.u32 %v545, 4294901760
        %547 = vmatprep.mubr.f32.mxu0 %v546
        %v548 = vand.u32 %v382, 4294901760
        %v549 = vsub.f32 %v382, %v548
        %v550 = vand.u32 %v549, 4294901760
        %v551 = vsub.f32 %v549, %v550
        %v552 = vand.u32 %v551, 4294901760
        %553 = vmatmul.mubr.f32.gmra.mrb[0].mxu0 %v552
        %v554 = vpop.f32.mrb[0].mxu0
        %v555 = vadd.f32 0.0, %v554
        %v556 = vpop.f32.mrb[0].mxu0
        %v557 = vand.u32 %v385, 4294901760
        %v558 = vsub.f32 %v385, %v557
        %v559 = vand.u32 %v558, 4294901760
        %v560 = vsub.f32 %v558, %v559
        %v561 = vand.u32 %v560, 4294901760
        %562 = vmatprep.mubr.f32.mxu0 %v561
        %v563 = vand.u32 %v384, 4294901760
        %v564 = vsub.f32 %v384, %v563
        %v565 = vand.u32 %v564, 4294901760
        %v566 = vsub.f32 %v564, %v565
        %v567 = vand.u32 %v566, 4294901760
        %568 = vmatmul.mubr.f32.gmra.mrb[0].mxu0 %v567
        %v569 = vpop.f32.mrb[0].mxu0
        %v570 = vadd.f32 0.0, %v569
        %v571 = vpop.f32.mrb[0].mxu0
        %v572 = vand.u32 %v387, 4294901760
        %v573 = vsub.f32 %v387, %v572
        %v574 = vand.u32 %v573, 4294901760
        %v575 = vsub.f32 %v573, %v574
        %v576 = vand.u32 %v575, 4294901760
        %577 = vmatprep.mubr.f32.mxu0 %v576
        %v578 = vand.u32 %v386, 4294901760
        %v579 = vsub.f32 %v386, %v578
        %v580 = vand.u32 %v579, 4294901760
        %v581 = vsub.f32 %v579, %v580
        %v582 = vand.u32 %v581, 4294901760
        %583 = vmatmul.mubr.f32.gmra.mrb[0].mxu0 %v582
        %v584 = vpop.f32.mrb[0].mxu0
        %v585 = vadd.f32 0.0, %v584
        %v586 = vpop.f32.mrb[0].mxu0
        %v587 = vand.u32 %v389, 4294901760
        %v588 = vsub.f32 %v389, %v587
        %v589 = vand.u32 %v588, 4294901760
        %v590 = vsub.f32 %v588, %v589
        %v591 = vand.u32 %v590, 4294901760
        %592 = vmatprep.mubr.f32.mxu0 %v591
        %v593 = vand.u32 %v388, 4294901760
        %v594 = vsub.f32 %v388, %v593
        %v595 = vand.u32 %v594, 4294901760
        %v596 = vsub.f32 %v594, %v595
        %v597 = vand.u32 %v596, 4294901760
        %598 = vmatmul.mubr.f32.gmra.mrb[0].mxu0 %v597
        %v599 = vpop.f32.mrb[0].mxu0
        %v600 = vadd.f32 0.0, %v599
        %v601 = vpop.f32.mrb[0].mxu0
        %v602 = vand.u32 %v391, 4294901760
        %v603 = vsub.f32 %v391, %v602
        %v604 = vand.u32 %v603, 4294901760
        %v605 = vsub.f32 %v603, %v604
        %v606 = vand.u32 %v605, 4294901760
        %607 = vmatprep.mubr.f32.mxu0 %v606
        %v608 = vand.u32 %v390, 4294901760
        %v609 = vsub.f32 %v390, %v608
        %v610 = vand.u32 %v609, 4294901760
        %v611 = vsub.f32 %v609, %v610
        %v612 = vand.u32 %v611, 4294901760
        %613 = vmatmul.mubr.f32.gmra.mrb[0].mxu0 %v612
        %v614 = vpop.f32.mrb[0].mxu0
        %v615 = vadd.f32 0.0, %v614
        %v616 = vpop.f32.mrb[0].mxu0
        %v617 = vand.u32 %v393, 4294901760
        %v618 = vsub.f32 %v393, %v617
        %v619 = vand.u32 %v618, 4294901760
        %v620 = vsub.f32 %v618, %v619
        %v621 = vand.u32 %v620, 4294901760
        %622 = vmatprep.mubr.f32.mxu0 %v621
        %v623 = vand.u32 %v392, 4294901760
        %v624 = vsub.f32 %v392, %v623
        %v625 = vand.u32 %v624, 4294901760
        %v626 = vsub.f32 %v624, %v625
        %v627 = vand.u32 %v626, 4294901760
        %628 = vmatmul.mubr.f32.gmra.mrb[0].mxu0 %v627
        %v629 = vpop.f32.mrb[0].mxu0
        %v630 = vadd.f32 0.0, %v629
        %v631 = vpop.f32.mrb[0].mxu0
        %v632 = vand.u32 %v395, 4294901760
        %v633 = vsub.f32 %v395, %v632
        %v634 = vand.u32 %v633, 4294901760
        %v635 = vsub.f32 %v633, %v634
        %v636 = vand.u32 %v635, 4294901760
        %637 = vmatprep.mubr.f32.mxu0 %v636
        %v638 = vand.u32 %v394, 4294901760
        %v639 = vsub.f32 %v394, %v638
        %v640 = vand.u32 %v639, 4294901760
        %v641 = vsub.f32 %v639, %v640
        %v642 = vand.u32 %v641, 4294901760
        %643 = vmatmul.mubr.f32.gmra.mrb[0].mxu0 %v642
        %v644 = vpop.f32.mrb[0].mxu0
        %v645 = vadd.f32 0.0, %v644
        %v646 = vpop.f32.mrb[0].mxu0
        %v647 = vand.u32 %v397, 4294901760
        %v648 = vsub.f32 %v397, %v647
        %v649 = vand.u32 %v648, 4294901760
        %v650 = vsub.f32 %v648, %v649
        %v651 = vand.u32 %v650, 4294901760
        %652 = vmatprep.mubr.f32.mxu0 %v651
        %v653 = vand.u32 %v396, 4294901760
        %v654 = vsub.f32 %v396, %v653
        %v655 = vand.u32 %v654, 4294901760
        %v656 = vsub.f32 %v654, %v655
        %v657 = vand.u32 %v656, 4294901760
        %658 = vmatmul.mubr.f32.gmra.mrb[0].mxu0 %v657
        %v659 = vpop.f32.mrb[0].mxu0
        %v660 = vadd.f32 0.0, %v659
        %v661 = vpop.f32.mrb[0].mxu0
        %v662 = vand.u32 %v399, 4294901760
        %v663 = vsub.f32 %v399, %v662
        %v664 = vand.u32 %v663, 4294901760
        %v665 = vsub.f32 %v663, %v664
        %v666 = vand.u32 %v665, 4294901760
        %667 = vmatprep.mubr.f32.mxu0 %v666
        %v668 = vand.u32 %v398, 4294901760
        %v669 = vsub.f32 %v398, %v668
        %v670 = vand.u32 %v669, 4294901760
        %v671 = vsub.f32 %v669, %v670
        %v672 = vand.u32 %v671, 4294901760
        %673 = vmatmul.mubr.f32.gmra.mrb[0].mxu0 %v672
        %v674 = vpop.f32.mrb[0].mxu0
        %v675 = vadd.f32 0.0, %v674
        %v676 = vpop.f32.mrb[0].mxu0
        %v677 = vand.u32 %v401, 4294901760
        %v678 = vsub.f32 %v401, %v677
        %v679 = vand.u32 %v678, 4294901760
        %v680 = vsub.f32 %v678, %v679
        %v681 = vand.u32 %v680, 4294901760
        %682 = vmatprep.mubr.f32.mxu0 %v681
        %v683 = vand.u32 %v400, 4294901760
        %v684 = vsub.f32 %v400, %v683
        %v685 = vand.u32 %v684, 4294901760
        %v686 = vsub.f32 %v684, %v685
        %v687 = vand.u32 %v686, 4294901760
        %688 = vmatmul.mubr.f32.gmra.mrb[0].mxu0 %v687
        %v689 = vpop.f32.mrb[0].mxu0
        %v690 = vadd.f32 0.0, %v689
        %v691 = vpop.f32.mrb[0].mxu0
        %v692 = vand.u32 %v403, 4294901760
        %v693 = vsub.f32 %v403, %v692
        %v694 = vand.u32 %v693, 4294901760
        %v695 = vsub.f32 %v693, %v694
        %v696 = vand.u32 %v695, 4294901760
        %697 = vmatprep.mubr.f32.mxu0 %v696
        %v698 = vand.u32 %v402, 4294901760
        %v699 = vsub.f32 %v402, %v698
        %v700 = vand.u32 %v699, 4294901760
        %v701 = vsub.f32 %v699, %v700
        %v702 = vand.u32 %v701, 4294901760
        %703 = vmatmul.mubr.f32.gmra.mrb[0].mxu0 %v702
        %v704 = vpop.f32.mrb[0].mxu0
        %v705 = vadd.f32 0.0, %v704
        %v706 = vpop.f32.mrb[0].mxu0
        %v707 = vand.u32 %v405, 4294901760
        %v708 = vsub.f32 %v405, %v707
        %v709 = vand.u32 %v708, 4294901760
        %v710 = vsub.f32 %v708, %v709
        %v711 = vand.u32 %v710, 4294901760
        %712 = vmatprep.mubr.f32.mxu0 %v711
        %v713 = vand.u32 %v404, 4294901760
        %v714 = vsub.f32 %v404, %v713
        %v715 = vand.u32 %v714, 4294901760
        %v716 = vsub.f32 %v714, %v715
        %v717 = vand.u32 %v716, 4294901760
        %718 = vmatmul.mubr.f32.gmra.mrb[0].mxu0 %v717
        %v719 = vpop.f32.mrb[0].mxu0
        %v720 = vadd.f32 0.0, %v719
        %v721 = vpop.f32.mrb[0].mxu0
        %v722 = vand.u32 %v407, 4294901760
        %v723 = vsub.f32 %v407, %v722
        %v724 = vand.u32 %v723, 4294901760
        %v725 = vsub.f32 %v723, %v724
        %v726 = vand.u32 %v725, 4294901760
        %727 = vmatprep.mubr.f32.mxu0 %v726
        %v728 = vand.u32 %v406, 4294901760
        %v729 = vsub.f32 %v406, %v728
        %v730 = vand.u32 %v729, 4294901760
        %v731 = vsub.f32 %v729, %v730
        %v732 = vand.u32 %v731, 4294901760
        %733 = vmatmul.mubr.f32.gmra.mrb[0].mxu0 %v732
        %v734 = vpop.f32.mrb[0].mxu0
        %v735 = vadd.f32 0.0, %v734
        %v736 = vpop.f32.mrb[0].mxu0
        %v737 = vand.u32 %v409, 4294901760
        %v738 = vsub.f32 %v409, %v737
        %v739 = vand.u32 %v738, 4294901760
        %v740 = vsub.f32 %v738, %v739
        %v741 = vand.u32 %v740, 4294901760
        %742 = vmatprep.mubr.f32.mxu0 %v741
        %v743 = vand.u32 %v408, 4294901760
        %v744 = vsub.f32 %v408, %v743
        %v745 = vand.u32 %v744, 4294901760
        %v746 = vsub.f32 %v744, %v745
        %v747 = vand.u32 %v746, 4294901760
        %748 = vmatmul.mubr.f32.gmra.mrb[0].mxu0 %v747
        %v749 = vpop.f32.mrb[0].mxu0
        %v750 = vadd.f32 0.0, %v749
        %v751 = vpop.f32.mrb[0].mxu0
        %v752 = vand.u32 %v411, 4294901760
        %v753 = vsub.f32 %v411, %v752
        %v754 = vand.u32 %v753, 4294901760
        %v755 = vsub.f32 %v753, %v754
        %v756 = vand.u32 %v755, 4294901760
        %757 = vmatprep.mubr.f32.mxu0 %v756
        %v758 = vand.u32 %v410, 4294901760
        %v759 = vsub.f32 %v410, %v758
        %v760 = vand.u32 %v759, 4294901760
        %v761 = vsub.f32 %v759, %v760
        %v762 = vand.u32 %v761, 4294901760
        %763 = vmatmul.mubr.f32.gmra.mrb[0].mxu0 %v762
        %v764 = vpop.f32.mrb[0].mxu0
        %v765 = vadd.f32 0.0, %v764
        %v766 = vpop.f32.mrb[0].mxu0
        %v767 = vand.u32 %v413, 4294901760
        %v768 = vsub.f32 %v413, %v767
        %v769 = vand.u32 %v768, 4294901760
        %v770 = vsub.f32 %v768, %v769
        %v771 = vand.u32 %v770, 4294901760
        %772 = vmatprep.mubr.f32.mxu0 %v771
        %v773 = vand.u32 %v412, 4294901760
        %v774 = vsub.f32 %v412, %v773
        %v775 = vand.u32 %v774, 4294901760
        %v776 = vsub.f32 %v774, %v775
        %v777 = vand.u32 %v776, 4294901760
        %778 = vmatmul.mubr.f32.gmra.mrb[0].mxu0 %v777
        %v779 = vpop.f32.mrb[0].mxu0
        %v780 = vadd.f32 0.0, %v779
        %v781 = vpop.f32.mrb[0].mxu0
        %782 = vdwg.mxu0
        %783 = vmatprep.subr.mxu0 0.0
        %v784 = vand.u32 %v414, 4294901760
        %v785 = vsub.f32 %v414, %v784
        %v786 = vand.u32 %v785, 4294901760
        %v787 = vsub.f32 %v785, %v786
        %v788 = vand.u32 %v787, 4294901760
        %789 = vmatpush1.msra.mxu0 %v788
        %790 = vmatprep.subr.mxu0 0.0
        %v791 = vand.u32 %v415, 4294901760
        %v792 = vsub.f32 %v415, %v791
        %v793 = vand.u32 %v792, 4294901760
        %v794 = vsub.f32 %v792, %v793
        %v795 = vand.u32 %v794, 4294901760
        %796 = vmatpush1.msra.mxu0 %v795
        %797 = vmatprep.subr.mxu0 0.0
        %v798 = vand.u32 %v416, 4294901760
        %v799 = vsub.f32 %v416, %v798
        %v800 = vand.u32 %v799, 4294901760
        %v801 = vsub.f32 %v799, %v800
        %v802 = vand.u32 %v801, 4294901760
        %803 = vmatpush1.msra.mxu0 %v802
        %804 = vmatprep.subr.mxu0 0.0
        %v805 = vand.u32 %v417, 4294901760
        %v806 = vsub.f32 %v417, %v805
        %v807 = vand.u32 %v806, 4294901760
        %v808 = vsub.f32 %v806, %v807
        %v809 = vand.u32 %v808, 4294901760
        %810 = vmatpush1.msra.mxu0 %v809
        %811 = vmatprep.subr.mxu0 0.0
        %v812 = vand.u32 %v418, 4294901760
        %v813 = vsub.f32 %v418, %v812
        %v814 = vand.u32 %v813, 4294901760
        %v815 = vsub.f32 %v813, %v814
        %v816 = vand.u32 %v815, 4294901760
        %817 = vmatpush1.msra.mxu0 %v816
        %818 = vmatprep.subr.mxu0 0.0
        %v819 = vand.u32 %v419, 4294901760
        %v820 = vsub.f32 %v419, %v819
        %v821 = vand.u32 %v820, 4294901760
        %v822 = vsub.f32 %v820, %v821
        %v823 = vand.u32 %v822, 4294901760
        %824 = vmatpush1.msra.mxu0 %v823
        %825 = vmatprep.subr.mxu0 0.0
        %v826 = vand.u32 %v420, 4294901760
        %v827 = vsub.f32 %v420, %v826
        %v828 = vand.u32 %v827, 4294901760
        %v829 = vsub.f32 %v827, %v828
        %v830 = vand.u32 %v829, 4294901760
        %831 = vmatpush1.msra.mxu0 %v830
        %832 = vmatprep.subr.mxu0 0.0
        %v833 = vand.u32 %v421, 4294901760
        %v834 = vsub.f32 %v421, %v833
        %v835 = vand.u32 %v834, 4294901760
        %v836 = vsub.f32 %v834, %v835
        %v837 = vand.u32 %v836, 4294901760
        %838 = vmatpush1.msra.mxu0 %v837
        %839 = vmatprep.subr.mxu0 0.0
        %v840 = vand.u32 %v422, 4294901760
        %v841 = vsub.f32 %v422, %v840
        %v842 = vand.u32 %v841, 4294901760
        %v843 = vsub.f32 %v841, %v842
        %v844 = vand.u32 %v843, 4294901760
        %845 = vmatpush1.msra.mxu0 %v844
        %846 = vmatprep.subr.mxu0 0.0
        %v847 = vand.u32 %v423, 4294901760
        %v848 = vsub.f32 %v423, %v847
        %v849 = vand.u32 %v848, 4294901760
        %v850 = vsub.f32 %v848, %v849
        %v851 = vand.u32 %v850, 4294901760
        %852 = vmatpush1.msra.mxu0 %v851
        %853 = vmatprep.subr.mxu0 0.0
        %v854 = vand.u32 %v424, 4294901760
        %v855 = vsub.f32 %v424, %v854
        %v856 = vand.u32 %v855, 4294901760
        %v857 = vsub.f32 %v855, %v856
        %v858 = vand.u32 %v857, 4294901760
        %859 = vmatpush1.msra.mxu0 %v858
        %860 = vmatprep.subr.mxu0 0.0
        %v861 = vand.u32 %v425, 4294901760
        %v862 = vsub.f32 %v425, %v861
        %v863 = vand.u32 %v862, 4294901760
        %v864 = vsub.f32 %v862, %v863
        %v865 = vand.u32 %v864, 4294901760
        %866 = vmatpush1.msra.mxu0 %v865
        %867 = vmatprep.subr.mxu0 0.0
        %v868 = vand.u32 %v426, 4294901760
        %v869 = vsub.f32 %v426, %v868
        %v870 = vand.u32 %v869, 4294901760
        %v871 = vsub.f32 %v869, %v870
        %v872 = vand.u32 %v871, 4294901760
        %873 = vmatpush1.msra.mxu0 %v872
        %874 = vmatprep.subr.mxu0 0.0
        %v875 = vand.u32 %v427, 4294901760
        %v876 = vsub.f32 %v427, %v875
        %v877 = vand.u32 %v876, 4294901760
        %v878 = vsub.f32 %v876, %v877
        %v879 = vand.u32 %v878, 4294901760
        %880 = vmatpush1.msra.mxu0 %v879
        %881 = vmatprep.subr.mxu0 0.0
        %v882 = vand.u32 %v428, 4294901760
        %v883 = vsub.f32 %v428, %v882
        %v884 = vand.u32 %v883, 4294901760
        %v885 = vsub.f32 %v883, %v884
        %v886 = vand.u32 %v885, 4294901760
        %887 = vmatpush1.msra.mxu0 %v886
        %888 = vmatprep.subr.mxu0 0.0
        %v889 = vand.u32 %v429, 4294901760
        %v890 = vsub.f32 %v429, %v889
        %v891 = vand.u32 %v890, 4294901760
        %v892 = vsub.f32 %v890, %v891
        %v893 = vand.u32 %v892, 4294901760
        %894 = vmatpush1.msra.mxu0 %v893
        %895 = vmatprep.subr.mxu0 0.0
        %v896 = vand.u32 %v430, 4294901760
        %v897 = vsub.f32 %v430, %v896
        %v898 = vand.u32 %v897, 4294901760
        %v899 = vsub.f32 %v897, %v898
        %v900 = vand.u32 %v899, 4294901760
        %901 = vmatpush1.msra.mxu0 %v900
        %902 = vmatprep.subr.mxu0 0.0
        %v903 = vand.u32 %v431, 4294901760
        %v904 = vsub.f32 %v431, %v903
        %v905 = vand.u32 %v904, 4294901760
        %v906 = vsub.f32 %v904, %v905
        %v907 = vand.u32 %v906, 4294901760
        %908 = vmatpush1.msra.mxu0 %v907
        %909 = vmatprep.subr.mxu0 0.0
        %v910 = vand.u32 %v432, 4294901760
        %v911 = vsub.f32 %v432, %v910
        %v912 = vand.u32 %v911, 4294901760
        %v913 = vsub.f32 %v911, %v912
        %v914 = vand.u32 %v913, 4294901760
        %915 = vmatpush1.msra.mxu0 %v914
        %916 = vmatprep.subr.mxu0 0.0
        %v917 = vand.u32 %v433, 4294901760
        %v918 = vsub.f32 %v433, %v917
        %v919 = vand.u32 %v918, 4294901760
        %v920 = vsub.f32 %v918, %v919
        %v921 = vand.u32 %v920, 4294901760
        %922 = vmatpush1.msra.mxu0 %v921
        %923 = vmatprep.subr.mxu0 0.0
        %v924 = vand.u32 %v434, 4294901760
        %v925 = vsub.f32 %v434, %v924
        %v926 = vand.u32 %v925, 4294901760
        %v927 = vsub.f32 %v925, %v926
        %v928 = vand.u32 %v927, 4294901760
        %929 = vmatpush1.msra.mxu0 %v928
        %930 = vmatprep.subr.mxu0 0.0
        %v931 = vand.u32 %v435, 4294901760
        %v932 = vsub.f32 %v435, %v931
        %v933 = vand.u32 %v932, 4294901760
        %v934 = vsub.f32 %v932, %v933
        %v935 = vand.u32 %v934, 4294901760
        %936 = vmatpush1.msra.mxu0 %v935
        %937 = vmatprep.subr.mxu0 0.0
        %v938 = vand.u32 %v436, 4294901760
        %v939 = vsub.f32 %v436, %v938
        %v940 = vand.u32 %v939, 4294901760
        %v941 = vsub.f32 %v939, %v940
        %v942 = vand.u32 %v941, 4294901760
        %943 = vmatpush1.msra.mxu0 %v942
        %944 = vmatprep.subr.mxu0 0.0
        %v945 = vand.u32 %v437, 4294901760
        %v946 = vsub.f32 %v437, %v945
        %v947 = vand.u32 %v946, 4294901760
        %v948 = vsub.f32 %v946, %v947
        %v949 = vand.u32 %v948, 4294901760
        %950 = vmatpush1.msra.mxu0 %v949
        %951 = vmatprep.subr.mxu0 0.0
        %v952 = vand.u32 %v438, 4294901760
        %v953 = vsub.f32 %v438, %v952
        %v954 = vand.u32 %v953, 4294901760
        %v955 = vsub.f32 %v953, %v954
        %v956 = vand.u32 %v955, 4294901760
        %957 = vmatpush1.msra.mxu0 %v956
        %958 = vmatprep.subr.mxu0 0.0
        %v959 = vand.u32 %v439, 4294901760
        %v960 = vsub.f32 %v439, %v959
        %v961 = vand.u32 %v960, 4294901760
        %v962 = vsub.f32 %v960, %v961
        %v963 = vand.u32 %v962, 4294901760
        %964 = vmatpush1.msra.mxu0 %v963
        %965 = vmatprep.subr.mxu0 0.0
        %v966 = vand.u32 %v440, 4294901760
        %v967 = vsub.f32 %v440, %v966
        %v968 = vand.u32 %v967, 4294901760
        %v969 = vsub.f32 %v967, %v968
        %v970 = vand.u32 %v969, 4294901760
        %971 = vmatpush1.msra.mxu0 %v970
        %972 = vmatprep.subr.mxu0 0.0
        %v973 = vand.u32 %v441, 4294901760
        %v974 = vsub.f32 %v441, %v973
        %v975 = vand.u32 %v974, 4294901760
        %v976 = vsub.f32 %v974, %v975
        %v977 = vand.u32 %v976, 4294901760
        %978 = vmatpush1.msra.mxu0 %v977
        %979 = vmatprep.subr.mxu0 0.0
        %v980 = vand.u32 %v442, 4294901760
        %v981 = vsub.f32 %v442, %v980
        %v982 = vand.u32 %v981, 4294901760
        %v983 = vsub.f32 %v981, %v982
        %v984 = vand.u32 %v983, 4294901760
        %985 = vmatpush1.msra.mxu0 %v984
        %986 = vmatprep.subr.mxu0 0.0
        %v987 = vand.u32 %v443, 4294901760
        %v988 = vsub.f32 %v443, %v987
        %v989 = vand.u32 %v988, 4294901760
        %v990 = vsub.f32 %v988, %v989
        %v991 = vand.u32 %v990, 4294901760
        %992 = vmatpush1.msra.mxu0 %v991
        %993 = vmatprep.subr.mxu0 0.0
        %v994 = vand.u32 %v444, 4294901760
        %v995 = vsub.f32 %v444, %v994
        %v996 = vand.u32 %v995, 4294901760
        %v997 = vsub.f32 %v995, %v996
        %v998 = vand.u32 %v997, 4294901760
        %999 = vmatpush1.msra.mxu0 %v998
        %1000 = vmatprep.subr.mxu0 0.0
        %v1001 = vand.u32 %v445, 4294901760
        %v1002 = vsub.f32 %v445, %v1001
        %v1003 = vand.u32 %v1002, 4294901760
        %v1004 = vsub.f32 %v1002, %v1003
        %v1005 = vand.u32 %v1004, 4294901760
        %1006 = vmatpush1.msra.mxu0 %v1005
        %v1007 = vand.u32 %v383, 4294901760
        %1008 = vmatprep.mubr.f32.mxu0 %v1007
        %v1009 = vand.u32 %v382, 4294901760
        %1010 = vmatmul.mubr.f32.gmra.mrb[0].mxu0 %v1009
        %v1011 = vpop.f32.mrb[0].mxu0
        %v1012 = vadd.f32 %v555, %v1011
        %v1013 = vpop.f32.mrb[0].mxu0
        %v1014 = vand.u32 %v385, 4294901760
        %1015 = vmatprep.mubr.f32.mxu0 %v1014
        %v1016 = vand.u32 %v384, 4294901760
        %1017 = vmatmul.mubr.f32.gmra.mrb[0].mxu0 %v1016
        %v1018 = vpop.f32.mrb[0].mxu0
        %v1019 = vadd.f32 %v570, %v1018
        %v1020 = vpop.f32.mrb[0].mxu0
        %v1021 = vand.u32 %v387, 4294901760
        %1022 = vmatprep.mubr.f32.mxu0 %v1021
        %v1023 = vand.u32 %v386, 4294901760
        %1024 = vmatmul.mubr.f32.gmra.mrb[0].mxu0 %v1023
        %v1025 = vpop.f32.mrb[0].mxu0
        %v1026 = vadd.f32 %v585, %v1025
        %v1027 = vpop.f32.mrb[0].mxu0
        %v1028 = vand.u32 %v389, 4294901760
        %1029 = vmatprep.mubr.f32.mxu0 %v1028
        %v1030 = vand.u32 %v388, 4294901760
        %1031 = vmatmul.mubr.f32.gmra.mrb[0].mxu0 %v1030
        %v1032 = vpop.f32.mrb[0].mxu0
        %v1033 = vadd.f32 %v600, %v1032
        %v1034 = vpop.f32.mrb[0].mxu0
        %v1035 = vand.u32 %v391, 4294901760
        %1036 = vmatprep.mubr.f32.mxu0 %v1035
        %v1037 = vand.u32 %v390, 4294901760
        %1038 = vmatmul.mubr.f32.gmra.mrb[0].mxu0 %v1037
        %v1039 = vpop.f32.mrb[0].mxu0
        %v1040 = vadd.f32 %v615, %v1039
        %v1041 = vpop.f32.mrb[0].mxu0
        %v1042 = vand.u32 %v393, 4294901760
        %1043 = vmatprep.mubr.f32.mxu0 %v1042
        %v1044 = vand.u32 %v392, 4294901760
        %1045 = vmatmul.mubr.f32.gmra.mrb[0].mxu0 %v1044
        %v1046 = vpop.f32.mrb[0].mxu0
        %v1047 = vadd.f32 %v630, %v1046
        %v1048 = vpop.f32.mrb[0].mxu0
        %v1049 = vand.u32 %v395, 4294901760
        %1050 = vmatprep.mubr.f32.mxu0 %v1049
        %v1051 = vand.u32 %v394, 4294901760
        %1052 = vmatmul.mubr.f32.gmra.mrb[0].mxu0 %v1051
        %v1053 = vpop.f32.mrb[0].mxu0
        %v1054 = vadd.f32 %v645, %v1053
        %v1055 = vpop.f32.mrb[0].mxu0
        %v1056 = vand.u32 %v397, 4294901760
        %1057 = vmatprep.mubr.f32.mxu0 %v1056
        %v1058 = vand.u32 %v396, 4294901760
        %1059 = vmatmul.mubr.f32.gmra.mrb[0].mxu0 %v1058
        %v1060 = vpop.f32.mrb[0].mxu0
        %v1061 = vadd.f32 %v660, %v1060
        %v1062 = vpop.f32.mrb[0].mxu0
        %v1063 = vand.u32 %v399, 4294901760
        %1064 = vmatprep.mubr.f32.mxu0 %v1063
        %v1065 = vand.u32 %v398, 4294901760
        %1066 = vmatmul.mubr.f32.gmra.mrb[0].mxu0 %v1065
        %v1067 = vpop.f32.mrb[0].mxu0
        %v1068 = vadd.f32 %v675, %v1067
        %v1069 = vpop.f32.mrb[0].mxu0
        %v1070 = vand.u32 %v401, 4294901760
        %1071 = vmatprep.mubr.f32.mxu0 %v1070
        %v1072 = vand.u32 %v400, 4294901760
        %1073 = vmatmul.mubr.f32.gmra.mrb[0].mxu0 %v1072
        %v1074 = vpop.f32.mrb[0].mxu0
        %v1075 = vadd.f32 %v690, %v1074
        %v1076 = vpop.f32.mrb[0].mxu0
        %v1077 = vand.u32 %v403, 4294901760
        %1078 = vmatprep.mubr.f32.mxu0 %v1077
        %v1079 = vand.u32 %v402, 4294901760
        %1080 = vmatmul.mubr.f32.gmra.mrb[0].mxu0 %v1079
        %v1081 = vpop.f32.mrb[0].mxu0
        %v1082 = vadd.f32 %v705, %v1081
        %v1083 = vpop.f32.mrb[0].mxu0
        %v1084 = vand.u32 %v405, 4294901760
        %1085 = vmatprep.mubr.f32.mxu0 %v1084
        %v1086 = vand.u32 %v404, 4294901760
        %1087 = vmatmul.mubr.f32.gmra.mrb[0].mxu0 %v1086
        %v1088 = vpop.f32.mrb[0].mxu0
        %v1089 = vadd.f32 %v720, %v1088
        %v1090 = vpop.f32.mrb[0].mxu0
        %v1091 = vand.u32 %v407, 4294901760
        %1092 = vmatprep.mubr.f32.mxu0 %v1091
        %v1093 = vand.u32 %v406, 4294901760
        %1094 = vmatmul.mubr.f32.gmra.mrb[0].mxu0 %v1093
        %v1095 = vpop.f32.mrb[0].mxu0
        %v1096 = vadd.f32 %v735, %v1095
        %v1097 = vpop.f32.mrb[0].mxu0
        %v1098 = vand.u32 %v409, 4294901760
        %1099 = vmatprep.mubr.f32.mxu0 %v1098
        %v1100 = vand.u32 %v408, 4294901760
        %1101 = vmatmul.mubr.f32.gmra.mrb[0].mxu0 %v1100
        %v1102 = vpop.f32.mrb[0].mxu0
        %v1103 = vadd.f32 %v750, %v1102
        %v1104 = vpop.f32.mrb[0].mxu0
        %v1105 = vand.u32 %v411, 4294901760
        %1106 = vmatprep.mubr.f32.mxu0 %v1105
        %v1107 = vand.u32 %v410, 4294901760
        %1108 = vmatmul.mubr.f32.gmra.mrb[0].mxu0 %v1107
        %v1109 = vpop.f32.mrb[0].mxu0
        %v1110 = vadd.f32 %v765, %v1109
        %v1111 = vpop.f32.mrb[0].mxu0
        %v1112 = vand.u32 %v413, 4294901760
        %1113 = vmatprep.mubr.f32.mxu0 %v1112
        %v1114 = vand.u32 %v412, 4294901760
        %1115 = vmatmul.mubr.f32.gmra.mrb[0].mxu0 %v1114
        %v1116 = vpop.f32.mrb[0].mxu0
        %v1117 = vadd.f32 %v780, %v1116
        %v1118 = vpop.f32.mrb[0].mxu0
        %1119 = vdwg.mxu0
        %1120 = vmatprep.subr.mxu0 0.0
        %v1121 = vand.u32 %v414, 4294901760
        %v1122 = vsub.f32 %v414, %v1121
        %1123 = vmatpush1.msra.mxu0 %v1122
        %1124 = vmatprep.subr.mxu0 0.0
        %v1125 = vand.u32 %v415, 4294901760
        %v1126 = vsub.f32 %v415, %v1125
        %1127 = vmatpush1.msra.mxu0 %v1126
        %1128 = vmatprep.subr.mxu0 0.0
        %v1129 = vand.u32 %v416, 4294901760
        %v1130 = vsub.f32 %v416, %v1129
        %1131 = vmatpush1.msra.mxu0 %v1130
        %1132 = vmatprep.subr.mxu0 0.0
        %v1133 = vand.u32 %v417, 4294901760
        %v1134 = vsub.f32 %v417, %v1133
        %1135 = vmatpush1.msra.mxu0 %v1134
        %1136 = vmatprep.subr.mxu0 0.0
        %v1137 = vand.u32 %v418, 4294901760
        %v1138 = vsub.f32 %v418, %v1137
        %1139 = vmatpush1.msra.mxu0 %v1138
        %1140 = vmatprep.subr.mxu0 0.0
        %v1141 = vand.u32 %v419, 4294901760
        %v1142 = vsub.f32 %v419, %v1141
        %1143 = vmatpush1.msra.mxu0 %v1142
        %1144 = vmatprep.subr.mxu0 0.0
        %v1145 = vand.u32 %v420, 4294901760
        %v1146 = vsub.f32 %v420, %v1145
        %1147 = vmatpush1.msra.mxu0 %v1146
        %1148 = vmatprep.subr.mxu0 0.0
        %v1149 = vand.u32 %v421, 4294901760
        %v1150 = vsub.f32 %v421, %v1149
        %1151 = vmatpush1.msra.mxu0 %v1150
        %1152 = vmatprep.subr.mxu0 0.0
        %v1153 = vand.u32 %v422, 4294901760
        %v1154 = vsub.f32 %v422, %v1153
        %1155 = vmatpush1.msra.mxu0 %v1154
        %1156 = vmatprep.subr.mxu0 0.0
        %v1157 = vand.u32 %v423, 4294901760
        %v1158 = vsub.f32 %v423, %v1157
        %1159 = vmatpush1.msra.mxu0 %v1158
        %1160 = vmatprep.subr.mxu0 0.0
        %v1161 = vand.u32 %v424, 4294901760
        %v1162 = vsub.f32 %v424, %v1161
        %1163 = vmatpush1.msra.mxu0 %v1162
        %1164 = vmatprep.subr.mxu0 0.0
        %v1165 = vand.u32 %v425, 4294901760
        %v1166 = vsub.f32 %v425, %v1165
        %1167 = vmatpush1.msra.mxu0 %v1166
        %1168 = vmatprep.subr.mxu0 0.0
        %v1169 = vand.u32 %v426, 4294901760
        %v1170 = vsub.f32 %v426, %v1169
        %1171 = vmatpush1.msra.mxu0 %v1170
        %1172 = vmatprep.subr.mxu0 0.0
        %v1173 = vand.u32 %v427, 4294901760
        %v1174 = vsub.f32 %v427, %v1173
        %1175 = vmatpush1.msra.mxu0 %v1174
        %1176 = vmatprep.subr.mxu0 0.0
        %v1177 = vand.u32 %v428, 4294901760
        %v1178 = vsub.f32 %v428, %v1177
        %1179 = vmatpush1.msra.mxu0 %v1178
        %1180 = vmatprep.subr.mxu0 0.0
        %v1181 = vand.u32 %v429, 4294901760
        %v1182 = vsub.f32 %v429, %v1181
        %1183 = vmatpush1.msra.mxu0 %v1182
        %1184 = vmatprep.subr.mxu0 0.0
        %v1185 = vand.u32 %v430, 4294901760
        %v1186 = vsub.f32 %v430, %v1185
        %1187 = vmatpush1.msra.mxu0 %v1186
        %1188 = vmatprep.subr.mxu0 0.0
        %v1189 = vand.u32 %v431, 4294901760
        %v1190 = vsub.f32 %v431, %v1189
        %1191 = vmatpush1.msra.mxu0 %v1190
        %1192 = vmatprep.subr.mxu0 0.0
        %v1193 = vand.u32 %v432, 4294901760
        %v1194 = vsub.f32 %v432, %v1193
        %1195 = vmatpush1.msra.mxu0 %v1194
        %1196 = vmatprep.subr.mxu0 0.0
        %v1197 = vand.u32 %v433, 4294901760
        %v1198 = vsub.f32 %v433, %v1197
        %1199 = vmatpush1.msra.mxu0 %v1198
        %1200 = vmatprep.subr.mxu0 0.0
        %v1201 = vand.u32 %v434, 4294901760
        %v1202 = vsub.f32 %v434, %v1201
        %1203 = vmatpush1.msra.mxu0 %v1202
        %1204 = vmatprep.subr.mxu0 0.0
        %v1205 = vand.u32 %v435, 4294901760
        %v1206 = vsub.f32 %v435, %v1205
        %1207 = vmatpush1.msra.mxu0 %v1206
        %1208 = vmatprep.subr.mxu0 0.0
        %v1209 = vand.u32 %v436, 4294901760
        %v1210 = vsub.f32 %v436, %v1209
        %1211 = vmatpush1.msra.mxu0 %v1210
        %1212 = vmatprep.subr.mxu0 0.0
        %v1213 = vand.u32 %v437, 4294901760
        %v1214 = vsub.f32 %v437, %v1213
        %1215 = vmatpush1.msra.mxu0 %v1214
        %1216 = vmatprep.subr.mxu0 0.0
        %v1217 = vand.u32 %v438, 4294901760
        %v1218 = vsub.f32 %v438, %v1217
        %1219 = vmatpush1.msra.mxu0 %v1218
        %1220 = vmatprep.subr.mxu0 0.0
        %v1221 = vand.u32 %v439, 4294901760
        %v1222 = vsub.f32 %v439, %v1221
        %1223 = vmatpush1.msra.mxu0 %v1222
        %1224 = vmatprep.subr.mxu0 0.0
        %v1225 = vand.u32 %v440, 4294901760
        %v1226 = vsub.f32 %v440, %v1225
        %1227 = vmatpush1.msra.mxu0 %v1226
        %1228 = vmatprep.subr.mxu0 0.0
        %v1229 = vand.u32 %v441, 4294901760
        %v1230 = vsub.f32 %v441, %v1229
        %1231 = vmatpush1.msra.mxu0 %v1230
        %1232 = vmatprep.subr.mxu0 0.0
        %v1233 = vand.u32 %v442, 4294901760
        %v1234 = vsub.f32 %v442, %v1233
        %1235 = vmatpush1.msra.mxu0 %v1234
        %1236 = vmatprep.subr.mxu0 0.0
        %v1237 = vand.u32 %v443, 4294901760
        %v1238 = vsub.f32 %v443, %v1237
        %1239 = vmatpush1.msra.mxu0 %v1238
        %1240 = vmatprep.subr.mxu0 0.0
        %v1241 = vand.u32 %v444, 4294901760
        %v1242 = vsub.f32 %v444, %v1241
        %1243 = vmatpush1.msra.mxu0 %v1242
        %1244 = vmatprep.subr.mxu0 0.0
        %v1245 = vand.u32 %v445, 4294901760
        %v1246 = vsub.f32 %v445, %v1245
        %1247 = vmatpush1.msra.mxu0 %v1246
        %v1248 = vand.u32 %v383, 4294901760
        %v1249 = vsub.f32 %v383, %v1248
        %1250 = vmatprep.mubr.f32.mxu0 %v1249
        %v1251 = vand.u32 %v382, 4294901760
        %v1252 = vsub.f32 %v382, %v1251
        %1253 = vmatmul.mubr.f32.gmra.mrb[0].mxu0 %v1252
        %v1254 = vpop.f32.mrb[0].mxu0
        %v1255 = vadd.f32 %v1012, %v1254
        %v1256 = vpop.f32.mrb[0].mxu0
        %v1257 = vand.u32 %v385, 4294901760
        %v1258 = vsub.f32 %v385, %v1257
        %1259 = vmatprep.mubr.f32.mxu0 %v1258
        %v1260 = vand.u32 %v384, 4294901760
        %v1261 = vsub.f32 %v384, %v1260
        %1262 = vmatmul.mubr.f32.gmra.mrb[0].mxu0 %v1261
        %v1263 = vpop.f32.mrb[0].mxu0
        %v1264 = vadd.f32 %v1019, %v1263
        %v1265 = vpop.f32.mrb[0].mxu0
        %v1266 = vand.u32 %v387, 4294901760
        %v1267 = vsub.f32 %v387, %v1266
        %1268 = vmatprep.mubr.f32.mxu0 %v1267
        %v1269 = vand.u32 %v386, 4294901760
        %v1270 = vsub.f32 %v386, %v1269
        %1271 = vmatmul.mubr.f32.gmra.mrb[0].mxu0 %v1270
        %v1272 = vpop.f32.mrb[0].mxu0
        %v1273 = vadd.f32 %v1026, %v1272
        %v1274 = vpop.f32.mrb[0].mxu0
        %v1275 = vand.u32 %v389, 4294901760
        %v1276 = vsub.f32 %v389, %v1275
        %1277 = vmatprep.mubr.f32.mxu0 %v1276
        %v1278 = vand.u32 %v388, 4294901760
        %v1279 = vsub.f32 %v388, %v1278
        %1280 = vmatmul.mubr.f32.gmra.mrb[0].mxu0 %v1279
        %v1281 = vpop.f32.mrb[0].mxu0
        %v1282 = vadd.f32 %v1033, %v1281
        %v1283 = vpop.f32.mrb[0].mxu0
        %v1284 = vand.u32 %v391, 4294901760
        %v1285 = vsub.f32 %v391, %v1284
        %1286 = vmatprep.mubr.f32.mxu0 %v1285
        %v1287 = vand.u32 %v390, 4294901760
        %v1288 = vsub.f32 %v390, %v1287
        %1289 = vmatmul.mubr.f32.gmra.mrb[0].mxu0 %v1288
        %v1290 = vpop.f32.mrb[0].mxu0
        %v1291 = vadd.f32 %v1040, %v1290
        %v1292 = vpop.f32.mrb[0].mxu0
        %v1293 = vand.u32 %v393, 4294901760
        %v1294 = vsub.f32 %v393, %v1293
        %1295 = vmatprep.mubr.f32.mxu0 %v1294
        %v1296 = vand.u32 %v392, 4294901760
        %v1297 = vsub.f32 %v392, %v1296
        %1298 = vmatmul.mubr.f32.gmra.mrb[0].mxu0 %v1297
        %v1299 = vpop.f32.mrb[0].mxu0
        %v1300 = vadd.f32 %v1047, %v1299
        %v1301 = vpop.f32.mrb[0].mxu0
        %v1302 = vand.u32 %v395, 4294901760
        %v1303 = vsub.f32 %v395, %v1302
        %1304 = vmatprep.mubr.f32.mxu0 %v1303
        %v1305 = vand.u32 %v394, 4294901760
        %v1306 = vsub.f32 %v394, %v1305
        %1307 = vmatmul.mubr.f32.gmra.mrb[0].mxu0 %v1306
        %v1308 = vpop.f32.mrb[0].mxu0
        %v1309 = vadd.f32 %v1054, %v1308
        %v1310 = vpop.f32.mrb[0].mxu0
        %v1311 = vand.u32 %v397, 4294901760
        %v1312 = vsub.f32 %v397, %v1311
        %1313 = vmatprep.mubr.f32.mxu0 %v1312
        %v1314 = vand.u32 %v396, 4294901760
        %v1315 = vsub.f32 %v396, %v1314
        %1316 = vmatmul.mubr.f32.gmra.mrb[0].mxu0 %v1315
        %v1317 = vpop.f32.mrb[0].mxu0
        %v1318 = vadd.f32 %v1061, %v1317
        %v1319 = vpop.f32.mrb[0].mxu0
        %v1320 = vand.u32 %v399, 4294901760
        %v1321 = vsub.f32 %v399, %v1320
        %1322 = vmatprep.mubr.f32.mxu0 %v1321
        %v1323 = vand.u32 %v398, 4294901760
        %v1324 = vsub.f32 %v398, %v1323
        %1325 = vmatmul.mubr.f32.gmra.mrb[0].mxu0 %v1324
        %v1326 = vpop.f32.mrb[0].mxu0
        %v1327 = vadd.f32 %v1068, %v1326
        %v1328 = vpop.f32.mrb[0].mxu0
        %v1329 = vand.u32 %v401, 4294901760
        %v1330 = vsub.f32 %v401, %v1329
        %1331 = vmatprep.mubr.f32.mxu0 %v1330
        %v1332 = vand.u32 %v400, 4294901760
        %v1333 = vsub.f32 %v400, %v1332
        %1334 = vmatmul.mubr.f32.gmra.mrb[0].mxu0 %v1333
        %v1335 = vpop.f32.mrb[0].mxu0
        %v1336 = vadd.f32 %v1075, %v1335
        %v1337 = vpop.f32.mrb[0].mxu0
        %v1338 = vand.u32 %v403, 4294901760
        %v1339 = vsub.f32 %v403, %v1338
        %1340 = vmatprep.mubr.f32.mxu0 %v1339
        %v1341 = vand.u32 %v402, 4294901760
        %v1342 = vsub.f32 %v402, %v1341
        %1343 = vmatmul.mubr.f32.gmra.mrb[0].mxu0 %v1342
        %v1344 = vpop.f32.mrb[0].mxu0
        %v1345 = vadd.f32 %v1082, %v1344
        %v1346 = vpop.f32.mrb[0].mxu0
        %v1347 = vand.u32 %v405, 4294901760
        %v1348 = vsub.f32 %v405, %v1347
        %1349 = vmatprep.mubr.f32.mxu0 %v1348
        %v1350 = vand.u32 %v404, 4294901760
        %v1351 = vsub.f32 %v404, %v1350
        %1352 = vmatmul.mubr.f32.gmra.mrb[0].mxu0 %v1351
        %v1353 = vpop.f32.mrb[0].mxu0
        %v1354 = vadd.f32 %v1089, %v1353
        %v1355 = vpop.f32.mrb[0].mxu0
        %v1356 = vand.u32 %v407, 4294901760
        %v1357 = vsub.f32 %v407, %v1356
        %1358 = vmatprep.mubr.f32.mxu0 %v1357
        %v1359 = vand.u32 %v406, 4294901760
        %v1360 = vsub.f32 %v406, %v1359
        %1361 = vmatmul.mubr.f32.gmra.mrb[0].mxu0 %v1360
        %v1362 = vpop.f32.mrb[0].mxu0
        %v1363 = vadd.f32 %v1096, %v1362
        %v1364 = vpop.f32.mrb[0].mxu0
        %v1365 = vand.u32 %v409, 4294901760
        %v1366 = vsub.f32 %v409, %v1365
        %1367 = vmatprep.mubr.f32.mxu0 %v1366
        %v1368 = vand.u32 %v408, 4294901760
        %v1369 = vsub.f32 %v408, %v1368
        %1370 = vmatmul.mubr.f32.gmra.mrb[0].mxu0 %v1369
        %v1371 = vpop.f32.mrb[0].mxu0
        %v1372 = vadd.f32 %v1103, %v1371
        %v1373 = vpop.f32.mrb[0].mxu0
        %v1374 = vand.u32 %v411, 4294901760
        %v1375 = vsub.f32 %v411, %v1374
        %1376 = vmatprep.mubr.f32.mxu0 %v1375
        %v1377 = vand.u32 %v410, 4294901760
        %v1378 = vsub.f32 %v410, %v1377
        %1379 = vmatmul.mubr.f32.gmra.mrb[0].mxu0 %v1378
        %v1380 = vpop.f32.mrb[0].mxu0
        %v1381 = vadd.f32 %v1110, %v1380
        %v1382 = vpop.f32.mrb[0].mxu0
        %v1383 = vand.u32 %v413, 4294901760
        %v1384 = vsub.f32 %v413, %v1383
        %1385 = vmatprep.mubr.f32.mxu0 %v1384
        %v1386 = vand.u32 %v412, 4294901760
        %v1387 = vsub.f32 %v412, %v1386
        %1388 = vmatmul.mubr.f32.gmra.mrb[0].mxu0 %v1387
        %v1389 = vpop.f32.mrb[0].mxu0
        %v1390 = vadd.f32 %v1117, %v1389
        %v1391 = vpop.f32.mrb[0].mxu0
        %1392 = vdwg.mxu0
        %1393 = vmatprep.subr.mxu0 0.0
        %v1394 = vand.u32 %v414, 4294901760
        %1395 = vmatpush1.msra.mxu0 %v1394
        %1396 = vmatprep.subr.mxu0 0.0
        %v1397 = vand.u32 %v415, 4294901760
        %1398 = vmatpush1.msra.mxu0 %v1397
        %1399 = vmatprep.subr.mxu0 0.0
        %v1400 = vand.u32 %v416, 4294901760
        %1401 = vmatpush1.msra.mxu0 %v1400
        %1402 = vmatprep.subr.mxu0 0.0
        %v1403 = vand.u32 %v417, 4294901760
        %1404 = vmatpush1.msra.mxu0 %v1403
        %1405 = vmatprep.subr.mxu0 0.0
        %v1406 = vand.u32 %v418, 4294901760
        %1407 = vmatpush1.msra.mxu0 %v1406
        %1408 = vmatprep.subr.mxu0 0.0
        %v1409 = vand.u32 %v419, 4294901760
        %1410 = vmatpush1.msra.mxu0 %v1409
        %1411 = vmatprep.subr.mxu0 0.0
        %v1412 = vand.u32 %v420, 4294901760
        %1413 = vmatpush1.msra.mxu0 %v1412
        %1414 = vmatprep.subr.mxu0 0.0
        %v1415 = vand.u32 %v421, 4294901760
        %1416 = vmatpush1.msra.mxu0 %v1415
        %1417 = vmatprep.subr.mxu0 0.0
        %v1418 = vand.u32 %v422, 4294901760
        %1419 = vmatpush1.msra.mxu0 %v1418
        %1420 = vmatprep.subr.mxu0 0.0
        %v1421 = vand.u32 %v423, 4294901760
        %1422 = vmatpush1.msra.mxu0 %v1421
        %1423 = vmatprep.subr.mxu0 0.0
        %v1424 = vand.u32 %v424, 4294901760
        %1425 = vmatpush1.msra.mxu0 %v1424
        %1426 = vmatprep.subr.mxu0 0.0
        %v1427 = vand.u32 %v425, 4294901760
        %1428 = vmatpush1.msra.mxu0 %v1427
        %1429 = vmatprep.subr.mxu0 0.0
        %v1430 = vand.u32 %v426, 4294901760
        %1431 = vmatpush1.msra.mxu0 %v1430
        %1432 = vmatprep.subr.mxu0 0.0
        %v1433 = vand.u32 %v427, 4294901760
        %1434 = vmatpush1.msra.mxu0 %v1433
        %1435 = vmatprep.subr.mxu0 0.0
        %v1436 = vand.u32 %v428, 4294901760
        %1437 = vmatpush1.msra.mxu0 %v1436
        %1438 = vmatprep.subr.mxu0 0.0
        %v1439 = vand.u32 %v429, 4294901760
        %1440 = vmatpush1.msra.mxu0 %v1439
        %1441 = vmatprep.subr.mxu0 0.0
        %v1442 = vand.u32 %v430, 4294901760
        %1443 = vmatpush1.msra.mxu0 %v1442
        %1444 = vmatprep.subr.mxu0 0.0
        %v1445 = vand.u32 %v431, 4294901760
        %1446 = vmatpush1.msra.mxu0 %v1445
        %1447 = vmatprep.subr.mxu0 0.0
        %v1448 = vand.u32 %v432, 4294901760
        %1449 = vmatpush1.msra.mxu0 %v1448
        %1450 = vmatprep.subr.mxu0 0.0
        %v1451 = vand.u32 %v433, 4294901760
        %1452 = vmatpush1.msra.mxu0 %v1451
        %1453 = vmatprep.subr.mxu0 0.0
        %v1454 = vand.u32 %v434, 4294901760
        %1455 = vmatpush1.msra.mxu0 %v1454
        %1456 = vmatprep.subr.mxu0 0.0
        %v1457 = vand.u32 %v435, 4294901760
        %1458 = vmatpush1.msra.mxu0 %v1457
        %1459 = vmatprep.subr.mxu0 0.0
        %v1460 = vand.u32 %v436, 4294901760
        %1461 = vmatpush1.msra.mxu0 %v1460
        %1462 = vmatprep.subr.mxu0 0.0
        %v1463 = vand.u32 %v437, 4294901760
        %1464 = vmatpush1.msra.mxu0 %v1463
        %1465 = vmatprep.subr.mxu0 0.0
        %v1466 = vand.u32 %v438, 4294901760
        %1467 = vmatpush1.msra.mxu0 %v1466
        %1468 = vmatprep.subr.mxu0 0.0
        %v1469 = vand.u32 %v439, 4294901760
        %1470 = vmatpush1.msra.mxu0 %v1469
        %1471 = vmatprep.subr.mxu0 0.0
        %v1472 = vand.u32 %v440, 4294901760
        %1473 = vmatpush1.msra.mxu0 %v1472
        %1474 = vmatprep.subr.mxu0 0.0
        %v1475 = vand.u32 %v441, 4294901760
        %1476 = vmatpush1.msra.mxu0 %v1475
        %1477 = vmatprep.subr.mxu0 0.0
        %v1478 = vand.u32 %v442, 4294901760
        %1479 = vmatpush1.msra.mxu0 %v1478
        %1480 = vmatprep.subr.mxu0 0.0
        %v1481 = vand.u32 %v443, 4294901760
        %1482 = vmatpush1.msra.mxu0 %v1481
        %1483 = vmatprep.subr.mxu0 0.0
        %v1484 = vand.u32 %v444, 4294901760
        %1485 = vmatpush1.msra.mxu0 %v1484
        %1486 = vmatprep.subr.mxu0 0.0
        %v1487 = vand.u32 %v445, 4294901760
        %1488 = vmatpush1.msra.mxu0 %v1487
        %v1489 = vand.u32 %v383, 4294901760
        %v1490 = vsub.f32 %v383, %v1489
        %v1491 = vand.u32 %v1490, 4294901760
        %1492 = vmatprep.mubr.f32.mxu0 %v1491
        %v1493 = vand.u32 %v382, 4294901760
        %v1494 = vsub.f32 %v382, %v1493
        %v1495 = vand.u32 %v1494, 4294901760
        %1496 = vmatmul.mubr.f32.gmra.mrb[0].mxu0 %v1495
        %v1497 = vpop.f32.mrb[0].mxu0
        %v1498 = vadd.f32 %v1255, %v1497
        %v1499 = vpop.f32.mrb[0].mxu0
        %v1500 = vand.u32 %v385, 4294901760
        %v1501 = vsub.f32 %v385, %v1500
        %v1502 = vand.u32 %v1501, 4294901760
        %1503 = vmatprep.mubr.f32.mxu0 %v1502
        %v1504 = vand.u32 %v384, 4294901760
        %v1505 = vsub.f32 %v384, %v1504
        %v1506 = vand.u32 %v1505, 4294901760
        %1507 = vmatmul.mubr.f32.gmra.mrb[0].mxu0 %v1506
        %v1508 = vpop.f32.mrb[0].mxu0
        %v1509 = vadd.f32 %v1264, %v1508
        %v1510 = vpop.f32.mrb[0].mxu0
        %v1511 = vand.u32 %v387, 4294901760
        %v1512 = vsub.f32 %v387, %v1511
        %v1513 = vand.u32 %v1512, 4294901760
        %1514 = vmatprep.mubr.f32.mxu0 %v1513
        %v1515 = vand.u32 %v386, 4294901760
        %v1516 = vsub.f32 %v386, %v1515
        %v1517 = vand.u32 %v1516, 4294901760
        %1518 = vmatmul.mubr.f32.gmra.mrb[0].mxu0 %v1517
        %v1519 = vpop.f32.mrb[0].mxu0
        %v1520 = vadd.f32 %v1273, %v1519
        %v1521 = vpop.f32.mrb[0].mxu0
        %v1522 = vand.u32 %v389, 4294901760
        %v1523 = vsub.f32 %v389, %v1522
        %v1524 = vand.u32 %v1523, 4294901760
        %1525 = vmatprep.mubr.f32.mxu0 %v1524
        %v1526 = vand.u32 %v388, 4294901760
        %v1527 = vsub.f32 %v388, %v1526
        %v1528 = vand.u32 %v1527, 4294901760
        %1529 = vmatmul.mubr.f32.gmra.mrb[0].mxu0 %v1528
        %v1530 = vpop.f32.mrb[0].mxu0
        %v1531 = vadd.f32 %v1282, %v1530
        %v1532 = vpop.f32.mrb[0].mxu0
        %v1533 = vand.u32 %v391, 4294901760
        %v1534 = vsub.f32 %v391, %v1533
        %v1535 = vand.u32 %v1534, 4294901760
        %1536 = vmatprep.mubr.f32.mxu0 %v1535
        %v1537 = vand.u32 %v390, 4294901760
        %v1538 = vsub.f32 %v390, %v1537
        %v1539 = vand.u32 %v1538, 4294901760
        %1540 = vmatmul.mubr.f32.gmra.mrb[0].mxu0 %v1539
        %v1541 = vpop.f32.mrb[0].mxu0
        %v1542 = vadd.f32 %v1291, %v1541
        %v1543 = vpop.f32.mrb[0].mxu0
        %v1544 = vand.u32 %v393, 4294901760
        %v1545 = vsub.f32 %v393, %v1544
        %v1546 = vand.u32 %v1545, 4294901760
        %1547 = vmatprep.mubr.f32.mxu0 %v1546
        %v1548 = vand.u32 %v392, 4294901760
        %v1549 = vsub.f32 %v392, %v1548
        %v1550 = vand.u32 %v1549, 4294901760
        %1551 = vmatmul.mubr.f32.gmra.mrb[0].mxu0 %v1550
        %v1552 = vpop.f32.mrb[0].mxu0
        %v1553 = vadd.f32 %v1300, %v1552
        %v1554 = vpop.f32.mrb[0].mxu0
        %v1555 = vand.u32 %v395, 4294901760
        %v1556 = vsub.f32 %v395, %v1555
        %v1557 = vand.u32 %v1556, 4294901760
        %1558 = vmatprep.mubr.f32.mxu0 %v1557
        %v1559 = vand.u32 %v394, 4294901760
        %v1560 = vsub.f32 %v394, %v1559
        %v1561 = vand.u32 %v1560, 4294901760
        %1562 = vmatmul.mubr.f32.gmra.mrb[0].mxu0 %v1561
        %v1563 = vpop.f32.mrb[0].mxu0
        %v1564 = vadd.f32 %v1309, %v1563
        %v1565 = vpop.f32.mrb[0].mxu0
        %v1566 = vand.u32 %v397, 4294901760
        %v1567 = vsub.f32 %v397, %v1566
        %v1568 = vand.u32 %v1567, 4294901760
        %1569 = vmatprep.mubr.f32.mxu0 %v1568
        %v1570 = vand.u32 %v396, 4294901760
        %v1571 = vsub.f32 %v396, %v1570
        %v1572 = vand.u32 %v1571, 4294901760
        %1573 = vmatmul.mubr.f32.gmra.mrb[0].mxu0 %v1572
        %v1574 = vpop.f32.mrb[0].mxu0
        %v1575 = vadd.f32 %v1318, %v1574
        %v1576 = vpop.f32.mrb[0].mxu0
        %v1577 = vand.u32 %v399, 4294901760
        %v1578 = vsub.f32 %v399, %v1577
        %v1579 = vand.u32 %v1578, 4294901760
        %1580 = vmatprep.mubr.f32.mxu0 %v1579
        %v1581 = vand.u32 %v398, 4294901760
        %v1582 = vsub.f32 %v398, %v1581
        %v1583 = vand.u32 %v1582, 4294901760
        %1584 = vmatmul.mubr.f32.gmra.mrb[0].mxu0 %v1583
        %v1585 = vpop.f32.mrb[0].mxu0
        %v1586 = vadd.f32 %v1327, %v1585
        %v1587 = vpop.f32.mrb[0].mxu0
        %v1588 = vand.u32 %v401, 4294901760
        %v1589 = vsub.f32 %v401, %v1588
        %v1590 = vand.u32 %v1589, 4294901760
        %1591 = vmatprep.mubr.f32.mxu0 %v1590
        %v1592 = vand.u32 %v400, 4294901760
        %v1593 = vsub.f32 %v400, %v1592
        %v1594 = vand.u32 %v1593, 4294901760
        %1595 = vmatmul.mubr.f32.gmra.mrb[0].mxu0 %v1594
        %v1596 = vpop.f32.mrb[0].mxu0
        %v1597 = vadd.f32 %v1336, %v1596
        %v1598 = vpop.f32.mrb[0].mxu0
        %v1599 = vand.u32 %v403, 4294901760
        %v1600 = vsub.f32 %v403, %v1599
        %v1601 = vand.u32 %v1600, 4294901760
        %1602 = vmatprep.mubr.f32.mxu0 %v1601
        %v1603 = vand.u32 %v402, 4294901760
        %v1604 = vsub.f32 %v402, %v1603
        %v1605 = vand.u32 %v1604, 4294901760
        %1606 = vmatmul.mubr.f32.gmra.mrb[0].mxu0 %v1605
        %v1607 = vpop.f32.mrb[0].mxu0
        %v1608 = vadd.f32 %v1345, %v1607
        %v1609 = vpop.f32.mrb[0].mxu0
        %v1610 = vand.u32 %v405, 4294901760
        %v1611 = vsub.f32 %v405, %v1610
        %v1612 = vand.u32 %v1611, 4294901760
        %1613 = vmatprep.mubr.f32.mxu0 %v1612
        %v1614 = vand.u32 %v404, 4294901760
        %v1615 = vsub.f32 %v404, %v1614
        %v1616 = vand.u32 %v1615, 4294901760
        %1617 = vmatmul.mubr.f32.gmra.mrb[0].mxu0 %v1616
        %v1618 = vpop.f32.mrb[0].mxu0
        %v1619 = vadd.f32 %v1354, %v1618
        %v1620 = vpop.f32.mrb[0].mxu0
        %v1621 = vand.u32 %v407, 4294901760
        %v1622 = vsub.f32 %v407, %v1621
        %v1623 = vand.u32 %v1622, 4294901760
        %1624 = vmatprep.mubr.f32.mxu0 %v1623
        %v1625 = vand.u32 %v406, 4294901760
        %v1626 = vsub.f32 %v406, %v1625
        %v1627 = vand.u32 %v1626, 4294901760
        %1628 = vmatmul.mubr.f32.gmra.mrb[0].mxu0 %v1627
        %v1629 = vpop.f32.mrb[0].mxu0
        %v1630 = vadd.f32 %v1363, %v1629
        %v1631 = vpop.f32.mrb[0].mxu0
        %v1632 = vand.u32 %v409, 4294901760
        %v1633 = vsub.f32 %v409, %v1632
        %v1634 = vand.u32 %v1633, 4294901760
        %1635 = vmatprep.mubr.f32.mxu0 %v1634
        %v1636 = vand.u32 %v408, 4294901760
        %v1637 = vsub.f32 %v408, %v1636
        %v1638 = vand.u32 %v1637, 4294901760
        %1639 = vmatmul.mubr.f32.gmra.mrb[0].mxu0 %v1638
        %v1640 = vpop.f32.mrb[0].mxu0
        %v1641 = vadd.f32 %v1372, %v1640
        %v1642 = vpop.f32.mrb[0].mxu0
        %v1643 = vand.u32 %v411, 4294901760
        %v1644 = vsub.f32 %v411, %v1643
        %v1645 = vand.u32 %v1644, 4294901760
        %1646 = vmatprep.mubr.f32.mxu0 %v1645
        %v1647 = vand.u32 %v410, 4294901760
        %v1648 = vsub.f32 %v410, %v1647
        %v1649 = vand.u32 %v1648, 4294901760
        %1650 = vmatmul.mubr.f32.gmra.mrb[0].mxu0 %v1649
        %v1651 = vpop.f32.mrb[0].mxu0
        %v1652 = vadd.f32 %v1381, %v1651
        %v1653 = vpop.f32.mrb[0].mxu0
        %v1654 = vand.u32 %v413, 4294901760
        %v1655 = vsub.f32 %v413, %v1654
        %v1656 = vand.u32 %v1655, 4294901760
        %1657 = vmatprep.mubr.f32.mxu0 %v1656
        %v1658 = vand.u32 %v412, 4294901760
        %v1659 = vsub.f32 %v412, %v1658
        %v1660 = vand.u32 %v1659, 4294901760
        %1661 = vmatmul.mubr.f32.gmra.mrb[0].mxu0 %v1660
        %v1662 = vpop.f32.mrb[0].mxu0
        %v1663 = vadd.f32 %v1390, %v1662
        %v1664 = vpop.f32.mrb[0].mxu0
        %1665 = vdwg.mxu0
        %1666 = vmatprep.subr.mxu0 0.0
        %v1667 = vand.u32 %v414, 4294901760
        %v1668 = vsub.f32 %v414, %v1667
        %v1669 = vand.u32 %v1668, 4294901760
        %1670 = vmatpush1.msra.mxu0 %v1669
        %1671 = vmatprep.subr.mxu0 0.0
        %v1672 = vand.u32 %v415, 4294901760
        %v1673 = vsub.f32 %v415, %v1672
        %v1674 = vand.u32 %v1673, 4294901760
        %1675 = vmatpush1.msra.mxu0 %v1674
        %1676 = vmatprep.subr.mxu0 0.0
        %v1677 = vand.u32 %v416, 4294901760
        %v1678 = vsub.f32 %v416, %v1677
        %v1679 = vand.u32 %v1678, 4294901760
        %1680 = vmatpush1.msra.mxu0 %v1679
        %1681 = vmatprep.subr.mxu0 0.0
        %v1682 = vand.u32 %v417, 4294901760
        %v1683 = vsub.f32 %v417, %v1682
        %v1684 = vand.u32 %v1683, 4294901760
        %1685 = vmatpush1.msra.mxu0 %v1684
        %1686 = vmatprep.subr.mxu0 0.0
        %v1687 = vand.u32 %v418, 4294901760
        %v1688 = vsub.f32 %v418, %v1687
        %v1689 = vand.u32 %v1688, 4294901760
        %1690 = vmatpush1.msra.mxu0 %v1689
        %1691 = vmatprep.subr.mxu0 0.0
        %v1692 = vand.u32 %v419, 4294901760
        %v1693 = vsub.f32 %v419, %v1692
        %v1694 = vand.u32 %v1693, 4294901760
        %1695 = vmatpush1.msra.mxu0 %v1694
        %1696 = vmatprep.subr.mxu0 0.0
        %v1697 = vand.u32 %v420, 4294901760
        %v1698 = vsub.f32 %v420, %v1697
        %v1699 = vand.u32 %v1698, 4294901760
        %1700 = vmatpush1.msra.mxu0 %v1699
        %1701 = vmatprep.subr.mxu0 0.0
        %v1702 = vand.u32 %v421, 4294901760
        %v1703 = vsub.f32 %v421, %v1702
        %v1704 = vand.u32 %v1703, 4294901760
        %1705 = vmatpush1.msra.mxu0 %v1704
        %1706 = vmatprep.subr.mxu0 0.0
        %v1707 = vand.u32 %v422, 4294901760
        %v1708 = vsub.f32 %v422, %v1707
        %v1709 = vand.u32 %v1708, 4294901760
        %1710 = vmatpush1.msra.mxu0 %v1709
        %1711 = vmatprep.subr.mxu0 0.0
        %v1712 = vand.u32 %v423, 4294901760
        %v1713 = vsub.f32 %v423, %v1712
        %v1714 = vand.u32 %v1713, 4294901760
        %1715 = vmatpush1.msra.mxu0 %v1714
        %1716 = vmatprep.subr.mxu0 0.0
        %v1717 = vand.u32 %v424, 4294901760
        %v1718 = vsub.f32 %v424, %v1717
        %v1719 = vand.u32 %v1718, 4294901760
        %1720 = vmatpush1.msra.mxu0 %v1719
        %1721 = vmatprep.subr.mxu0 0.0
        %v1722 = vand.u32 %v425, 4294901760
        %v1723 = vsub.f32 %v425, %v1722
        %v1724 = vand.u32 %v1723, 4294901760
        %1725 = vmatpush1.msra.mxu0 %v1724
        %1726 = vmatprep.subr.mxu0 0.0
        %v1727 = vand.u32 %v426, 4294901760
        %v1728 = vsub.f32 %v426, %v1727
        %v1729 = vand.u32 %v1728, 4294901760
        %1730 = vmatpush1.msra.mxu0 %v1729
        %1731 = vmatprep.subr.mxu0 0.0
        %v1732 = vand.u32 %v427, 4294901760
        %v1733 = vsub.f32 %v427, %v1732
        %v1734 = vand.u32 %v1733, 4294901760
        %1735 = vmatpush1.msra.mxu0 %v1734
        %1736 = vmatprep.subr.mxu0 0.0
        %v1737 = vand.u32 %v428, 4294901760
        %v1738 = vsub.f32 %v428, %v1737
        %v1739 = vand.u32 %v1738, 4294901760
        %1740 = vmatpush1.msra.mxu0 %v1739
        %1741 = vmatprep.subr.mxu0 0.0
        %v1742 = vand.u32 %v429, 4294901760
        %v1743 = vsub.f32 %v429, %v1742
        %v1744 = vand.u32 %v1743, 4294901760
        %1745 = vmatpush1.msra.mxu0 %v1744
        %1746 = vmatprep.subr.mxu0 0.0
        %v1747 = vand.u32 %v430, 4294901760
        %v1748 = vsub.f32 %v430, %v1747
        %v1749 = vand.u32 %v1748, 4294901760
        %1750 = vmatpush1.msra.mxu0 %v1749
        %1751 = vmatprep.subr.mxu0 0.0
        %v1752 = vand.u32 %v431, 4294901760
        %v1753 = vsub.f32 %v431, %v1752
        %v1754 = vand.u32 %v1753, 4294901760
        %1755 = vmatpush1.msra.mxu0 %v1754
        %1756 = vmatprep.subr.mxu0 0.0
        %v1757 = vand.u32 %v432, 4294901760
        %v1758 = vsub.f32 %v432, %v1757
        %v1759 = vand.u32 %v1758, 4294901760
        %1760 = vmatpush1.msra.mxu0 %v1759
        %1761 = vmatprep.subr.mxu0 0.0
        %v1762 = vand.u32 %v433, 4294901760
        %v1763 = vsub.f32 %v433, %v1762
        %v1764 = vand.u32 %v1763, 4294901760
        %1765 = vmatpush1.msra.mxu0 %v1764
        %1766 = vmatprep.subr.mxu0 0.0
        %v1767 = vand.u32 %v434, 4294901760
        %v1768 = vsub.f32 %v434, %v1767
        %v1769 = vand.u32 %v1768, 4294901760
        %1770 = vmatpush1.msra.mxu0 %v1769
        %1771 = vmatprep.subr.mxu0 0.0
        %v1772 = vand.u32 %v435, 4294901760
        %v1773 = vsub.f32 %v435, %v1772
        %v1774 = vand.u32 %v1773, 4294901760
        %1775 = vmatpush1.msra.mxu0 %v1774
        %1776 = vmatprep.subr.mxu0 0.0
        %v1777 = vand.u32 %v436, 4294901760
        %v1778 = vsub.f32 %v436, %v1777
        %v1779 = vand.u32 %v1778, 4294901760
        %1780 = vmatpush1.msra.mxu0 %v1779
        %1781 = vmatprep.subr.mxu0 0.0
        %v1782 = vand.u32 %v437, 4294901760
        %v1783 = vsub.f32 %v437, %v1782
        %v1784 = vand.u32 %v1783, 4294901760
        %1785 = vmatpush1.msra.mxu0 %v1784
        %1786 = vmatprep.subr.mxu0 0.0
        %v1787 = vand.u32 %v438, 4294901760
        %v1788 = vsub.f32 %v438, %v1787
        %v1789 = vand.u32 %v1788, 4294901760
        %1790 = vmatpush1.msra.mxu0 %v1789
        %1791 = vmatprep.subr.mxu0 0.0
        %v1792 = vand.u32 %v439, 4294901760
        %v1793 = vsub.f32 %v439, %v1792
        %v1794 = vand.u32 %v1793, 4294901760
        %1795 = vmatpush1.msra.mxu0 %v1794
        %1796 = vmatprep.subr.mxu0 0.0
        %v1797 = vand.u32 %v440, 4294901760
        %v1798 = vsub.f32 %v440, %v1797
        %v1799 = vand.u32 %v1798, 4294901760
        %1800 = vmatpush1.msra.mxu0 %v1799
        %1801 = vmatprep.subr.mxu0 0.0
        %v1802 = vand.u32 %v441, 4294901760
        %v1803 = vsub.f32 %v441, %v1802
        %v1804 = vand.u32 %v1803, 4294901760
        %1805 = vmatpush1.msra.mxu0 %v1804
        %1806 = vmatprep.subr.mxu0 0.0
        %v1807 = vand.u32 %v442, 4294901760
        %v1808 = vsub.f32 %v442, %v1807
        %v1809 = vand.u32 %v1808, 4294901760
        %1810 = vmatpush1.msra.mxu0 %v1809
        %1811 = vmatprep.subr.mxu0 0.0
        %v1812 = vand.u32 %v443, 4294901760
        %v1813 = vsub.f32 %v443, %v1812
        %v1814 = vand.u32 %v1813, 4294901760
        %1815 = vmatpush1.msra.mxu0 %v1814
        %1816 = vmatprep.subr.mxu0 0.0
        %v1817 = vand.u32 %v444, 4294901760
        %v1818 = vsub.f32 %v444, %v1817
        %v1819 = vand.u32 %v1818, 4294901760
        %1820 = vmatpush1.msra.mxu0 %v1819
        %1821 = vmatprep.subr.mxu0 0.0
        %v1822 = vand.u32 %v445, 4294901760
        %v1823 = vsub.f32 %v445, %v1822
        %v1824 = vand.u32 %v1823, 4294901760
        %1825 = vmatpush1.msra.mxu0 %v1824
        %v1826 = vand.u32 %v383, 4294901760
        %1827 = vmatprep.mubr.f32.mxu0 %v1826
        %v1828 = vand.u32 %v382, 4294901760
        %1829 = vmatmul.mubr.f32.gmra.mrb[0].mxu0 %v1828
        %v1830 = vpop.f32.mrb[0].mxu0
        %v1831 = vadd.f32 %v1498, %v1830
        %v1832 = vpop.f32.mrb[0].mxu0
        %v1833 = vand.u32 %v385, 4294901760
        %1834 = vmatprep.mubr.f32.mxu0 %v1833
        %v1835 = vand.u32 %v384, 4294901760
        %1836 = vmatmul.mubr.f32.gmra.mrb[0].mxu0 %v1835
        %v1837 = vpop.f32.mrb[0].mxu0
        %v1838 = vadd.f32 %v1509, %v1837
        %v1839 = vpop.f32.mrb[0].mxu0
        %v1840 = vand.u32 %v387, 4294901760
        %1841 = vmatprep.mubr.f32.mxu0 %v1840
        %v1842 = vand.u32 %v386, 4294901760
        %1843 = vmatmul.mubr.f32.gmra.mrb[0].mxu0 %v1842
        %v1844 = vpop.f32.mrb[0].mxu0
        %v1845 = vadd.f32 %v1520, %v1844
        %v1846 = vpop.f32.mrb[0].mxu0
        %v1847 = vand.u32 %v389, 4294901760
        %1848 = vmatprep.mubr.f32.mxu0 %v1847
        %v1849 = vand.u32 %v388, 4294901760
        %1850 = vmatmul.mubr.f32.gmra.mrb[0].mxu0 %v1849
        %v1851 = vpop.f32.mrb[0].mxu0
        %v1852 = vadd.f32 %v1531, %v1851
        %v1853 = vpop.f32.mrb[0].mxu0
        %v1854 = vand.u32 %v391, 4294901760
        %1855 = vmatprep.mubr.f32.mxu0 %v1854
        %v1856 = vand.u32 %v390, 4294901760
        %1857 = vmatmul.mubr.f32.gmra.mrb[0].mxu0 %v1856
        %v1858 = vpop.f32.mrb[0].mxu0
        %v1859 = vadd.f32 %v1542, %v1858
        %v1860 = vpop.f32.mrb[0].mxu0
        %v1861 = vand.u32 %v393, 4294901760
        %1862 = vmatprep.mubr.f32.mxu0 %v1861
        %v1863 = vand.u32 %v392, 4294901760
        %1864 = vmatmul.mubr.f32.gmra.mrb[0].mxu0 %v1863
        %v1865 = vpop.f32.mrb[0].mxu0
        %v1866 = vadd.f32 %v1553, %v1865
        %v1867 = vpop.f32.mrb[0].mxu0
        %v1868 = vand.u32 %v395, 4294901760
        %1869 = vmatprep.mubr.f32.mxu0 %v1868
        %v1870 = vand.u32 %v394, 4294901760
        %1871 = vmatmul.mubr.f32.gmra.mrb[0].mxu0 %v1870
        %v1872 = vpop.f32.mrb[0].mxu0
        %v1873 = vadd.f32 %v1564, %v1872
        %v1874 = vpop.f32.mrb[0].mxu0
        %v1875 = vand.u32 %v397, 4294901760
        %1876 = vmatprep.mubr.f32.mxu0 %v1875
        %v1877 = vand.u32 %v396, 4294901760
        %1878 = vmatmul.mubr.f32.gmra.mrb[0].mxu0 %v1877
        %v1879 = vpop.f32.mrb[0].mxu0
        %v1880 = vadd.f32 %v1575, %v1879
        %v1881 = vpop.f32.mrb[0].mxu0
        %v1882 = vand.u32 %v399, 4294901760
        %1883 = vmatprep.mubr.f32.mxu0 %v1882
        %v1884 = vand.u32 %v398, 4294901760
        %1885 = vmatmul.mubr.f32.gmra.mrb[0].mxu0 %v1884
        %v1886 = vpop.f32.mrb[0].mxu0
        %v1887 = vadd.f32 %v1586, %v1886
        %v1888 = vpop.f32.mrb[0].mxu0
        %v1889 = vand.u32 %v401, 4294901760
        %1890 = vmatprep.mubr.f32.mxu0 %v1889
        %v1891 = vand.u32 %v400, 4294901760
        %1892 = vmatmul.mubr.f32.gmra.mrb[0].mxu0 %v1891
        %v1893 = vpop.f32.mrb[0].mxu0
        %v1894 = vadd.f32 %v1597, %v1893
        %v1895 = vpop.f32.mrb[0].mxu0
        %v1896 = vand.u32 %v403, 4294901760
        %1897 = vmatprep.mubr.f32.mxu0 %v1896
        %v1898 = vand.u32 %v402, 4294901760
        %1899 = vmatmul.mubr.f32.gmra.mrb[0].mxu0 %v1898
        %v1900 = vpop.f32.mrb[0].mxu0
        %v1901 = vadd.f32 %v1608, %v1900
        %v1902 = vpop.f32.mrb[0].mxu0
        %v1903 = vand.u32 %v405, 4294901760
        %1904 = vmatprep.mubr.f32.mxu0 %v1903
        %v1905 = vand.u32 %v404, 4294901760
        %1906 = vmatmul.mubr.f32.gmra.mrb[0].mxu0 %v1905
        %v1907 = vpop.f32.mrb[0].mxu0
        %v1908 = vadd.f32 %v1619, %v1907
        %v1909 = vpop.f32.mrb[0].mxu0
        %v1910 = vand.u32 %v407, 4294901760
        %1911 = vmatprep.mubr.f32.mxu0 %v1910
        %v1912 = vand.u32 %v406, 4294901760
        %1913 = vmatmul.mubr.f32.gmra.mrb[0].mxu0 %v1912
        %v1914 = vpop.f32.mrb[0].mxu0
        %v1915 = vadd.f32 %v1630, %v1914
        %v1916 = vpop.f32.mrb[0].mxu0
        %v1917 = vand.u32 %v409, 4294901760
        %1918 = vmatprep.mubr.f32.mxu0 %v1917
        %v1919 = vand.u32 %v408, 4294901760
        %1920 = vmatmul.mubr.f32.gmra.mrb[0].mxu0 %v1919
        %v1921 = vpop.f32.mrb[0].mxu0
        %v1922 = vadd.f32 %v1641, %v1921
        %v1923 = vpop.f32.mrb[0].mxu0
        %v1924 = vand.u32 %v411, 4294901760
        %1925 = vmatprep.mubr.f32.mxu0 %v1924
        %v1926 = vand.u32 %v410, 4294901760
        %1927 = vmatmul.mubr.f32.gmra.mrb[0].mxu0 %v1926
        %v1928 = vpop.f32.mrb[0].mxu0
        %v1929 = vadd.f32 %v1652, %v1928
        %v1930 = vpop.f32.mrb[0].mxu0
        %v1931 = vand.u32 %v413, 4294901760
        %1932 = vmatprep.mubr.f32.mxu0 %v1931
        %v1933 = vand.u32 %v412, 4294901760
        %1934 = vmatmul.mubr.f32.gmra.mrb[0].mxu0 %v1933
        %v1935 = vpop.f32.mrb[0].mxu0
        %v1936 = vadd.f32 %v1663, %v1935
        %v1937 = vpop.f32.mrb[0].mxu0
        %1938 = vdwg.mxu0
        %1939 = vmatprep.subr.mxu0 0.0
        %v1940 = vand.u32 %v414, 4294901760
        %1941 = vmatpush1.msra.mxu0 %v1940
        %1942 = vmatprep.subr.mxu0 0.0
        %v1943 = vand.u32 %v415, 4294901760
        %1944 = vmatpush1.msra.mxu0 %v1943
        %1945 = vmatprep.subr.mxu0 0.0
        %v1946 = vand.u32 %v416, 4294901760
        %1947 = vmatpush1.msra.mxu0 %v1946
        %1948 = vmatprep.subr.mxu0 0.0
        %v1949 = vand.u32 %v417, 4294901760
        %1950 = vmatpush1.msra.mxu0 %v1949
        %1951 = vmatprep.subr.mxu0 0.0
        %v1952 = vand.u32 %v418, 4294901760
        %1953 = vmatpush1.msra.mxu0 %v1952
        %1954 = vmatprep.subr.mxu0 0.0
        %v1955 = vand.u32 %v419, 4294901760
        %1956 = vmatpush1.msra.mxu0 %v1955
        %1957 = vmatprep.subr.mxu0 0.0
        %v1958 = vand.u32 %v420, 4294901760
        %1959 = vmatpush1.msra.mxu0 %v1958
        %1960 = vmatprep.subr.mxu0 0.0
        %v1961 = vand.u32 %v421, 4294901760
        %1962 = vmatpush1.msra.mxu0 %v1961
        %1963 = vmatprep.subr.mxu0 0.0
        %v1964 = vand.u32 %v422, 4294901760
        %1965 = vmatpush1.msra.mxu0 %v1964
        %1966 = vmatprep.subr.mxu0 0.0
        %v1967 = vand.u32 %v423, 4294901760
        %1968 = vmatpush1.msra.mxu0 %v1967
        %1969 = vmatprep.subr.mxu0 0.0
        %v1970 = vand.u32 %v424, 4294901760
        %1971 = vmatpush1.msra.mxu0 %v1970
        %1972 = vmatprep.subr.mxu0 0.0
        %v1973 = vand.u32 %v425, 4294901760
        %1974 = vmatpush1.msra.mxu0 %v1973
        %1975 = vmatprep.subr.mxu0 0.0
        %v1976 = vand.u32 %v426, 4294901760
        %1977 = vmatpush1.msra.mxu0 %v1976
        %1978 = vmatprep.subr.mxu0 0.0
        %v1979 = vand.u32 %v427, 4294901760
        %1980 = vmatpush1.msra.mxu0 %v1979
        %1981 = vmatprep.subr.mxu0 0.0
        %v1982 = vand.u32 %v428, 4294901760
        %1983 = vmatpush1.msra.mxu0 %v1982
        %1984 = vmatprep.subr.mxu0 0.0
        %v1985 = vand.u32 %v429, 4294901760
        %1986 = vmatpush1.msra.mxu0 %v1985
        %1987 = vmatprep.subr.mxu0 0.0
        %v1988 = vand.u32 %v430, 4294901760
        %1989 = vmatpush1.msra.mxu0 %v1988
        %1990 = vmatprep.subr.mxu0 0.0
        %v1991 = vand.u32 %v431, 4294901760
        %1992 = vmatpush1.msra.mxu0 %v1991
        %1993 = vmatprep.subr.mxu0 0.0
        %v1994 = vand.u32 %v432, 4294901760
        %1995 = vmatpush1.msra.mxu0 %v1994
        %1996 = vmatprep.subr.mxu0 0.0
        %v1997 = vand.u32 %v433, 4294901760
        %1998 = vmatpush1.msra.mxu0 %v1997
        %1999 = vmatprep.subr.mxu0 0.0
        %v2000 = vand.u32 %v434, 4294901760
        %2001 = vmatpush1.msra.mxu0 %v2000
        %2002 = vmatprep.subr.mxu0 0.0
        %v2003 = vand.u32 %v435, 4294901760
        %2004 = vmatpush1.msra.mxu0 %v2003
        %2005 = vmatprep.subr.mxu0 0.0
        %v2006 = vand.u32 %v436, 4294901760
        %2007 = vmatpush1.msra.mxu0 %v2006
        %2008 = vmatprep.subr.mxu0 0.0
        %v2009 = vand.u32 %v437, 4294901760
        %2010 = vmatpush1.msra.mxu0 %v2009
        %2011 = vmatprep.subr.mxu0 0.0
        %v2012 = vand.u32 %v438, 4294901760
        %2013 = vmatpush1.msra.mxu0 %v2012
        %2014 = vmatprep.subr.mxu0 0.0
        %v2015 = vand.u32 %v439, 4294901760
        %2016 = vmatpush1.msra.mxu0 %v2015
        %2017 = vmatprep.subr.mxu0 0.0
        %v2018 = vand.u32 %v440, 4294901760
        %2019 = vmatpush1.msra.mxu0 %v2018
        %2020 = vmatprep.subr.mxu0 0.0
        %v2021 = vand.u32 %v441, 4294901760
        %2022 = vmatpush1.msra.mxu0 %v2021
        %2023 = vmatprep.subr.mxu0 0.0
        %v2024 = vand.u32 %v442, 4294901760
        %2025 = vmatpush1.msra.mxu0 %v2024
        %2026 = vmatprep.subr.mxu0 0.0
        %v2027 = vand.u32 %v443, 4294901760
        %2028 = vmatpush1.msra.mxu0 %v2027
        %2029 = vmatprep.subr.mxu0 0.0
        %v2030 = vand.u32 %v444, 4294901760
        %2031 = vmatpush1.msra.mxu0 %v2030
        %2032 = vmatprep.subr.mxu0 0.0
        %v2033 = vand.u32 %v445, 4294901760
        %2034 = vmatpush1.msra.mxu0 %v2033
        %v2035 = vand.u32 %v383, 4294901760
        %2036 = vmatprep.mubr.f32.mxu0 %v2035
        %v2037 = vand.u32 %v382, 4294901760
        %2038 = vmatmul.mubr.f32.gmra.mrb[0].mxu0 %v2037
        %v2039 = vpop.f32.mrb[0].mxu0
        %v2040 = vadd.f32 %v1831, %v2039
        %v2041 = vpop.f32.mrb[0].mxu0
        %v2042 = vand.u32 %v385, 4294901760
        %2043 = vmatprep.mubr.f32.mxu0 %v2042
        %v2044 = vand.u32 %v384, 4294901760
        %2045 = vmatmul.mubr.f32.gmra.mrb[0].mxu0 %v2044
        %v2046 = vpop.f32.mrb[0].mxu0
        %v2047 = vadd.f32 %v1838, %v2046
        %v2048 = vpop.f32.mrb[0].mxu0
        %v2049 = vand.u32 %v387, 4294901760
        %2050 = vmatprep.mubr.f32.mxu0 %v2049
        %v2051 = vand.u32 %v386, 4294901760
        %2052 = vmatmul.mubr.f32.gmra.mrb[0].mxu0 %v2051
        %v2053 = vpop.f32.mrb[0].mxu0
        %v2054 = vadd.f32 %v1845, %v2053
        %v2055 = vpop.f32.mrb[0].mxu0
        %v2056 = vand.u32 %v389, 4294901760
        %2057 = vmatprep.mubr.f32.mxu0 %v2056
        %v2058 = vand.u32 %v388, 4294901760
        %2059 = vmatmul.mubr.f32.gmra.mrb[0].mxu0 %v2058
        %v2060 = vpop.f32.mrb[0].mxu0
        %v2061 = vadd.f32 %v1852, %v2060
        %v2062 = vpop.f32.mrb[0].mxu0
        %v2063 = vand.u32 %v391, 4294901760
        %2064 = vmatprep.mubr.f32.mxu0 %v2063
        %v2065 = vand.u32 %v390, 4294901760
        %2066 = vmatmul.mubr.f32.gmra.mrb[0].mxu0 %v2065
        %v2067 = vpop.f32.mrb[0].mxu0
        %v2068 = vadd.f32 %v1859, %v2067
        %v2069 = vpop.f32.mrb[0].mxu0
        %v2070 = vand.u32 %v393, 4294901760
        %2071 = vmatprep.mubr.f32.mxu0 %v2070
        %v2072 = vand.u32 %v392, 4294901760
        %2073 = vmatmul.mubr.f32.gmra.mrb[0].mxu0 %v2072
        %v2074 = vpop.f32.mrb[0].mxu0
        %v2075 = vadd.f32 %v1866, %v2074
        %v2076 = vpop.f32.mrb[0].mxu0
        %v2077 = vand.u32 %v395, 4294901760
        %2078 = vmatprep.mubr.f32.mxu0 %v2077
        %v2079 = vand.u32 %v394, 4294901760
        %2080 = vmatmul.mubr.f32.gmra.mrb[0].mxu0 %v2079
        %v2081 = vpop.f32.mrb[0].mxu0
        %v2082 = vadd.f32 %v1873, %v2081
        %v2083 = vpop.f32.mrb[0].mxu0
        %v2084 = vand.u32 %v397, 4294901760
        %2085 = vmatprep.mubr.f32.mxu0 %v2084
        %v2086 = vand.u32 %v396, 4294901760
        %2087 = vmatmul.mubr.f32.gmra.mrb[0].mxu0 %v2086
        %v2088 = vpop.f32.mrb[0].mxu0
        %v2089 = vadd.f32 %v1880, %v2088
        %v2090 = vpop.f32.mrb[0].mxu0
        %v2091 = vand.u32 %v399, 4294901760
        %2092 = vmatprep.mubr.f32.mxu0 %v2091
        %v2093 = vand.u32 %v398, 4294901760
        %2094 = vmatmul.mubr.f32.gmra.mrb[0].mxu0 %v2093
        %v2095 = vpop.f32.mrb[0].mxu0
        %v2096 = vadd.f32 %v1887, %v2095
        %v2097 = vpop.f32.mrb[0].mxu0
        %v2098 = vand.u32 %v401, 4294901760
        %2099 = vmatprep.mubr.f32.mxu0 %v2098
        %v2100 = vand.u32 %v400, 4294901760
        %2101 = vmatmul.mubr.f32.gmra.mrb[0].mxu0 %v2100
        %v2102 = vpop.f32.mrb[0].mxu0
        %v2103 = vadd.f32 %v1894, %v2102
        %v2104 = vpop.f32.mrb[0].mxu0
        %v2105 = vand.u32 %v403, 4294901760
        %2106 = vmatprep.mubr.f32.mxu0 %v2105
        %v2107 = vand.u32 %v402, 4294901760
        %2108 = vmatmul.mubr.f32.gmra.mrb[0].mxu0 %v2107
        %v2109 = vpop.f32.mrb[0].mxu0
        %v2110 = vadd.f32 %v1901, %v2109
        %v2111 = vpop.f32.mrb[0].mxu0
        %v2112 = vand.u32 %v405, 4294901760
        %2113 = vmatprep.mubr.f32.mxu0 %v2112
        %v2114 = vand.u32 %v404, 4294901760
        %2115 = vmatmul.mubr.f32.gmra.mrb[0].mxu0 %v2114
        %v2116 = vpop.f32.mrb[0].mxu0
        %v2117 = vadd.f32 %v1908, %v2116
        %v2118 = vpop.f32.mrb[0].mxu0
        %v2119 = vand.u32 %v407, 4294901760
        %2120 = vmatprep.mubr.f32.mxu0 %v2119
        %v2121 = vand.u32 %v406, 4294901760
        %2122 = vmatmul.mubr.f32.gmra.mrb[0].mxu0 %v2121
        %v2123 = vpop.f32.mrb[0].mxu0
        %v2124 = vadd.f32 %v1915, %v2123
        %v2125 = vpop.f32.mrb[0].mxu0
        %v2126 = vand.u32 %v409, 4294901760
        %2127 = vmatprep.mubr.f32.mxu0 %v2126
        %v2128 = vand.u32 %v408, 4294901760
        %2129 = vmatmul.mubr.f32.gmra.mrb[0].mxu0 %v2128
        %v2130 = vpop.f32.mrb[0].mxu0
        %v2131 = vadd.f32 %v1922, %v2130
        %v2132 = vpop.f32.mrb[0].mxu0
        %v2133 = vand.u32 %v411, 4294901760
        %2134 = vmatprep.mubr.f32.mxu0 %v2133
        %v2135 = vand.u32 %v410, 4294901760
        %2136 = vmatmul.mubr.f32.gmra.mrb[0].mxu0 %v2135
        %v2137 = vpop.f32.mrb[0].mxu0
        %v2138 = vadd.f32 %v1929, %v2137
        %v2139 = vpop.f32.mrb[0].mxu0
        %v2140 = vand.u32 %v413, 4294901760
        %2141 = vmatprep.mubr.f32.mxu0 %v2140
        %v2142 = vand.u32 %v412, 4294901760
        %2143 = vmatmul.mubr.f32.gmra.mrb[0].mxu0 %v2142
        %v2144 = vpop.f32.mrb[0].mxu0
        %v2145 = vadd.f32 %v1936, %v2144
        %v2146 = vpop.f32.mrb[0].mxu0
        %2147 = vdwg.mxu0
        %v2148 = vld [vmem:[%s335] sm:$0xff]
        %v2149 = vld [vmem:[%s335 + $0x8] sm:$0xff]
        %v2150 = vld [vmem:[%s335 + $0x10] sm:$0xff]
        %v2151 = vld [vmem:[%s335 + $0x18] sm:$0xff]
        %v2152 = vld [vmem:[%s335 + $0x20] sm:$0xff]
        %v2153 = vld [vmem:[%s335 + $0x28] sm:$0xff]
        %v2154 = vld [vmem:[%s335 + $0x30] sm:$0xff]
        %v2155 = vld [vmem:[%s335 + $0x38] sm:$0xff]
        %v2156 = vld [vmem:[%s335 + $0x40] sm:$0xff]
        %v2157 = vld [vmem:[%s335 + $0x48] sm:$0xff]
        %v2158 = vld [vmem:[%s335 + $0x50] sm:$0xff]
        %v2159 = vld [vmem:[%s335 + $0x58] sm:$0xff]
        %v2160 = vld [vmem:[%s335 + $0x60] sm:$0xff]
        %v2161 = vld [vmem:[%s335 + $0x68] sm:$0xff]
        %v2162 = vld [vmem:[%s335 + $0x70] sm:$0xff]
        %v2163 = vld [vmem:[%s335 + $0x78] sm:$0xff]
        %v2164 = vadd.f32 %v2148, %v2040
        %v2165 = vadd.f32 %v2149, %v2047
        %v2166 = vadd.f32 %v2150, %v2054
        %v2167 = vadd.f32 %v2151, %v2061
        %v2168 = vadd.f32 %v2152, %v2068
        %v2169 = vadd.f32 %v2153, %v2075
        %v2170 = vadd.f32 %v2154, %v2082
        %v2171 = vadd.f32 %v2155, %v2089
        %v2172 = vadd.f32 %v2156, %v2096
        %v2173 = vadd.f32 %v2157, %v2103
        %v2174 = vadd.f32 %v2158, %v2110
        %v2175 = vadd.f32 %v2159, %v2117
        %v2176 = vadd.f32 %v2160, %v2124
        %v2177 = vadd.f32 %v2161, %v2131
        %v2178 = vadd.f32 %v2162, %v2138
        %v2179 = vadd.f32 %v2163, %v2145
        %v2180 = vmul.f32 %v2148, %v2040
        %v2181 = vmul.f32 %v2149, %v2047
        %v2182 = vmul.f32 %v2150, %v2054
        %v2183 = vmul.f32 %v2151, %v2061
        %v2184 = vmul.f32 %v2152, %v2068
        %v2185 = vmul.f32 %v2153, %v2075
        %v2186 = vmul.f32 %v2154, %v2082
        %v2187 = vmul.f32 %v2155, %v2089
        %v2188 = vmul.f32 %v2156, %v2096
        %v2189 = vmul.f32 %v2157, %v2103
        %v2190 = vmul.f32 %v2158, %v2110
        %v2191 = vmul.f32 %v2159, %v2117
        %v2192 = vmul.f32 %v2160, %v2124
        %v2193 = vmul.f32 %v2161, %v2131
        %v2194 = vmul.f32 %v2162, %v2138
        %v2195 = vmul.f32 %v2163, %v2145
        %v2196 = vld [vmem:[#allocation8] sm:$0xff]
        %v2197 = vld [vmem:[#allocation8 + $0x8] sm:$0xff]
        %v2198 = vld [vmem:[#allocation8 + $0x10] sm:$0xff]
        %v2199 = vld [vmem:[#allocation8 + $0x18] sm:$0xff]
        %v2200 = vld [vmem:[#allocation8 + $0x20] sm:$0xff]
        %v2201 = vld [vmem:[#allocation8 + $0x28] sm:$0xff]
        %v2202 = vld [vmem:[#allocation8 + $0x30] sm:$0xff]
        %v2203 = vld [vmem:[#allocation8 + $0x38] sm:$0xff]
        %v2204 = vld [vmem:[#allocation8 + $0x40] sm:$0xff]
        %v2205 = vld [vmem:[#allocation8 + $0x48] sm:$0xff]
        %v2206 = vld [vmem:[#allocation8 + $0x50] sm:$0xff]
        %v2207 = vld [vmem:[#allocation8 + $0x58] sm:$0xff]
        %v2208 = vld [vmem:[#allocation8 + $0x60] sm:$0xff]
        %v2209 = vld [vmem:[#allocation8 + $0x68] sm:$0xff]
        %v2210 = vld [vmem:[#allocation8 + $0x70] sm:$0xff]
        %v2211 = vld [vmem:[#allocation8 + $0x78] sm:$0xff]
        %v2212 = vld [vmem:[%s4] sm:$0x1]
        %v2214 = vlaneseq
        %v2215 = vshrl.u32 %v2214, 7
        %v2216 = vsub.s32 0, %v2215
        %v2217 = vrot.slane %v2212, %v2216
        %2219 = vmatprep.subr.mxu0 0.0
        %v2220 = vand.u32 %v2196, 4294901760
        %2221 = vmatpush1.msra.mxu0 %v2220
        %2222 = vmatprep.subr.mxu0 0.0
        %v2223 = vand.u32 %v2197, 4294901760
        %2224 = vmatpush1.msra.mxu0 %v2223
        %2225 = vmatprep.subr.mxu0 0.0
        %v2226 = vand.u32 %v2198, 4294901760
        %2227 = vmatpush1.msra.mxu0 %v2226
        %2228 = vmatprep.subr.mxu0 0.0
        %v2229 = vand.u32 %v2199, 4294901760
        %2230 = vmatpush1.msra.mxu0 %v2229
        %2231 = vmatprep.subr.mxu0 0.0
        %v2232 = vand.u32 %v2200, 4294901760
        %2233 = vmatpush1.msra.mxu0 %v2232
        %2234 = vmatprep.subr.mxu0 0.0
        %v2235 = vand.u32 %v2201, 4294901760
        %2236 = vmatpush1.msra.mxu0 %v2235
        %2237 = vmatprep.subr.mxu0 0.0
        %v2238 = vand.u32 %v2202, 4294901760
        %2239 = vmatpush1.msra.mxu0 %v2238
        %2240 = vmatprep.subr.mxu0 0.0
        %v2241 = vand.u32 %v2203, 4294901760
        %2242 = vmatpush1.msra.mxu0 %v2241
        %2243 = vmatprep.subr.mxu0 0.0
        %v2244 = vand.u32 %v2204, 4294901760
        %2245 = vmatpush1.msra.mxu0 %v2244
        %2246 = vmatprep.subr.mxu0 0.0
        %v2247 = vand.u32 %v2205, 4294901760
        %2248 = vmatpush1.msra.mxu0 %v2247
        %2249 = vmatprep.subr.mxu0 0.0
        %v2250 = vand.u32 %v2206, 4294901760
        %2251 = vmatpush1.msra.mxu0 %v2250
        %2252 = vmatprep.subr.mxu0 0.0
        %v2253 = vand.u32 %v2207, 4294901760
        %2254 = vmatpush1.msra.mxu0 %v2253
        %2255 = vmatprep.subr.mxu0 0.0
        %v2256 = vand.u32 %v2208, 4294901760
        %2257 = vmatpush1.msra.mxu0 %v2256
        %2258 = vmatprep.subr.mxu0 0.0
        %v2259 = vand.u32 %v2209, 4294901760
        %2260 = vmatpush1.msra.mxu0 %v2259
        %2261 = vmatprep.subr.mxu0 0.0
        %v2262 = vand.u32 %v2210, 4294901760
        %2263 = vmatpush1.msra.mxu0 %v2262
        %2264 = vmatprep.subr.mxu0 0.0
        %v2265 = vand.u32 %v2211, 4294901760
        %2266 = vmatpush1.msra.mxu0 %v2265
        %2267 = vmatprep.subr.mxu0 0.0
        %2268 = vmatpush1.msra.mxu0 0.0
        %2269 = vmatprep.subr.mxu0 0.0
        %2270 = vmatpush1.msra.mxu0 0.0
        %2271 = vmatprep.subr.mxu0 0.0
        %2272 = vmatpush1.msra.mxu0 0.0
        %2273 = vmatprep.subr.mxu0 0.0
        %2274 = vmatpush1.msra.mxu0 0.0
        %2275 = vmatprep.subr.mxu0 0.0
        %2276 = vmatpush1.msra.mxu0 0.0
        %2277 = vmatprep.subr.mxu0 0.0
        %2278 = vmatpush1.msra.mxu0 0.0
        %2279 = vmatprep.subr.mxu0 0.0
        %2280 = vmatpush1.msra.mxu0 0.0
        %2281 = vmatprep.subr.mxu0 0.0
        %2282 = vmatpush1.msra.mxu0 0.0
        %2283 = vmatprep.subr.mxu0 0.0
        %2284 = vmatpush1.msra.mxu0 0.0
        %2285 = vmatprep.subr.mxu0 0.0
        %2286 = vmatpush1.msra.mxu0 0.0
        %2287 = vmatprep.subr.mxu0 0.0
        %2288 = vmatpush1.msra.mxu0 0.0
        %2289 = vmatprep.subr.mxu0 0.0
        %2290 = vmatpush1.msra.mxu0 0.0
        %2291 = vmatprep.subr.mxu0 0.0
        %2292 = vmatpush1.msra.mxu0 0.0
        %2293 = vmatprep.subr.mxu0 0.0
        %2294 = vmatpush1.msra.mxu0 0.0
        %2295 = vmatprep.subr.mxu0 0.0
        %2296 = vmatpush1.msra.mxu0 0.0
        %2297 = vmatprep.subr.mxu0 0.0
        %2298 = vmatpush1.msra.mxu0 0.0
        %2299 = vmatprep.mubr.f32.mxu0 0.0
        %v2300 = vand.u32 %v2164, 4294901760
        %v2301 = vsub.f32 %v2164, %v2300
        %v2302 = vand.u32 %v2301, 4294901760
        %v2303 = vsub.f32 %v2301, %v2302
        %v2304 = vand.u32 %v2303, 4294901760
        %2305 = vmatmul.mubr.f32.gmra.mrb[0].mxu0 %v2304
        %v2306 = vpop.f32.mrb[0].mxu0
        %v2307 = vadd.f32 %v2217, %v2306
        %v2308 = vpop.f32.mrb[0].mxu0
        %2309 = vmatprep.mubr.f32.mxu0 0.0
        %v2310 = vand.u32 %v2165, 4294901760
        %v2311 = vsub.f32 %v2165, %v2310
        %v2312 = vand.u32 %v2311, 4294901760
        %v2313 = vsub.f32 %v2311, %v2312
        %v2314 = vand.u32 %v2313, 4294901760
        %2315 = vmatmul.mubr.f32.gmra.mrb[0].mxu0 %v2314
        %v2316 = vpop.f32.mrb[0].mxu0
        %v2317 = vadd.f32 %v2217, %v2316
        %v2318 = vpop.f32.mrb[0].mxu0
        %2319 = vmatprep.mubr.f32.mxu0 0.0
        %v2320 = vand.u32 %v2166, 4294901760
        %v2321 = vsub.f32 %v2166, %v2320
        %v2322 = vand.u32 %v2321, 4294901760
        %v2323 = vsub.f32 %v2321, %v2322
        %v2324 = vand.u32 %v2323, 4294901760
        %2325 = vmatmul.mubr.f32.gmra.mrb[0].mxu0 %v2324
        %v2326 = vpop.f32.mrb[0].mxu0
        %v2327 = vadd.f32 %v2217, %v2326
        %v2328 = vpop.f32.mrb[0].mxu0
        %2329 = vmatprep.mubr.f32.mxu0 0.0
        %v2330 = vand.u32 %v2167, 4294901760
        %v2331 = vsub.f32 %v2167, %v2330
        %v2332 = vand.u32 %v2331, 4294901760
        %v2333 = vsub.f32 %v2331, %v2332
        %v2334 = vand.u32 %v2333, 4294901760
        %2335 = vmatmul.mubr.f32.gmra.mrb[0].mxu0 %v2334
        %v2336 = vpop.f32.mrb[0].mxu0
        %v2337 = vadd.f32 %v2217, %v2336
        %v2338 = vpop.f32.mrb[0].mxu0
        %2339 = vmatprep.mubr.f32.mxu0 0.0
        %v2340 = vand.u32 %v2168, 4294901760
        %v2341 = vsub.f32 %v2168, %v2340
        %v2342 = vand.u32 %v2341, 4294901760
        %v2343 = vsub.f32 %v2341, %v2342
        %v2344 = vand.u32 %v2343, 4294901760
        %2345 = vmatmul.mubr.f32.gmra.mrb[0].mxu0 %v2344
        %v2346 = vpop.f32.mrb[0].mxu0
        %v2347 = vadd.f32 %v2217, %v2346
        %v2348 = vpop.f32.mrb[0].mxu0
        %2349 = vmatprep.mubr.f32.mxu0 0.0
        %v2350 = vand.u32 %v2169, 4294901760
        %v2351 = vsub.f32 %v2169, %v2350
        %v2352 = vand.u32 %v2351, 4294901760
        %v2353 = vsub.f32 %v2351, %v2352
        %v2354 = vand.u32 %v2353, 4294901760
        %2355 = vmatmul.mubr.f32.gmra.mrb[0].mxu0 %v2354
        %v2356 = vpop.f32.mrb[0].mxu0
        %v2357 = vadd.f32 %v2217, %v2356
        %v2358 = vpop.f32.mrb[0].mxu0
        %2359 = vmatprep.mubr.f32.mxu0 0.0
        %v2360 = vand.u32 %v2170, 4294901760
        %v2361 = vsub.f32 %v2170, %v2360
        %v2362 = vand.u32 %v2361, 4294901760
        %v2363 = vsub.f32 %v2361, %v2362
        %v2364 = vand.u32 %v2363, 4294901760
        %2365 = vmatmul.mubr.f32.gmra.mrb[0].mxu0 %v2364
        %v2366 = vpop.f32.mrb[0].mxu0
        %v2367 = vadd.f32 %v2217, %v2366
        %v2368 = vpop.f32.mrb[0].mxu0
        %2369 = vmatprep.mubr.f32.mxu0 0.0
        %v2370 = vand.u32 %v2171, 4294901760
        %v2371 = vsub.f32 %v2171, %v2370
        %v2372 = vand.u32 %v2371, 4294901760
        %v2373 = vsub.f32 %v2371, %v2372
        %v2374 = vand.u32 %v2373, 4294901760
        %2375 = vmatmul.mubr.f32.gmra.mrb[0].mxu0 %v2374
        %v2376 = vpop.f32.mrb[0].mxu0
        %v2377 = vadd.f32 %v2217, %v2376
        %v2378 = vpop.f32.mrb[0].mxu0
        %2379 = vmatprep.mubr.f32.mxu0 0.0
        %v2380 = vand.u32 %v2172, 4294901760
        %v2381 = vsub.f32 %v2172, %v2380
        %v2382 = vand.u32 %v2381, 4294901760
        %v2383 = vsub.f32 %v2381, %v2382
        %v2384 = vand.u32 %v2383, 4294901760
        %2385 = vmatmul.mubr.f32.gmra.mrb[0].mxu0 %v2384
        %v2386 = vpop.f32.mrb[0].mxu0
        %v2387 = vadd.f32 %v2217, %v2386
        %v2388 = vpop.f32.mrb[0].mxu0
        %2389 = vmatprep.mubr.f32.mxu0 0.0
        %v2390 = vand.u32 %v2173, 4294901760
        %v2391 = vsub.f32 %v2173, %v2390
        %v2392 = vand.u32 %v2391, 4294901760
        %v2393 = vsub.f32 %v2391, %v2392
        %v2394 = vand.u32 %v2393, 4294901760
        %2395 = vmatmul.mubr.f32.gmra.mrb[0].mxu0 %v2394
        %v2396 = vpop.f32.mrb[0].mxu0
        %v2397 = vadd.f32 %v2217, %v2396
        %v2398 = vpop.f32.mrb[0].mxu0
        %2399 = vmatprep.mubr.f32.mxu0 0.0
        %v2400 = vand.u32 %v2174, 4294901760
        %v2401 = vsub.f32 %v2174, %v2400
        %v2402 = vand.u32 %v2401, 4294901760
        %v2403 = vsub.f32 %v2401, %v2402
        %v2404 = vand.u32 %v2403, 4294901760
        %2405 = vmatmul.mubr.f32.gmra.mrb[0].mxu0 %v2404
        %v2406 = vpop.f32.mrb[0].mxu0
        %v2407 = vadd.f32 %v2217, %v2406
        %v2408 = vpop.f32.mrb[0].mxu0
        %2409 = vmatprep.mubr.f32.mxu0 0.0
        %v2410 = vand.u32 %v2175, 4294901760
        %v2411 = vsub.f32 %v2175, %v2410
        %v2412 = vand.u32 %v2411, 4294901760
        %v2413 = vsub.f32 %v2411, %v2412
        %v2414 = vand.u32 %v2413, 4294901760
        %2415 = vmatmul.mubr.f32.gmra.mrb[0].mxu0 %v2414
        %v2416 = vpop.f32.mrb[0].mxu0
        %v2417 = vadd.f32 %v2217, %v2416
        %v2418 = vpop.f32.mrb[0].mxu0
        %2419 = vmatprep.mubr.f32.mxu0 0.0
        %v2420 = vand.u32 %v2176, 4294901760
        %v2421 = vsub.f32 %v2176, %v2420
        %v2422 = vand.u32 %v2421, 4294901760
        %v2423 = vsub.f32 %v2421, %v2422
        %v2424 = vand.u32 %v2423, 4294901760
        %2425 = vmatmul.mubr.f32.gmra.mrb[0].mxu0 %v2424
        %v2426 = vpop.f32.mrb[0].mxu0
        %v2427 = vadd.f32 %v2217, %v2426
        %v2428 = vpop.f32.mrb[0].mxu0
        %2429 = vmatprep.mubr.f32.mxu0 0.0
        %v2430 = vand.u32 %v2177, 4294901760
        %v2431 = vsub.f32 %v2177, %v2430
        %v2432 = vand.u32 %v2431, 4294901760
        %v2433 = vsub.f32 %v2431, %v2432
        %v2434 = vand.u32 %v2433, 4294901760
        %2435 = vmatmul.mubr.f32.gmra.mrb[0].mxu0 %v2434
        %v2436 = vpop.f32.mrb[0].mxu0
        %v2437 = vadd.f32 %v2217, %v2436
        %v2438 = vpop.f32.mrb[0].mxu0
        %2439 = vmatprep.mubr.f32.mxu0 0.0
        %v2440 = vand.u32 %v2178, 4294901760
        %v2441 = vsub.f32 %v2178, %v2440
        %v2442 = vand.u32 %v2441, 4294901760
        %v2443 = vsub.f32 %v2441, %v2442
        %v2444 = vand.u32 %v2443, 4294901760
        %2445 = vmatmul.mubr.f32.gmra.mrb[0].mxu0 %v2444
        %v2446 = vpop.f32.mrb[0].mxu0
        %v2447 = vadd.f32 %v2217, %v2446
        %v2448 = vpop.f32.mrb[0].mxu0
        %2449 = vmatprep.mubr.f32.mxu0 0.0
        %v2450 = vand.u32 %v2179, 4294901760
        %v2451 = vsub.f32 %v2179, %v2450
        %v2452 = vand.u32 %v2451, 4294901760
        %v2453 = vsub.f32 %v2451, %v2452
        %v2454 = vand.u32 %v2453, 4294901760
        %2455 = vmatmul.mubr.f32.gmra.mrb[0].mxu0 %v2454
        %v2456 = vpop.f32.mrb[0].mxu0
        %v2457 = vadd.f32 %v2217, %v2456
        %v2458 = vpop.f32.mrb[0].mxu0
        %2459 = vdwg.mxu0
        %2460 = vmatprep.subr.mxu0 0.0
        %v2461 = vand.u32 %v2196, 4294901760
        %v2462 = vsub.f32 %v2196, %v2461
        %v2463 = vand.u32 %v2462, 4294901760
        %v2464 = vsub.f32 %v2462, %v2463
        %v2465 = vand.u32 %v2464, 4294901760
        %2466 = vmatpush1.msra.mxu0 %v2465
        %2467 = vmatprep.subr.mxu0 0.0
        %v2468 = vand.u32 %v2197, 4294901760
        %v2469 = vsub.f32 %v2197, %v2468
        %v2470 = vand.u32 %v2469, 4294901760
        %v2471 = vsub.f32 %v2469, %v2470
        %v2472 = vand.u32 %v2471, 4294901760
        %2473 = vmatpush1.msra.mxu0 %v2472
        %2474 = vmatprep.subr.mxu0 0.0
        %v2475 = vand.u32 %v2198, 4294901760
        %v2476 = vsub.f32 %v2198, %v2475
        %v2477 = vand.u32 %v2476, 4294901760
        %v2478 = vsub.f32 %v2476, %v2477
        %v2479 = vand.u32 %v2478, 4294901760
        %2480 = vmatpush1.msra.mxu0 %v2479
        %2481 = vmatprep.subr.mxu0 0.0
        %v2482 = vand.u32 %v2199, 4294901760
        %v2483 = vsub.f32 %v2199, %v2482
        %v2484 = vand.u32 %v2483, 4294901760
        %v2485 = vsub.f32 %v2483, %v2484
        %v2486 = vand.u32 %v2485, 4294901760
        %2487 = vmatpush1.msra.mxu0 %v2486
        %2488 = vmatprep.subr.mxu0 0.0
        %v2489 = vand.u32 %v2200, 4294901760
        %v2490 = vsub.f32 %v2200, %v2489
        %v2491 = vand.u32 %v2490, 4294901760
        %v2492 = vsub.f32 %v2490, %v2491
        %v2493 = vand.u32 %v2492, 4294901760
        %2494 = vmatpush1.msra.mxu0 %v2493
        %2495 = vmatprep.subr.mxu0 0.0
        %v2496 = vand.u32 %v2201, 4294901760
        %v2497 = vsub.f32 %v2201, %v2496
        %v2498 = vand.u32 %v2497, 4294901760
        %v2499 = vsub.f32 %v2497, %v2498
        %v2500 = vand.u32 %v2499, 4294901760
        %2501 = vmatpush1.msra.mxu0 %v2500
        %2502 = vmatprep.subr.mxu0 0.0
        %v2503 = vand.u32 %v2202, 4294901760
        %v2504 = vsub.f32 %v2202, %v2503
        %v2505 = vand.u32 %v2504, 4294901760
        %v2506 = vsub.f32 %v2504, %v2505
        %v2507 = vand.u32 %v2506, 4294901760
        %2508 = vmatpush1.msra.mxu0 %v2507
        %2509 = vmatprep.subr.mxu0 0.0
        %v2510 = vand.u32 %v2203, 4294901760
        %v2511 = vsub.f32 %v2203, %v2510
        %v2512 = vand.u32 %v2511, 4294901760
        %v2513 = vsub.f32 %v2511, %v2512
        %v2514 = vand.u32 %v2513, 4294901760
        %2515 = vmatpush1.msra.mxu0 %v2514
        %2516 = vmatprep.subr.mxu0 0.0
        %v2517 = vand.u32 %v2204, 4294901760
        %v2518 = vsub.f32 %v2204, %v2517
        %v2519 = vand.u32 %v2518, 4294901760
        %v2520 = vsub.f32 %v2518, %v2519
        %v2521 = vand.u32 %v2520, 4294901760
        %2522 = vmatpush1.msra.mxu0 %v2521
        %2523 = vmatprep.subr.mxu0 0.0
        %v2524 = vand.u32 %v2205, 4294901760
        %v2525 = vsub.f32 %v2205, %v2524
        %v2526 = vand.u32 %v2525, 4294901760
        %v2527 = vsub.f32 %v2525, %v2526
        %v2528 = vand.u32 %v2527, 4294901760
        %2529 = vmatpush1.msra.mxu0 %v2528
        %2530 = vmatprep.subr.mxu0 0.0
        %v2531 = vand.u32 %v2206, 4294901760
        %v2532 = vsub.f32 %v2206, %v2531
        %v2533 = vand.u32 %v2532, 4294901760
        %v2534 = vsub.f32 %v2532, %v2533
        %v2535 = vand.u32 %v2534, 4294901760
        %2536 = vmatpush1.msra.mxu0 %v2535
        %2537 = vmatprep.subr.mxu0 0.0
        %v2538 = vand.u32 %v2207, 4294901760
        %v2539 = vsub.f32 %v2207, %v2538
        %v2540 = vand.u32 %v2539, 4294901760
        %v2541 = vsub.f32 %v2539, %v2540
        %v2542 = vand.u32 %v2541, 4294901760
        %2543 = vmatpush1.msra.mxu0 %v2542
        %2544 = vmatprep.subr.mxu0 0.0
        %v2545 = vand.u32 %v2208, 4294901760
        %v2546 = vsub.f32 %v2208, %v2545
        %v2547 = vand.u32 %v2546, 4294901760
        %v2548 = vsub.f32 %v2546, %v2547
        %v2549 = vand.u32 %v2548, 4294901760
        %2550 = vmatpush1.msra.mxu0 %v2549
        %2551 = vmatprep.subr.mxu0 0.0
        %v2552 = vand.u32 %v2209, 4294901760
        %v2553 = vsub.f32 %v2209, %v2552
        %v2554 = vand.u32 %v2553, 4294901760
        %v2555 = vsub.f32 %v2553, %v2554
        %v2556 = vand.u32 %v2555, 4294901760
        %2557 = vmatpush1.msra.mxu0 %v2556
        %2558 = vmatprep.subr.mxu0 0.0
        %v2559 = vand.u32 %v2210, 4294901760
        %v2560 = vsub.f32 %v2210, %v2559
        %v2561 = vand.u32 %v2560, 4294901760
        %v2562 = vsub.f32 %v2560, %v2561
        %v2563 = vand.u32 %v2562, 4294901760
        %2564 = vmatpush1.msra.mxu0 %v2563
        %2565 = vmatprep.subr.mxu0 0.0
        %v2566 = vand.u32 %v2211, 4294901760
        %v2567 = vsub.f32 %v2211, %v2566
        %v2568 = vand.u32 %v2567, 4294901760
        %v2569 = vsub.f32 %v2567, %v2568
        %v2570 = vand.u32 %v2569, 4294901760
        %2571 = vmatpush1.msra.mxu0 %v2570
        %2572 = vmatprep.subr.mxu0 0.0
        %2573 = vmatpush1.msra.mxu0 0.0
        %2574 = vmatprep.subr.mxu0 0.0
        %2575 = vmatpush1.msra.mxu0 0.0
        %2576 = vmatprep.subr.mxu0 0.0
        %2577 = vmatpush1.msra.mxu0 0.0
        %2578 = vmatprep.subr.mxu0 0.0
        %2579 = vmatpush1.msra.mxu0 0.0
        %2580 = vmatprep.subr.mxu0 0.0
        %2581 = vmatpush1.msra.mxu0 0.0
        %2582 = vmatprep.subr.mxu0 0.0
        %2583 = vmatpush1.msra.mxu0 0.0
        %2584 = vmatprep.subr.mxu0 0.0
        %2585 = vmatpush1.msra.mxu0 0.0
        %2586 = vmatprep.subr.mxu0 0.0
        %2587 = vmatpush1.msra.mxu0 0.0
        %2588 = vmatprep.subr.mxu0 0.0
        %2589 = vmatpush1.msra.mxu0 0.0
        %2590 = vmatprep.subr.mxu0 0.0
        %2591 = vmatpush1.msra.mxu0 0.0
        %2592 = vmatprep.subr.mxu0 0.0
        %2593 = vmatpush1.msra.mxu0 0.0
        %2594 = vmatprep.subr.mxu0 0.0
        %2595 = vmatpush1.msra.mxu0 0.0
        %2596 = vmatprep.subr.mxu0 0.0
        %2597 = vmatpush1.msra.mxu0 0.0
        %2598 = vmatprep.subr.mxu0 0.0
        %2599 = vmatpush1.msra.mxu0 0.0
        %2600 = vmatprep.subr.mxu0 0.0
        %2601 = vmatpush1.msra.mxu0 0.0
        %2602 = vmatprep.subr.mxu0 0.0
        %2603 = vmatpush1.msra.mxu0 0.0
        %2604 = vmatprep.mubr.f32.mxu0 0.0
        %v2605 = vand.u32 %v2164, 4294901760
        %2606 = vmatmul.mubr.f32.gmra.mrb[0].mxu0 %v2605
        %v2607 = vpop.f32.mrb[0].mxu0
        %v2608 = vadd.f32 %v2307, %v2607
        %v2609 = vpop.f32.mrb[0].mxu0
        %2610 = vmatprep.mubr.f32.mxu0 0.0
        %v2611 = vand.u32 %v2165, 4294901760
        %2612 = vmatmul.mubr.f32.gmra.mrb[0].mxu0 %v2611
        %v2613 = vpop.f32.mrb[0].mxu0
        %v2614 = vadd.f32 %v2317, %v2613
        %v2615 = vpop.f32.mrb[0].mxu0
        %2616 = vmatprep.mubr.f32.mxu0 0.0
        %v2617 = vand.u32 %v2166, 4294901760
        %2618 = vmatmul.mubr.f32.gmra.mrb[0].mxu0 %v2617
        %v2619 = vpop.f32.mrb[0].mxu0
        %v2620 = vadd.f32 %v2327, %v2619
        %v2621 = vpop.f32.mrb[0].mxu0
        %2622 = vmatprep.mubr.f32.mxu0 0.0
        %v2623 = vand.u32 %v2167, 4294901760
        %2624 = vmatmul.mubr.f32.gmra.mrb[0].mxu0 %v2623
        %v2625 = vpop.f32.mrb[0].mxu0
        %v2626 = vadd.f32 %v2337, %v2625
        %v2627 = vpop.f32.mrb[0].mxu0
        %2628 = vmatprep.mubr.f32.mxu0 0.0
        %v2629 = vand.u32 %v2168, 4294901760
        %2630 = vmatmul.mubr.f32.gmra.mrb[0].mxu0 %v2629
        %v2631 = vpop.f32.mrb[0].mxu0
        %v2632 = vadd.f32 %v2347, %v2631
        %v2633 = vpop.f32.mrb[0].mxu0
        %2634 = vmatprep.mubr.f32.mxu0 0.0
        %v2635 = vand.u32 %v2169, 4294901760
        %2636 = vmatmul.mubr.f32.gmra.mrb[0].mxu0 %v2635
        %v2637 = vpop.f32.mrb[0].mxu0
        %v2638 = vadd.f32 %v2357, %v2637
        %v2639 = vpop.f32.mrb[0].mxu0
        %2640 = vmatprep.mubr.f32.mxu0 0.0
        %v2641 = vand.u32 %v2170, 4294901760
        %2642 = vmatmul.mubr.f32.gmra.mrb[0].mxu0 %v2641
        %v2643 = vpop.f32.mrb[0].mxu0
        %v2644 = vadd.f32 %v2367, %v2643
        %v2645 = vpop.f32.mrb[0].mxu0
        %2646 = vmatprep.mubr.f32.mxu0 0.0
        %v2647 = vand.u32 %v2171, 4294901760
        %2648 = vmatmul.mubr.f32.gmra.mrb[0].mxu0 %v2647
        %v2649 = vpop.f32.mrb[0].mxu0
        %v2650 = vadd.f32 %v2377, %v2649
        %v2651 = vpop.f32.mrb[0].mxu0
        %2652 = vmatprep.mubr.f32.mxu0 0.0
        %v2653 = vand.u32 %v2172, 4294901760
        %2654 = vmatmul.mubr.f32.gmra.mrb[0].mxu0 %v2653
        %v2655 = vpop.f32.mrb[0].mxu0
        %v2656 = vadd.f32 %v2387, %v2655
        %v2657 = vpop.f32.mrb[0].mxu0
        %2658 = vmatprep.mubr.f32.mxu0 0.0
        %v2659 = vand.u32 %v2173, 4294901760
        %2660 = vmatmul.mubr.f32.gmra.mrb[0].mxu0 %v2659
        %v2661 = vpop.f32.mrb[0].mxu0
        %v2662 = vadd.f32 %v2397, %v2661
        %v2663 = vpop.f32.mrb[0].mxu0
        %2664 = vmatprep.mubr.f32.mxu0 0.0
        %v2665 = vand.u32 %v2174, 4294901760
        %2666 = vmatmul.mubr.f32.gmra.mrb[0].mxu0 %v2665
        %v2667 = vpop.f32.mrb[0].mxu0
        %v2668 = vadd.f32 %v2407, %v2667
        %v2669 = vpop.f32.mrb[0].mxu0
        %2670 = vmatprep.mubr.f32.mxu0 0.0
        %v2671 = vand.u32 %v2175, 4294901760
        %2672 = vmatmul.mubr.f32.gmra.mrb[0].mxu0 %v2671
        %v2673 = vpop.f32.mrb[0].mxu0
        %v2674 = vadd.f32 %v2417, %v2673
        %v2675 = vpop.f32.mrb[0].mxu0
        %2676 = vmatprep.mubr.f32.mxu0 0.0
        %v2677 = vand.u32 %v2176, 4294901760
        %2678 = vmatmul.mubr.f32.gmra.mrb[0].mxu0 %v2677
        %v2679 = vpop.f32.mrb[0].mxu0
        %v2680 = vadd.f32 %v2427, %v2679
        %v2681 = vpop.f32.mrb[0].mxu0
        %2682 = vmatprep.mubr.f32.mxu0 0.0
        %v2683 = vand.u32 %v2177, 4294901760
        %2684 = vmatmul.mubr.f32.gmra.mrb[0].mxu0 %v2683
        %v2685 = vpop.f32.mrb[0].mxu0
        %v2686 = vadd.f32 %v2437, %v2685
        %v2687 = vpop.f32.mrb[0].mxu0
        %2688 = vmatprep.mubr.f32.mxu0 0.0
        %v2689 = vand.u32 %v2178, 4294901760
        %2690 = vmatmul.mubr.f32.gmra.mrb[0].mxu0 %v2689
        %v2691 = vpop.f32.mrb[0].mxu0
        %v2692 = vadd.f32 %v2447, %v2691
        %v2693 = vpop.f32.mrb[0].mxu0
        %2694 = vmatprep.mubr.f32.mxu0 0.0
        %v2695 = vand.u32 %v2179, 4294901760
        %2696 = vmatmul.mubr.f32.gmra.mrb[0].mxu0 %v2695
        %v2697 = vpop.f32.mrb[0].mxu0
        %v2698 = vadd.f32 %v2457, %v2697
        %v2699 = vpop.f32.mrb[0].mxu0
        %2700 = vdwg.mxu0
        %2701 = vmatprep.subr.mxu0 0.0
        %v2702 = vand.u32 %v2196, 4294901760
        %v2703 = vsub.f32 %v2196, %v2702
        %2704 = vmatpush1.msra.mxu0 %v2703
        %2705 = vmatprep.subr.mxu0 0.0
        %v2706 = vand.u32 %v2197, 4294901760
        %v2707 = vsub.f32 %v2197, %v2706
        %2708 = vmatpush1.msra.mxu0 %v2707
        %2709 = vmatprep.subr.mxu0 0.0
        %v2710 = vand.u32 %v2198, 4294901760
        %v2711 = vsub.f32 %v2198, %v2710
        %2712 = vmatpush1.msra.mxu0 %v2711
        %2713 = vmatprep.subr.mxu0 0.0
        %v2714 = vand.u32 %v2199, 4294901760
        %v2715 = vsub.f32 %v2199, %v2714
        %2716 = vmatpush1.msra.mxu0 %v2715
        %2717 = vmatprep.subr.mxu0 0.0
        %v2718 = vand.u32 %v2200, 4294901760
        %v2719 = vsub.f32 %v2200, %v2718
        %2720 = vmatpush1.msra.mxu0 %v2719
        %2721 = vmatprep.subr.mxu0 0.0
        %v2722 = vand.u32 %v2201, 4294901760
        %v2723 = vsub.f32 %v2201, %v2722
        %2724 = vmatpush1.msra.mxu0 %v2723
        %2725 = vmatprep.subr.mxu0 0.0
        %v2726 = vand.u32 %v2202, 4294901760
        %v2727 = vsub.f32 %v2202, %v2726
        %2728 = vmatpush1.msra.mxu0 %v2727
        %2729 = vmatprep.subr.mxu0 0.0
        %v2730 = vand.u32 %v2203, 4294901760
        %v2731 = vsub.f32 %v2203, %v2730
        %2732 = vmatpush1.msra.mxu0 %v2731
        %2733 = vmatprep.subr.mxu0 0.0
        %v2734 = vand.u32 %v2204, 4294901760
        %v2735 = vsub.f32 %v2204, %v2734
        %2736 = vmatpush1.msra.mxu0 %v2735
        %2737 = vmatprep.subr.mxu0 0.0
        %v2738 = vand.u32 %v2205, 4294901760
        %v2739 = vsub.f32 %v2205, %v2738
        %2740 = vmatpush1.msra.mxu0 %v2739
        %2741 = vmatprep.subr.mxu0 0.0
        %v2742 = vand.u32 %v2206, 4294901760
        %v2743 = vsub.f32 %v2206, %v2742
        %2744 = vmatpush1.msra.mxu0 %v2743
        %2745 = vmatprep.subr.mxu0 0.0
        %v2746 = vand.u32 %v2207, 4294901760
        %v2747 = vsub.f32 %v2207, %v2746
        %2748 = vmatpush1.msra.mxu0 %v2747
        %2749 = vmatprep.subr.mxu0 0.0
        %v2750 = vand.u32 %v2208, 4294901760
        %v2751 = vsub.f32 %v2208, %v2750
        %2752 = vmatpush1.msra.mxu0 %v2751
        %2753 = vmatprep.subr.mxu0 0.0
        %v2754 = vand.u32 %v2209, 4294901760
        %v2755 = vsub.f32 %v2209, %v2754
        %2756 = vmatpush1.msra.mxu0 %v2755
        %2757 = vmatprep.subr.mxu0 0.0
        %v2758 = vand.u32 %v2210, 4294901760
        %v2759 = vsub.f32 %v2210, %v2758
        %2760 = vmatpush1.msra.mxu0 %v2759
        %2761 = vmatprep.subr.mxu0 0.0
        %v2762 = vand.u32 %v2211, 4294901760
        %v2763 = vsub.f32 %v2211, %v2762
        %2764 = vmatpush1.msra.mxu0 %v2763
        %2765 = vmatprep.subr.mxu0 0.0
        %2766 = vmatpush1.msra.mxu0 0.0
        %2767 = vmatprep.subr.mxu0 0.0
        %2768 = vmatpush1.msra.mxu0 0.0
        %2769 = vmatprep.subr.mxu0 0.0
        %2770 = vmatpush1.msra.mxu0 0.0
        %2771 = vmatprep.subr.mxu0 0.0
        %2772 = vmatpush1.msra.mxu0 0.0
        %2773 = vmatprep.subr.mxu0 0.0
        %2774 = vmatpush1.msra.mxu0 0.0
        %2775 = vmatprep.subr.mxu0 0.0
        %2776 = vmatpush1.msra.mxu0 0.0
        %2777 = vmatprep.subr.mxu0 0.0
        %2778 = vmatpush1.msra.mxu0 0.0
        %2779 = vmatprep.subr.mxu0 0.0
        %2780 = vmatpush1.msra.mxu0 0.0
        %2781 = vmatprep.subr.mxu0 0.0
        %2782 = vmatpush1.msra.mxu0 0.0
        %2783 = vmatprep.subr.mxu0 0.0
        %2784 = vmatpush1.msra.mxu0 0.0
        %2785 = vmatprep.subr.mxu0 0.0
        %2786 = vmatpush1.msra.mxu0 0.0
        %2787 = vmatprep.subr.mxu0 0.0
        %2788 = vmatpush1.msra.mxu0 0.0
        %2789 = vmatprep.subr.mxu0 0.0
        %2790 = vmatpush1.msra.mxu0 0.0
        %2791 = vmatprep.subr.mxu0 0.0
        %2792 = vmatpush1.msra.mxu0 0.0
        %2793 = vmatprep.subr.mxu0 0.0
        %2794 = vmatpush1.msra.mxu0 0.0
        %2795 = vmatprep.subr.mxu0 0.0
        %2796 = vmatpush1.msra.mxu0 0.0
        %2797 = vmatprep.mubr.f32.mxu0 0.0
        %v2798 = vand.u32 %v2164, 4294901760
        %v2799 = vsub.f32 %v2164, %v2798
        %2800 = vmatmul.mubr.f32.gmra.mrb[0].mxu0 %v2799
        %v2801 = vpop.f32.mrb[0].mxu0
        %v2802 = vadd.f32 %v2608, %v2801
        %v2803 = vpop.f32.mrb[0].mxu0
        %2804 = vmatprep.mubr.f32.mxu0 0.0
        %v2805 = vand.u32 %v2165, 4294901760
        %v2806 = vsub.f32 %v2165, %v2805
        %2807 = vmatmul.mubr.f32.gmra.mrb[0].mxu0 %v2806
        %v2808 = vpop.f32.mrb[0].mxu0
        %v2809 = vadd.f32 %v2614, %v2808
        %v2810 = vpop.f32.mrb[0].mxu0
        %2811 = vmatprep.mubr.f32.mxu0 0.0
        %v2812 = vand.u32 %v2166, 4294901760
        %v2813 = vsub.f32 %v2166, %v2812
        %2814 = vmatmul.mubr.f32.gmra.mrb[0].mxu0 %v2813
        %v2815 = vpop.f32.mrb[0].mxu0
        %v2816 = vadd.f32 %v2620, %v2815
        %v2817 = vpop.f32.mrb[0].mxu0
        %2818 = vmatprep.mubr.f32.mxu0 0.0
        %v2819 = vand.u32 %v2167, 4294901760
        %v2820 = vsub.f32 %v2167, %v2819
        %2821 = vmatmul.mubr.f32.gmra.mrb[0].mxu0 %v2820
        %v2822 = vpop.f32.mrb[0].mxu0
        %v2823 = vadd.f32 %v2626, %v2822
        %v2824 = vpop.f32.mrb[0].mxu0
        %2825 = vmatprep.mubr.f32.mxu0 0.0
        %v2826 = vand.u32 %v2168, 4294901760
        %v2827 = vsub.f32 %v2168, %v2826
        %2828 = vmatmul.mubr.f32.gmra.mrb[0].mxu0 %v2827
        %v2829 = vpop.f32.mrb[0].mxu0
        %v2830 = vadd.f32 %v2632, %v2829
        %v2831 = vpop.f32.mrb[0].mxu0
        %2832 = vmatprep.mubr.f32.mxu0 0.0
        %v2833 = vand.u32 %v2169, 4294901760
        %v2834 = vsub.f32 %v2169, %v2833
        %2835 = vmatmul.mubr.f32.gmra.mrb[0].mxu0 %v2834
        %v2836 = vpop.f32.mrb[0].mxu0
        %v2837 = vadd.f32 %v2638, %v2836
        %v2838 = vpop.f32.mrb[0].mxu0
        %2839 = vmatprep.mubr.f32.mxu0 0.0
        %v2840 = vand.u32 %v2170, 4294901760
        %v2841 = vsub.f32 %v2170, %v2840
        %2842 = vmatmul.mubr.f32.gmra.mrb[0].mxu0 %v2841
        %v2843 = vpop.f32.mrb[0].mxu0
        %v2844 = vadd.f32 %v2644, %v2843
        %v2845 = vpop.f32.mrb[0].mxu0
        %2846 = vmatprep.mubr.f32.mxu0 0.0
        %v2847 = vand.u32 %v2171, 4294901760
        %v2848 = vsub.f32 %v2171, %v2847
        %2849 = vmatmul.mubr.f32.gmra.mrb[0].mxu0 %v2848
        %v2850 = vpop.f32.mrb[0].mxu0
        %v2851 = vadd.f32 %v2650, %v2850
        %v2852 = vpop.f32.mrb[0].mxu0
        %2853 = vmatprep.mubr.f32.mxu0 0.0
        %v2854 = vand.u32 %v2172, 4294901760
        %v2855 = vsub.f32 %v2172, %v2854
        %2856 = vmatmul.mubr.f32.gmra.mrb[0].mxu0 %v2855
        %v2857 = vpop.f32.mrb[0].mxu0
        %v2858 = vadd.f32 %v2656, %v2857
        %v2859 = vpop.f32.mrb[0].mxu0
        %2860 = vmatprep.mubr.f32.mxu0 0.0
        %v2861 = vand.u32 %v2173, 4294901760
        %v2862 = vsub.f32 %v2173, %v2861
        %2863 = vmatmul.mubr.f32.gmra.mrb[0].mxu0 %v2862
        %v2864 = vpop.f32.mrb[0].mxu0
        %v2865 = vadd.f32 %v2662, %v2864
        %v2866 = vpop.f32.mrb[0].mxu0
        %2867 = vmatprep.mubr.f32.mxu0 0.0
        %v2868 = vand.u32 %v2174, 4294901760
        %v2869 = vsub.f32 %v2174, %v2868
        %2870 = vmatmul.mubr.f32.gmra.mrb[0].mxu0 %v2869
        %v2871 = vpop.f32.mrb[0].mxu0
        %v2872 = vadd.f32 %v2668, %v2871
        %v2873 = vpop.f32.mrb[0].mxu0
        %2874 = vmatprep.mubr.f32.mxu0 0.0
        %v2875 = vand.u32 %v2175, 4294901760
        %v2876 = vsub.f32 %v2175, %v2875
        %2877 = vmatmul.mubr.f32.gmra.mrb[0].mxu0 %v2876
        %v2878 = vpop.f32.mrb[0].mxu0
        %v2879 = vadd.f32 %v2674, %v2878
        %v2880 = vpop.f32.mrb[0].mxu0
        %2881 = vmatprep.mubr.f32.mxu0 0.0
        %v2882 = vand.u32 %v2176, 4294901760
        %v2883 = vsub.f32 %v2176, %v2882
        %2884 = vmatmul.mubr.f32.gmra.mrb[0].mxu0 %v2883
        %v2885 = vpop.f32.mrb[0].mxu0
        %v2886 = vadd.f32 %v2680, %v2885
        %v2887 = vpop.f32.mrb[0].mxu0
        %2888 = vmatprep.mubr.f32.mxu0 0.0
        %v2889 = vand.u32 %v2177, 4294901760
        %v2890 = vsub.f32 %v2177, %v2889
        %2891 = vmatmul.mubr.f32.gmra.mrb[0].mxu0 %v2890
        %v2892 = vpop.f32.mrb[0].mxu0
        %v2893 = vadd.f32 %v2686, %v2892
        %v2894 = vpop.f32.mrb[0].mxu0
        %2895 = vmatprep.mubr.f32.mxu0 0.0
        %v2896 = vand.u32 %v2178, 4294901760
        %v2897 = vsub.f32 %v2178, %v2896
        %2898 = vmatmul.mubr.f32.gmra.mrb[0].mxu0 %v2897
        %v2899 = vpop.f32.mrb[0].mxu0
        %v2900 = vadd.f32 %v2692, %v2899
        %v2901 = vpop.f32.mrb[0].mxu0
        %2902 = vmatprep.mubr.f32.mxu0 0.0
        %v2903 = vand.u32 %v2179, 4294901760
        %v2904 = vsub.f32 %v2179, %v2903
        %2905 = vmatmul.mubr.f32.gmra.mrb[0].mxu0 %v2904
        %v2906 = vpop.f32.mrb[0].mxu0
        %v2907 = vadd.f32 %v2698, %v2906
        %v2908 = vpop.f32.mrb[0].mxu0
        %2909 = vdwg.mxu0
        %2910 = vmatprep.subr.mxu0 0.0
        %v2911 = vand.u32 %v2196, 4294901760
        %2912 = vmatpush1.msra.mxu0 %v2911
        %2913 = vmatprep.subr.mxu0 0.0
        %v2914 = vand.u32 %v2197, 4294901760
        %2915 = vmatpush1.msra.mxu0 %v2914
        %2916 = vmatprep.subr.mxu0 0.0
        %v2917 = vand.u32 %v2198, 4294901760
        %2918 = vmatpush1.msra.mxu0 %v2917
        %2919 = vmatprep.subr.mxu0 0.0
        %v2920 = vand.u32 %v2199, 4294901760
        %2921 = vmatpush1.msra.mxu0 %v2920
        %2922 = vmatprep.subr.mxu0 0.0
        %v2923 = vand.u32 %v2200, 4294901760
        %2924 = vmatpush1.msra.mxu0 %v2923
        %2925 = vmatprep.subr.mxu0 0.0
        %v2926 = vand.u32 %v2201, 4294901760
        %2927 = vmatpush1.msra.mxu0 %v2926
        %2928 = vmatprep.subr.mxu0 0.0
        %v2929 = vand.u32 %v2202, 4294901760
        %2930 = vmatpush1.msra.mxu0 %v2929
        %2931 = vmatprep.subr.mxu0 0.0
        %v2932 = vand.u32 %v2203, 4294901760
        %2933 = vmatpush1.msra.mxu0 %v2932
        %2934 = vmatprep.subr.mxu0 0.0
        %v2935 = vand.u32 %v2204, 4294901760
        %2936 = vmatpush1.msra.mxu0 %v2935
        %2937 = vmatprep.subr.mxu0 0.0
        %v2938 = vand.u32 %v2205, 4294901760
        %2939 = vmatpush1.msra.mxu0 %v2938
        %2940 = vmatprep.subr.mxu0 0.0
        %v2941 = vand.u32 %v2206, 4294901760
        %2942 = vmatpush1.msra.mxu0 %v2941
        %2943 = vmatprep.subr.mxu0 0.0
        %v2944 = vand.u32 %v2207, 4294901760
        %2945 = vmatpush1.msra.mxu0 %v2944
        %2946 = vmatprep.subr.mxu0 0.0
        %v2947 = vand.u32 %v2208, 4294901760
        %2948 = vmatpush1.msra.mxu0 %v2947
        %2949 = vmatprep.subr.mxu0 0.0
        %v2950 = vand.u32 %v2209, 4294901760
        %2951 = vmatpush1.msra.mxu0 %v2950
        %2952 = vmatprep.subr.mxu0 0.0
        %v2953 = vand.u32 %v2210, 4294901760
        %2954 = vmatpush1.msra.mxu0 %v2953
        %2955 = vmatprep.subr.mxu0 0.0
        %v2956 = vand.u32 %v2211, 4294901760
        %2957 = vmatpush1.msra.mxu0 %v2956
        %2958 = vmatprep.subr.mxu0 0.0
        %2959 = vmatpush1.msra.mxu0 0.0
        %2960 = vmatprep.subr.mxu0 0.0
        %2961 = vmatpush1.msra.mxu0 0.0
        %2962 = vmatprep.subr.mxu0 0.0
        %2963 = vmatpush1.msra.mxu0 0.0
        %2964 = vmatprep.subr.mxu0 0.0
        %2965 = vmatpush1.msra.mxu0 0.0
        %2966 = vmatprep.subr.mxu0 0.0
        %2967 = vmatpush1.msra.mxu0 0.0
        %2968 = vmatprep.subr.mxu0 0.0
        %2969 = vmatpush1.msra.mxu0 0.0
        %2970 = vmatprep.subr.mxu0 0.0
        %2971 = vmatpush1.msra.mxu0 0.0
        %2972 = vmatprep.subr.mxu0 0.0
        %2973 = vmatpush1.msra.mxu0 0.0
        %2974 = vmatprep.subr.mxu0 0.0
        %2975 = vmatpush1.msra.mxu0 0.0
        %2976 = vmatprep.subr.mxu0 0.0
        %2977 = vmatpush1.msra.mxu0 0.0
        %2978 = vmatprep.subr.mxu0 0.0
        %2979 = vmatpush1.msra.mxu0 0.0
        %2980 = vmatprep.subr.mxu0 0.0
        %2981 = vmatpush1.msra.mxu0 0.0
        %2982 = vmatprep.subr.mxu0 0.0
        %2983 = vmatpush1.msra.mxu0 0.0
        %2984 = vmatprep.subr.mxu0 0.0
        %2985 = vmatpush1.msra.mxu0 0.0
        %2986 = vmatprep.subr.mxu0 0.0
        %2987 = vmatpush1.msra.mxu0 0.0
        %2988 = vmatprep.subr.mxu0 0.0
        %2989 = vmatpush1.msra.mxu0 0.0
        %2990 = vmatprep.mubr.f32.mxu0 0.0
        %v2991 = vand.u32 %v2164, 4294901760
        %v2992 = vsub.f32 %v2164, %v2991
        %v2993 = vand.u32 %v2992, 4294901760
        %2994 = vmatmul.mubr.f32.gmra.mrb[0].mxu0 %v2993
        %v2995 = vpop.f32.mrb[0].mxu0
        %v2996 = vadd.f32 %v2802, %v2995
        %v2997 = vpop.f32.mrb[0].mxu0
        %2998 = vmatprep.mubr.f32.mxu0 0.0
        %v2999 = vand.u32 %v2165, 4294901760
        %v3000 = vsub.f32 %v2165, %v2999
        %v3001 = vand.u32 %v3000, 4294901760
        %3002 = vmatmul.mubr.f32.gmra.mrb[0].mxu0 %v3001
        %v3003 = vpop.f32.mrb[0].mxu0
        %v3004 = vadd.f32 %v2809, %v3003
        %v3005 = vpop.f32.mrb[0].mxu0
        %3006 = vmatprep.mubr.f32.mxu0 0.0
        %v3007 = vand.u32 %v2166, 4294901760
        %v3008 = vsub.f32 %v2166, %v3007
        %v3009 = vand.u32 %v3008, 4294901760
        %3010 = vmatmul.mubr.f32.gmra.mrb[0].mxu0 %v3009
        %v3011 = vpop.f32.mrb[0].mxu0
        %v3012 = vadd.f32 %v2816, %v3011
        %v3013 = vpop.f32.mrb[0].mxu0
        %3014 = vmatprep.mubr.f32.mxu0 0.0
        %v3015 = vand.u32 %v2167, 4294901760
        %v3016 = vsub.f32 %v2167, %v3015
        %v3017 = vand.u32 %v3016, 4294901760
        %3018 = vmatmul.mubr.f32.gmra.mrb[0].mxu0 %v3017
        %v3019 = vpop.f32.mrb[0].mxu0
        %v3020 = vadd.f32 %v2823, %v3019
        %v3021 = vpop.f32.mrb[0].mxu0
        %3022 = vmatprep.mubr.f32.mxu0 0.0
        %v3023 = vand.u32 %v2168, 4294901760
        %v3024 = vsub.f32 %v2168, %v3023
        %v3025 = vand.u32 %v3024, 4294901760
        %3026 = vmatmul.mubr.f32.gmra.mrb[0].mxu0 %v3025
        %v3027 = vpop.f32.mrb[0].mxu0
        %v3028 = vadd.f32 %v2830, %v3027
        %v3029 = vpop.f32.mrb[0].mxu0
        %3030 = vmatprep.mubr.f32.mxu0 0.0
        %v3031 = vand.u32 %v2169, 4294901760
        %v3032 = vsub.f32 %v2169, %v3031
        %v3033 = vand.u32 %v3032, 4294901760
        %3034 = vmatmul.mubr.f32.gmra.mrb[0].mxu0 %v3033
        %v3035 = vpop.f32.mrb[0].mxu0
        %v3036 = vadd.f32 %v2837, %v3035
        %v3037 = vpop.f32.mrb[0].mxu0
        %3038 = vmatprep.mubr.f32.mxu0 0.0
        %v3039 = vand.u32 %v2170, 4294901760
        %v3040 = vsub.f32 %v2170, %v3039
        %v3041 = vand.u32 %v3040, 4294901760
        %3042 = vmatmul.mubr.f32.gmra.mrb[0].mxu0 %v3041
        %v3043 = vpop.f32.mrb[0].mxu0
        %v3044 = vadd.f32 %v2844, %v3043
        %v3045 = vpop.f32.mrb[0].mxu0
        %3046 = vmatprep.mubr.f32.mxu0 0.0
        %v3047 = vand.u32 %v2171, 4294901760
        %v3048 = vsub.f32 %v2171, %v3047
        %v3049 = vand.u32 %v3048, 4294901760
        %3050 = vmatmul.mubr.f32.gmra.mrb[0].mxu0 %v3049
        %v3051 = vpop.f32.mrb[0].mxu0
        %v3052 = vadd.f32 %v2851, %v3051
        %v3053 = vpop.f32.mrb[0].mxu0
        %3054 = vmatprep.mubr.f32.mxu0 0.0
        %v3055 = vand.u32 %v2172, 4294901760
        %v3056 = vsub.f32 %v2172, %v3055
        %v3057 = vand.u32 %v3056, 4294901760
        %3058 = vmatmul.mubr.f32.gmra.mrb[0].mxu0 %v3057
        %v3059 = vpop.f32.mrb[0].mxu0
        %v3060 = vadd.f32 %v2858, %v3059
        %v3061 = vpop.f32.mrb[0].mxu0
        %3062 = vmatprep.mubr.f32.mxu0 0.0
        %v3063 = vand.u32 %v2173, 4294901760
        %v3064 = vsub.f32 %v2173, %v3063
        %v3065 = vand.u32 %v3064, 4294901760
        %3066 = vmatmul.mubr.f32.gmra.mrb[0].mxu0 %v3065
        %v3067 = vpop.f32.mrb[0].mxu0
        %v3068 = vadd.f32 %v2865, %v3067
        %v3069 = vpop.f32.mrb[0].mxu0
        %3070 = vmatprep.mubr.f32.mxu0 0.0
        %v3071 = vand.u32 %v2174, 4294901760
        %v3072 = vsub.f32 %v2174, %v3071
        %v3073 = vand.u32 %v3072, 4294901760
        %3074 = vmatmul.mubr.f32.gmra.mrb[0].mxu0 %v3073
        %v3075 = vpop.f32.mrb[0].mxu0
        %v3076 = vadd.f32 %v2872, %v3075
        %v3077 = vpop.f32.mrb[0].mxu0
        %3078 = vmatprep.mubr.f32.mxu0 0.0
        %v3079 = vand.u32 %v2175, 4294901760
        %v3080 = vsub.f32 %v2175, %v3079
        %v3081 = vand.u32 %v3080, 4294901760
        %3082 = vmatmul.mubr.f32.gmra.mrb[0].mxu0 %v3081
        %v3083 = vpop.f32.mrb[0].mxu0
        %v3084 = vadd.f32 %v2879, %v3083
        %v3085 = vpop.f32.mrb[0].mxu0
        %3086 = vmatprep.mubr.f32.mxu0 0.0
        %v3087 = vand.u32 %v2176, 4294901760
        %v3088 = vsub.f32 %v2176, %v3087
        %v3089 = vand.u32 %v3088, 4294901760
        %3090 = vmatmul.mubr.f32.gmra.mrb[0].mxu0 %v3089
        %v3091 = vpop.f32.mrb[0].mxu0
        %v3092 = vadd.f32 %v2886, %v3091
        %v3093 = vpop.f32.mrb[0].mxu0
        %3094 = vmatprep.mubr.f32.mxu0 0.0
        %v3095 = vand.u32 %v2177, 4294901760
        %v3096 = vsub.f32 %v2177, %v3095
        %v3097 = vand.u32 %v3096, 4294901760
        %3098 = vmatmul.mubr.f32.gmra.mrb[0].mxu0 %v3097
        %v3099 = vpop.f32.mrb[0].mxu0
        %v3100 = vadd.f32 %v2893, %v3099
        %v3101 = vpop.f32.mrb[0].mxu0
        %3102 = vmatprep.mubr.f32.mxu0 0.0
        %v3103 = vand.u32 %v2178, 4294901760
        %v3104 = vsub.f32 %v2178, %v3103
        %v3105 = vand.u32 %v3104, 4294901760
        %3106 = vmatmul.mubr.f32.gmra.mrb[0].mxu0 %v3105
        %v3107 = vpop.f32.mrb[0].mxu0
        %v3108 = vadd.f32 %v2900, %v3107
        %v3109 = vpop.f32.mrb[0].mxu0
        %3110 = vmatprep.mubr.f32.mxu0 0.0
        %v3111 = vand.u32 %v2179, 4294901760
        %v3112 = vsub.f32 %v2179, %v3111
        %v3113 = vand.u32 %v3112, 4294901760
        %3114 = vmatmul.mubr.f32.gmra.mrb[0].mxu0 %v3113
        %v3115 = vpop.f32.mrb[0].mxu0
        %v3116 = vadd.f32 %v2907, %v3115
        %v3117 = vpop.f32.mrb[0].mxu0
        %3118 = vdwg.mxu0
        %3119 = vmatprep.subr.mxu0 0.0
        %v3120 = vand.u32 %v2196, 4294901760
        %v3121 = vsub.f32 %v2196, %v3120
        %v3122 = vand.u32 %v3121, 4294901760
        %3123 = vmatpush1.msra.mxu0 %v3122
        %3124 = vmatprep.subr.mxu0 0.0
        %v3125 = vand.u32 %v2197, 4294901760
        %v3126 = vsub.f32 %v2197, %v3125
        %v3127 = vand.u32 %v3126, 4294901760
        %3128 = vmatpush1.msra.mxu0 %v3127
        %3129 = vmatprep.subr.mxu0 0.0
        %v3130 = vand.u32 %v2198, 4294901760
        %v3131 = vsub.f32 %v2198, %v3130
        %v3132 = vand.u32 %v3131, 4294901760
        %3133 = vmatpush1.msra.mxu0 %v3132
        %3134 = vmatprep.subr.mxu0 0.0
        %v3135 = vand.u32 %v2199, 4294901760
        %v3136 = vsub.f32 %v2199, %v3135
        %v3137 = vand.u32 %v3136, 4294901760
        %3138 = vmatpush1.msra.mxu0 %v3137
        %3139 = vmatprep.subr.mxu0 0.0
        %v3140 = vand.u32 %v2200, 4294901760
        %v3141 = vsub.f32 %v2200, %v3140
        %v3142 = vand.u32 %v3141, 4294901760
        %3143 = vmatpush1.msra.mxu0 %v3142
        %3144 = vmatprep.subr.mxu0 0.0
        %v3145 = vand.u32 %v2201, 4294901760
        %v3146 = vsub.f32 %v2201, %v3145
        %v3147 = vand.u32 %v3146, 4294901760
        %3148 = vmatpush1.msra.mxu0 %v3147
        %3149 = vmatprep.subr.mxu0 0.0
        %v3150 = vand.u32 %v2202, 4294901760
        %v3151 = vsub.f32 %v2202, %v3150
        %v3152 = vand.u32 %v3151, 4294901760
        %3153 = vmatpush1.msra.mxu0 %v3152
        %3154 = vmatprep.subr.mxu0 0.0
        %v3155 = vand.u32 %v2203, 4294901760
        %v3156 = vsub.f32 %v2203, %v3155
        %v3157 = vand.u32 %v3156, 4294901760
        %3158 = vmatpush1.msra.mxu0 %v3157
        %3159 = vmatprep.subr.mxu0 0.0
        %v3160 = vand.u32 %v2204, 4294901760
        %v3161 = vsub.f32 %v2204, %v3160
        %v3162 = vand.u32 %v3161, 4294901760
        %3163 = vmatpush1.msra.mxu0 %v3162
        %3164 = vmatprep.subr.mxu0 0.0
        %v3165 = vand.u32 %v2205, 4294901760
        %v3166 = vsub.f32 %v2205, %v3165
        %v3167 = vand.u32 %v3166, 4294901760
        %3168 = vmatpush1.msra.mxu0 %v3167
        %3169 = vmatprep.subr.mxu0 0.0
        %v3170 = vand.u32 %v2206, 4294901760
        %v3171 = vsub.f32 %v2206, %v3170
        %v3172 = vand.u32 %v3171, 4294901760
        %3173 = vmatpush1.msra.mxu0 %v3172
        %3174 = vmatprep.subr.mxu0 0.0
        %v3175 = vand.u32 %v2207, 4294901760
        %v3176 = vsub.f32 %v2207, %v3175
        %v3177 = vand.u32 %v3176, 4294901760
        %3178 = vmatpush1.msra.mxu0 %v3177
        %3179 = vmatprep.subr.mxu0 0.0
        %v3180 = vand.u32 %v2208, 4294901760
        %v3181 = vsub.f32 %v2208, %v3180
        %v3182 = vand.u32 %v3181, 4294901760
        %3183 = vmatpush1.msra.mxu0 %v3182
        %3184 = vmatprep.subr.mxu0 0.0
        %v3185 = vand.u32 %v2209, 4294901760
        %v3186 = vsub.f32 %v2209, %v3185
        %v3187 = vand.u32 %v3186, 4294901760
        %3188 = vmatpush1.msra.mxu0 %v3187
        %3189 = vmatprep.subr.mxu0 0.0
        %v3190 = vand.u32 %v2210, 4294901760
        %v3191 = vsub.f32 %v2210, %v3190
        %v3192 = vand.u32 %v3191, 4294901760
        %3193 = vmatpush1.msra.mxu0 %v3192
        %3194 = vmatprep.subr.mxu0 0.0
        %v3195 = vand.u32 %v2211, 4294901760
        %v3196 = vsub.f32 %v2211, %v3195
        %v3197 = vand.u32 %v3196, 4294901760
        %3198 = vmatpush1.msra.mxu0 %v3197
        %3199 = vmatprep.subr.mxu0 0.0
        %3200 = vmatpush1.msra.mxu0 0.0
        %3201 = vmatprep.subr.mxu0 0.0
        %3202 = vmatpush1.msra.mxu0 0.0
        %3203 = vmatprep.subr.mxu0 0.0
        %3204 = vmatpush1.msra.mxu0 0.0
        %3205 = vmatprep.subr.mxu0 0.0
        %3206 = vmatpush1.msra.mxu0 0.0
        %3207 = vmatprep.subr.mxu0 0.0
        %3208 = vmatpush1.msra.mxu0 0.0
        %3209 = vmatprep.subr.mxu0 0.0
        %3210 = vmatpush1.msra.mxu0 0.0
        %3211 = vmatprep.subr.mxu0 0.0
        %3212 = vmatpush1.msra.mxu0 0.0
        %3213 = vmatprep.subr.mxu0 0.0
        %3214 = vmatpush1.msra.mxu0 0.0
        %3215 = vmatprep.subr.mxu0 0.0
        %3216 = vmatpush1.msra.mxu0 0.0
        %3217 = vmatprep.subr.mxu0 0.0
        %3218 = vmatpush1.msra.mxu0 0.0
        %3219 = vmatprep.subr.mxu0 0.0
        %3220 = vmatpush1.msra.mxu0 0.0
        %3221 = vmatprep.subr.mxu0 0.0
        %3222 = vmatpush1.msra.mxu0 0.0
        %3223 = vmatprep.subr.mxu0 0.0
        %3224 = vmatpush1.msra.mxu0 0.0
        %3225 = vmatprep.subr.mxu0 0.0
        %3226 = vmatpush1.msra.mxu0 0.0
        %3227 = vmatprep.subr.mxu0 0.0
        %3228 = vmatpush1.msra.mxu0 0.0
        %3229 = vmatprep.subr.mxu0 0.0
        %3230 = vmatpush1.msra.mxu0 0.0
        %3231 = vmatprep.mubr.f32.mxu0 0.0
        %v3232 = vand.u32 %v2164, 4294901760
        %3233 = vmatmul.mubr.f32.gmra.mrb[0].mxu0 %v3232
        %v3234 = vpop.f32.mrb[0].mxu0
        %v3235 = vadd.f32 %v2996, %v3234
        %v3236 = vpop.f32.mrb[0].mxu0
        %3237 = vmatprep.mubr.f32.mxu0 0.0
        %v3238 = vand.u32 %v2165, 4294901760
        %3239 = vmatmul.mubr.f32.gmra.mrb[0].mxu0 %v3238
        %v3240 = vpop.f32.mrb[0].mxu0
        %v3241 = vadd.f32 %v3004, %v3240
        %v3242 = vpop.f32.mrb[0].mxu0
        %3243 = vmatprep.mubr.f32.mxu0 0.0
        %v3244 = vand.u32 %v2166, 4294901760
        %3245 = vmatmul.mubr.f32.gmra.mrb[0].mxu0 %v3244
        %v3246 = vpop.f32.mrb[0].mxu0
        %v3247 = vadd.f32 %v3012, %v3246
        %v3248 = vpop.f32.mrb[0].mxu0
        %3249 = vmatprep.mubr.f32.mxu0 0.0
        %v3250 = vand.u32 %v2167, 4294901760
        %3251 = vmatmul.mubr.f32.gmra.mrb[0].mxu0 %v3250
        %v3252 = vpop.f32.mrb[0].mxu0
        %v3253 = vadd.f32 %v3020, %v3252
        %v3254 = vpop.f32.mrb[0].mxu0
        %3255 = vmatprep.mubr.f32.mxu0 0.0
        %v3256 = vand.u32 %v2168, 4294901760
        %3257 = vmatmul.mubr.f32.gmra.mrb[0].mxu0 %v3256
        %v3258 = vpop.f32.mrb[0].mxu0
        %v3259 = vadd.f32 %v3028, %v3258
        %v3260 = vpop.f32.mrb[0].mxu0
        %3261 = vmatprep.mubr.f32.mxu0 0.0
        %v3262 = vand.u32 %v2169, 4294901760
        %3263 = vmatmul.mubr.f32.gmra.mrb[0].mxu0 %v3262
        %v3264 = vpop.f32.mrb[0].mxu0
        %v3265 = vadd.f32 %v3036, %v3264
        %v3266 = vpop.f32.mrb[0].mxu0
        %3267 = vmatprep.mubr.f32.mxu0 0.0
        %v3268 = vand.u32 %v2170, 4294901760
        %3269 = vmatmul.mubr.f32.gmra.mrb[0].mxu0 %v3268
        %v3270 = vpop.f32.mrb[0].mxu0
        %v3271 = vadd.f32 %v3044, %v3270
        %v3272 = vpop.f32.mrb[0].mxu0
        %3273 = vmatprep.mubr.f32.mxu0 0.0
        %v3274 = vand.u32 %v2171, 4294901760
        %3275 = vmatmul.mubr.f32.gmra.mrb[0].mxu0 %v3274
        %v3276 = vpop.f32.mrb[0].mxu0
        %v3277 = vadd.f32 %v3052, %v3276
        %v3278 = vpop.f32.mrb[0].mxu0
        %3279 = vmatprep.mubr.f32.mxu0 0.0
        %v3280 = vand.u32 %v2172, 4294901760
        %3281 = vmatmul.mubr.f32.gmra.mrb[0].mxu0 %v3280
        %v3282 = vpop.f32.mrb[0].mxu0
        %v3283 = vadd.f32 %v3060, %v3282
        %v3284 = vpop.f32.mrb[0].mxu0
        %3285 = vmatprep.mubr.f32.mxu0 0.0
        %v3286 = vand.u32 %v2173, 4294901760
        %3287 = vmatmul.mubr.f32.gmra.mrb[0].mxu0 %v3286
        %v3288 = vpop.f32.mrb[0].mxu0
        %v3289 = vadd.f32 %v3068, %v3288
        %v3290 = vpop.f32.mrb[0].mxu0
        %3291 = vmatprep.mubr.f32.mxu0 0.0
        %v3292 = vand.u32 %v2174, 4294901760
        %3293 = vmatmul.mubr.f32.gmra.mrb[0].mxu0 %v3292
        %v3294 = vpop.f32.mrb[0].mxu0
        %v3295 = vadd.f32 %v3076, %v3294
        %v3296 = vpop.f32.mrb[0].mxu0
        %3297 = vmatprep.mubr.f32.mxu0 0.0
        %v3298 = vand.u32 %v2175, 4294901760
        %3299 = vmatmul.mubr.f32.gmra.mrb[0].mxu0 %v3298
        %v3300 = vpop.f32.mrb[0].mxu0
        %v3301 = vadd.f32 %v3084, %v3300
        %v3302 = vpop.f32.mrb[0].mxu0
        %3303 = vmatprep.mubr.f32.mxu0 0.0
        %v3304 = vand.u32 %v2176, 4294901760
        %3305 = vmatmul.mubr.f32.gmra.mrb[0].mxu0 %v3304
        %v3306 = vpop.f32.mrb[0].mxu0
        %v3307 = vadd.f32 %v3092, %v3306
        %v3308 = vpop.f32.mrb[0].mxu0
        %3309 = vmatprep.mubr.f32.mxu0 0.0
        %v3310 = vand.u32 %v2177, 4294901760
        %3311 = vmatmul.mubr.f32.gmra.mrb[0].mxu0 %v3310
        %v3312 = vpop.f32.mrb[0].mxu0
        %v3313 = vadd.f32 %v3100, %v3312
        %v3314 = vpop.f32.mrb[0].mxu0
        %3315 = vmatprep.mubr.f32.mxu0 0.0
        %v3316 = vand.u32 %v2178, 4294901760
        %3317 = vmatmul.mubr.f32.gmra.mrb[0].mxu0 %v3316
        %v3318 = vpop.f32.mrb[0].mxu0
        %v3319 = vadd.f32 %v3108, %v3318
        %v3320 = vpop.f32.mrb[0].mxu0
        %3321 = vmatprep.mubr.f32.mxu0 0.0
        %v3322 = vand.u32 %v2179, 4294901760
        %3323 = vmatmul.mubr.f32.gmra.mrb[0].mxu0 %v3322
        %v3324 = vpop.f32.mrb[0].mxu0
        %v3325 = vadd.f32 %v3116, %v3324
        %v3326 = vpop.f32.mrb[0].mxu0
        %3327 = vdwg.mxu0
        %3328 = vmatprep.subr.mxu0 0.0
        %v3329 = vand.u32 %v2196, 4294901760
        %3330 = vmatpush1.msra.mxu0 %v3329
        %3331 = vmatprep.subr.mxu0 0.0
        %v3332 = vand.u32 %v2197, 4294901760
        %3333 = vmatpush1.msra.mxu0 %v3332
        %3334 = vmatprep.subr.mxu0 0.0
        %v3335 = vand.u32 %v2198, 4294901760
        %3336 = vmatpush1.msra.mxu0 %v3335
        %3337 = vmatprep.subr.mxu0 0.0
        %v3338 = vand.u32 %v2199, 4294901760
        %3339 = vmatpush1.msra.mxu0 %v3338
        %3340 = vmatprep.subr.mxu0 0.0
        %v3341 = vand.u32 %v2200, 4294901760
        %3342 = vmatpush1.msra.mxu0 %v3341
        %3343 = vmatprep.subr.mxu0 0.0
        %v3344 = vand.u32 %v2201, 4294901760
        %3345 = vmatpush1.msra.mxu0 %v3344
        %3346 = vmatprep.subr.mxu0 0.0
        %v3347 = vand.u32 %v2202, 4294901760
        %3348 = vmatpush1.msra.mxu0 %v3347
        %3349 = vmatprep.subr.mxu0 0.0
        %v3350 = vand.u32 %v2203, 4294901760
        %3351 = vmatpush1.msra.mxu0 %v3350
        %3352 = vmatprep.subr.mxu0 0.0
        %v3353 = vand.u32 %v2204, 4294901760
        %3354 = vmatpush1.msra.mxu0 %v3353
        %3355 = vmatprep.subr.mxu0 0.0
        %v3356 = vand.u32 %v2205, 4294901760
        %3357 = vmatpush1.msra.mxu0 %v3356
        %3358 = vmatprep.subr.mxu0 0.0
        %v3359 = vand.u32 %v2206, 4294901760
        %3360 = vmatpush1.msra.mxu0 %v3359
        %3361 = vmatprep.subr.mxu0 0.0
        %v3362 = vand.u32 %v2207, 4294901760
        %3363 = vmatpush1.msra.mxu0 %v3362
        %3364 = vmatprep.subr.mxu0 0.0
        %v3365 = vand.u32 %v2208, 4294901760
        %3366 = vmatpush1.msra.mxu0 %v3365
        %3367 = vmatprep.subr.mxu0 0.0
        %v3368 = vand.u32 %v2209, 4294901760
        %3369 = vmatpush1.msra.mxu0 %v3368
        %3370 = vmatprep.subr.mxu0 0.0
        %v3371 = vand.u32 %v2210, 4294901760
        %3372 = vmatpush1.msra.mxu0 %v3371
        %3373 = vmatprep.subr.mxu0 0.0
        %v3374 = vand.u32 %v2211, 4294901760
        %3375 = vmatpush1.msra.mxu0 %v3374
        %3376 = vmatprep.subr.mxu0 0.0
        %3377 = vmatpush1.msra.mxu0 0.0
        %3378 = vmatprep.subr.mxu0 0.0
        %3379 = vmatpush1.msra.mxu0 0.0
        %3380 = vmatprep.subr.mxu0 0.0
        %3381 = vmatpush1.msra.mxu0 0.0
        %3382 = vmatprep.subr.mxu0 0.0
        %3383 = vmatpush1.msra.mxu0 0.0
        %3384 = vmatprep.subr.mxu0 0.0
        %3385 = vmatpush1.msra.mxu0 0.0
        %3386 = vmatprep.subr.mxu0 0.0
        %3387 = vmatpush1.msra.mxu0 0.0
        %3388 = vmatprep.subr.mxu0 0.0
        %3389 = vmatpush1.msra.mxu0 0.0
        %3390 = vmatprep.subr.mxu0 0.0
        %3391 = vmatpush1.msra.mxu0 0.0
        %3392 = vmatprep.subr.mxu0 0.0
        %3393 = vmatpush1.msra.mxu0 0.0
        %3394 = vmatprep.subr.mxu0 0.0
        %3395 = vmatpush1.msra.mxu0 0.0
        %3396 = vmatprep.subr.mxu0 0.0
        %3397 = vmatpush1.msra.mxu0 0.0
        %3398 = vmatprep.subr.mxu0 0.0
        %3399 = vmatpush1.msra.mxu0 0.0
        %3400 = vmatprep.subr.mxu0 0.0
        %3401 = vmatpush1.msra.mxu0 0.0
        %3402 = vmatprep.subr.mxu0 0.0
        %3403 = vmatpush1.msra.mxu0 0.0
        %3404 = vmatprep.subr.mxu0 0.0
        %3405 = vmatpush1.msra.mxu0 0.0
        %3406 = vmatprep.subr.mxu0 0.0
        %3407 = vmatpush1.msra.mxu0 0.0
        %3408 = vmatprep.mubr.f32.mxu0 0.0
        %v3409 = vand.u32 %v2164, 4294901760
        %3410 = vmatmul.mubr.f32.gmra.mrb[0].mxu0 %v3409
        %v3411 = vpop.f32.mrb[0].mxu0
        %v3412 = vadd.f32 %v3235, %v3411
        %v3413 = vpop.f32.mrb[0].mxu0
        %3414 = vmatprep.mubr.f32.mxu0 0.0
        %v3415 = vand.u32 %v2165, 4294901760
        %3416 = vmatmul.mubr.f32.gmra.mrb[0].mxu0 %v3415
        %v3417 = vpop.f32.mrb[0].mxu0
        %v3418 = vadd.f32 %v3241, %v3417
        %v3419 = vpop.f32.mrb[0].mxu0
        %3420 = vmatprep.mubr.f32.mxu0 0.0
        %v3421 = vand.u32 %v2166, 4294901760
        %3422 = vmatmul.mubr.f32.gmra.mrb[0].mxu0 %v3421
        %v3423 = vpop.f32.mrb[0].mxu0
        %v3424 = vadd.f32 %v3247, %v3423
        %v3425 = vpop.f32.mrb[0].mxu0
        %3426 = vmatprep.mubr.f32.mxu0 0.0
        %v3427 = vand.u32 %v2167, 4294901760
        %3428 = vmatmul.mubr.f32.gmra.mrb[0].mxu0 %v3427
        %v3429 = vpop.f32.mrb[0].mxu0
        %v3430 = vadd.f32 %v3253, %v3429
        %v3431 = vpop.f32.mrb[0].mxu0
        %3432 = vmatprep.mubr.f32.mxu0 0.0
        %v3433 = vand.u32 %v2168, 4294901760
        %3434 = vmatmul.mubr.f32.gmra.mrb[0].mxu0 %v3433
        %v3435 = vpop.f32.mrb[0].mxu0
        %v3436 = vadd.f32 %v3259, %v3435
        %v3437 = vpop.f32.mrb[0].mxu0
        %3438 = vmatprep.mubr.f32.mxu0 0.0
        %v3439 = vand.u32 %v2169, 4294901760
        %3440 = vmatmul.mubr.f32.gmra.mrb[0].mxu0 %v3439
        %v3441 = vpop.f32.mrb[0].mxu0
        %v3442 = vadd.f32 %v3265, %v3441
        %v3443 = vpop.f32.mrb[0].mxu0
        %3444 = vmatprep.mubr.f32.mxu0 0.0
        %v3445 = vand.u32 %v2170, 4294901760
        %3446 = vmatmul.mubr.f32.gmra.mrb[0].mxu0 %v3445
        %v3447 = vpop.f32.mrb[0].mxu0
        %v3448 = vadd.f32 %v3271, %v3447
        %v3449 = vpop.f32.mrb[0].mxu0
        %3450 = vmatprep.mubr.f32.mxu0 0.0
        %v3451 = vand.u32 %v2171, 4294901760
        %3452 = vmatmul.mubr.f32.gmra.mrb[0].mxu0 %v3451
        %v3453 = vpop.f32.mrb[0].mxu0
        %v3454 = vadd.f32 %v3277, %v3453
        %v3455 = vpop.f32.mrb[0].mxu0
        %3456 = vmatprep.mubr.f32.mxu0 0.0
        %v3457 = vand.u32 %v2172, 4294901760
        %3458 = vmatmul.mubr.f32.gmra.mrb[0].mxu0 %v3457
        %v3459 = vpop.f32.mrb[0].mxu0
        %v3460 = vadd.f32 %v3283, %v3459
        %v3461 = vpop.f32.mrb[0].mxu0
        %3462 = vmatprep.mubr.f32.mxu0 0.0
        %v3463 = vand.u32 %v2173, 4294901760
        %3464 = vmatmul.mubr.f32.gmra.mrb[0].mxu0 %v3463
        %v3465 = vpop.f32.mrb[0].mxu0
        %v3466 = vadd.f32 %v3289, %v3465
        %v3467 = vpop.f32.mrb[0].mxu0
        %3468 = vmatprep.mubr.f32.mxu0 0.0
        %v3469 = vand.u32 %v2174, 4294901760
        %3470 = vmatmul.mubr.f32.gmra.mrb[0].mxu0 %v3469
        %v3471 = vpop.f32.mrb[0].mxu0
        %v3472 = vadd.f32 %v3295, %v3471
        %v3473 = vpop.f32.mrb[0].mxu0
        %3474 = vmatprep.mubr.f32.mxu0 0.0
        %v3475 = vand.u32 %v2175, 4294901760
        %3476 = vmatmul.mubr.f32.gmra.mrb[0].mxu0 %v3475
        %v3477 = vpop.f32.mrb[0].mxu0
        %v3478 = vadd.f32 %v3301, %v3477
        %v3479 = vpop.f32.mrb[0].mxu0
        %3480 = vmatprep.mubr.f32.mxu0 0.0
        %v3481 = vand.u32 %v2176, 4294901760
        %3482 = vmatmul.mubr.f32.gmra.mrb[0].mxu0 %v3481
        %v3483 = vpop.f32.mrb[0].mxu0
        %v3484 = vadd.f32 %v3307, %v3483
        %v3485 = vpop.f32.mrb[0].mxu0
        %3486 = vmatprep.mubr.f32.mxu0 0.0
        %v3487 = vand.u32 %v2177, 4294901760
        %3488 = vmatmul.mubr.f32.gmra.mrb[0].mxu0 %v3487
        %v3489 = vpop.f32.mrb[0].mxu0
        %v3490 = vadd.f32 %v3313, %v3489
        %v3491 = vpop.f32.mrb[0].mxu0
        %3492 = vmatprep.mubr.f32.mxu0 0.0
        %v3493 = vand.u32 %v2178, 4294901760
        %3494 = vmatmul.mubr.f32.gmra.mrb[0].mxu0 %v3493
        %v3495 = vpop.f32.mrb[0].mxu0
        %v3496 = vadd.f32 %v3319, %v3495
        %v3497 = vpop.f32.mrb[0].mxu0
        %3498 = vmatprep.mubr.f32.mxu0 0.0
        %v3499 = vand.u32 %v2179, 4294901760
        %3500 = vmatmul.mubr.f32.gmra.mrb[0].mxu0 %v3499
        %v3501 = vpop.f32.mrb[0].mxu0
        %v3502 = vadd.f32 %v3325, %v3501
        %v3503 = vpop.f32.mrb[0].mxu0
        %3504 = vdwg.mxu0
        %v3505 = vld [vmem:[#allocation9] sm:$0xff]
        %v3506 = vld [vmem:[#allocation9 + $0x8] sm:$0xff]
        %v3507 = vld [vmem:[#allocation9 + $0x10] sm:$0xff]
        %v3508 = vld [vmem:[#allocation9 + $0x18] sm:$0xff]
        %v3509 = vld [vmem:[#allocation9 + $0x20] sm:$0xff]
        %v3510 = vld [vmem:[#allocation9 + $0x28] sm:$0xff]
        %v3511 = vld [vmem:[#allocation9 + $0x30] sm:$0xff]
        %v3512 = vld [vmem:[#allocation9 + $0x38] sm:$0xff]
        %v3513 = vld [vmem:[#allocation9 + $0x40] sm:$0xff]
        %v3514 = vld [vmem:[#allocation9 + $0x48] sm:$0xff]
        %v3515 = vld [vmem:[#allocation9 + $0x50] sm:$0xff]
        %v3516 = vld [vmem:[#allocation9 + $0x58] sm:$0xff]
        %v3517 = vld [vmem:[#allocation9 + $0x60] sm:$0xff]
        %v3518 = vld [vmem:[#allocation9 + $0x68] sm:$0xff]
        %v3519 = vld [vmem:[#allocation9 + $0x70] sm:$0xff]
        %v3520 = vld [vmem:[#allocation9 + $0x78] sm:$0xff]
        %v3521 = vld [vmem:[%s6] sm:$0x1]
        %v3523 = vlaneseq
        %v3524 = vshrl.u32 %v3523, 7
        %v3525 = vsub.s32 0, %v3524
        %v3526 = vrot.slane %v3521, %v3525
        %3528 = vmatprep.subr.mxu0 0.0
        %v3529 = vand.u32 %v3505, 4294901760
        %3530 = vmatpush1.msra.mxu0 %v3529
        %3531 = vmatprep.subr.mxu0 0.0
        %v3532 = vand.u32 %v3506, 4294901760
        %3533 = vmatpush1.msra.mxu0 %v3532
        %3534 = vmatprep.subr.mxu0 0.0
        %v3535 = vand.u32 %v3507, 4294901760
        %3536 = vmatpush1.msra.mxu0 %v3535
        %3537 = vmatprep.subr.mxu0 0.0
        %v3538 = vand.u32 %v3508, 4294901760
        %3539 = vmatpush1.msra.mxu0 %v3538
        %3540 = vmatprep.subr.mxu0 0.0
        %v3541 = vand.u32 %v3509, 4294901760
        %3542 = vmatpush1.msra.mxu0 %v3541
        %3543 = vmatprep.subr.mxu0 0.0
        %v3544 = vand.u32 %v3510, 4294901760
        %3545 = vmatpush1.msra.mxu0 %v3544
        %3546 = vmatprep.subr.mxu0 0.0
        %v3547 = vand.u32 %v3511, 4294901760
        %3548 = vmatpush1.msra.mxu0 %v3547
        %3549 = vmatprep.subr.mxu0 0.0
        %v3550 = vand.u32 %v3512, 4294901760
        %3551 = vmatpush1.msra.mxu0 %v3550
        %3552 = vmatprep.subr.mxu0 0.0
        %v3553 = vand.u32 %v3513, 4294901760
        %3554 = vmatpush1.msra.mxu0 %v3553
        %3555 = vmatprep.subr.mxu0 0.0
        %v3556 = vand.u32 %v3514, 4294901760
        %3557 = vmatpush1.msra.mxu0 %v3556
        %3558 = vmatprep.subr.mxu0 0.0
        %v3559 = vand.u32 %v3515, 4294901760
        %3560 = vmatpush1.msra.mxu0 %v3559
        %3561 = vmatprep.subr.mxu0 0.0
        %v3562 = vand.u32 %v3516, 4294901760
        %3563 = vmatpush1.msra.mxu0 %v3562
        %3564 = vmatprep.subr.mxu0 0.0
        %v3565 = vand.u32 %v3517, 4294901760
        %3566 = vmatpush1.msra.mxu0 %v3565
        %3567 = vmatprep.subr.mxu0 0.0
        %v3568 = vand.u32 %v3518, 4294901760
        %3569 = vmatpush1.msra.mxu0 %v3568
        %3570 = vmatprep.subr.mxu0 0.0
        %v3571 = vand.u32 %v3519, 4294901760
        %3572 = vmatpush1.msra.mxu0 %v3571
        %3573 = vmatprep.subr.mxu0 0.0
        %v3574 = vand.u32 %v3520, 4294901760
        %3575 = vmatpush1.msra.mxu0 %v3574
        %3576 = vmatprep.subr.mxu0 0.0
        %3577 = vmatpush1.msra.mxu0 0.0
        %3578 = vmatprep.subr.mxu0 0.0
        %3579 = vmatpush1.msra.mxu0 0.0
        %3580 = vmatprep.subr.mxu0 0.0
        %3581 = vmatpush1.msra.mxu0 0.0
        %3582 = vmatprep.subr.mxu0 0.0
        %3583 = vmatpush1.msra.mxu0 0.0
        %3584 = vmatprep.subr.mxu0 0.0
        %3585 = vmatpush1.msra.mxu0 0.0
        %3586 = vmatprep.subr.mxu0 0.0
        %3587 = vmatpush1.msra.mxu0 0.0
        %3588 = vmatprep.subr.mxu0 0.0
        %3589 = vmatpush1.msra.mxu0 0.0
        %3590 = vmatprep.subr.mxu0 0.0
        %3591 = vmatpush1.msra.mxu0 0.0
        %3592 = vmatprep.subr.mxu0 0.0
        %3593 = vmatpush1.msra.mxu0 0.0
        %3594 = vmatprep.subr.mxu0 0.0
        %3595 = vmatpush1.msra.mxu0 0.0
        %3596 = vmatprep.subr.mxu0 0.0
        %3597 = vmatpush1.msra.mxu0 0.0
        %3598 = vmatprep.subr.mxu0 0.0
        %3599 = vmatpush1.msra.mxu0 0.0
        %3600 = vmatprep.subr.mxu0 0.0
        %3601 = vmatpush1.msra.mxu0 0.0
        %3602 = vmatprep.subr.mxu0 0.0
        %3603 = vmatpush1.msra.mxu0 0.0
        %3604 = vmatprep.subr.mxu0 0.0
        %3605 = vmatpush1.msra.mxu0 0.0
        %3606 = vmatprep.subr.mxu0 0.0
        %3607 = vmatpush1.msra.mxu0 0.0
        %3608 = vmatprep.mubr.f32.mxu0 0.0
        %v3609 = vand.u32 %v2180, 4294901760
        %v3610 = vsub.f32 %v2180, %v3609
        %v3611 = vand.u32 %v3610, 4294901760
        %v3612 = vsub.f32 %v3610, %v3611
        %v3613 = vand.u32 %v3612, 4294901760
        %3614 = vmatmul.mubr.f32.gmra.mrb[0].mxu0 %v3613
        %v3615 = vpop.f32.mrb[0].mxu0
        %v3616 = vadd.f32 %v3526, %v3615
        %v3617 = vpop.f32.mrb[0].mxu0
        %3618 = vmatprep.mubr.f32.mxu0 0.0
        %v3619 = vand.u32 %v2181, 4294901760
        %v3620 = vsub.f32 %v2181, %v3619
        %v3621 = vand.u32 %v3620, 4294901760
        %v3622 = vsub.f32 %v3620, %v3621
        %v3623 = vand.u32 %v3622, 4294901760
        %3624 = vmatmul.mubr.f32.gmra.mrb[0].mxu0 %v3623
        %v3625 = vpop.f32.mrb[0].mxu0
        %v3626 = vadd.f32 %v3526, %v3625
        %v3627 = vpop.f32.mrb[0].mxu0
        %3628 = vmatprep.mubr.f32.mxu0 0.0
        %v3629 = vand.u32 %v2182, 4294901760
        %v3630 = vsub.f32 %v2182, %v3629
        %v3631 = vand.u32 %v3630, 4294901760
        %v3632 = vsub.f32 %v3630, %v3631
        %v3633 = vand.u32 %v3632, 4294901760
        %3634 = vmatmul.mubr.f32.gmra.mrb[0].mxu0 %v3633
        %v3635 = vpop.f32.mrb[0].mxu0
        %v3636 = vadd.f32 %v3526, %v3635
        %v3637 = vpop.f32.mrb[0].mxu0
        %3638 = vmatprep.mubr.f32.mxu0 0.0
        %v3639 = vand.u32 %v2183, 4294901760
        %v3640 = vsub.f32 %v2183, %v3639
        %v3641 = vand.u32 %v3640, 4294901760
        %v3642 = vsub.f32 %v3640, %v3641
        %v3643 = vand.u32 %v3642, 4294901760
        %3644 = vmatmul.mubr.f32.gmra.mrb[0].mxu0 %v3643
        %v3645 = vpop.f32.mrb[0].mxu0
        %v3646 = vadd.f32 %v3526, %v3645
        %v3647 = vpop.f32.mrb[0].mxu0
        %3648 = vmatprep.mubr.f32.mxu0 0.0
        %v3649 = vand.u32 %v2184, 4294901760
        %v3650 = vsub.f32 %v2184, %v3649
        %v3651 = vand.u32 %v3650, 4294901760
        %v3652 = vsub.f32 %v3650, %v3651
        %v3653 = vand.u32 %v3652, 4294901760
        %3654 = vmatmul.mubr.f32.gmra.mrb[0].mxu0 %v3653
        %v3655 = vpop.f32.mrb[0].mxu0
        %v3656 = vadd.f32 %v3526, %v3655
        %v3657 = vpop.f32.mrb[0].mxu0
        %3658 = vmatprep.mubr.f32.mxu0 0.0
        %v3659 = vand.u32 %v2185, 4294901760
        %v3660 = vsub.f32 %v2185, %v3659
        %v3661 = vand.u32 %v3660, 4294901760
        %v3662 = vsub.f32 %v3660, %v3661
        %v3663 = vand.u32 %v3662, 4294901760
        %3664 = vmatmul.mubr.f32.gmra.mrb[0].mxu0 %v3663
        %v3665 = vpop.f32.mrb[0].mxu0
        %v3666 = vadd.f32 %v3526, %v3665
        %v3667 = vpop.f32.mrb[0].mxu0
        %3668 = vmatprep.mubr.f32.mxu0 0.0
        %v3669 = vand.u32 %v2186, 4294901760
        %v3670 = vsub.f32 %v2186, %v3669
        %v3671 = vand.u32 %v3670, 4294901760
        %v3672 = vsub.f32 %v3670, %v3671
        %v3673 = vand.u32 %v3672, 4294901760
        %3674 = vmatmul.mubr.f32.gmra.mrb[0].mxu0 %v3673
        %v3675 = vpop.f32.mrb[0].mxu0
        %v3676 = vadd.f32 %v3526, %v3675
        %v3677 = vpop.f32.mrb[0].mxu0
        %3678 = vmatprep.mubr.f32.mxu0 0.0
        %v3679 = vand.u32 %v2187, 4294901760
        %v3680 = vsub.f32 %v2187, %v3679
        %v3681 = vand.u32 %v3680, 4294901760
        %v3682 = vsub.f32 %v3680, %v3681
        %v3683 = vand.u32 %v3682, 4294901760
        %3684 = vmatmul.mubr.f32.gmra.mrb[0].mxu0 %v3683
        %v3685 = vpop.f32.mrb[0].mxu0
        %v3686 = vadd.f32 %v3526, %v3685
        %v3687 = vpop.f32.mrb[0].mxu0
        %3688 = vmatprep.mubr.f32.mxu0 0.0
        %v3689 = vand.u32 %v2188, 4294901760
        %v3690 = vsub.f32 %v2188, %v3689
        %v3691 = vand.u32 %v3690, 4294901760
        %v3692 = vsub.f32 %v3690, %v3691
        %v3693 = vand.u32 %v3692, 4294901760
        %3694 = vmatmul.mubr.f32.gmra.mrb[0].mxu0 %v3693
        %v3695 = vpop.f32.mrb[0].mxu0
        %v3696 = vadd.f32 %v3526, %v3695
        %v3697 = vpop.f32.mrb[0].mxu0
        %3698 = vmatprep.mubr.f32.mxu0 0.0
        %v3699 = vand.u32 %v2189, 4294901760
        %v3700 = vsub.f32 %v2189, %v3699
        %v3701 = vand.u32 %v3700, 4294901760
        %v3702 = vsub.f32 %v3700, %v3701
        %v3703 = vand.u32 %v3702, 4294901760
        %3704 = vmatmul.mubr.f32.gmra.mrb[0].mxu0 %v3703
        %v3705 = vpop.f32.mrb[0].mxu0
        %v3706 = vadd.f32 %v3526, %v3705
        %v3707 = vpop.f32.mrb[0].mxu0
        %3708 = vmatprep.mubr.f32.mxu0 0.0
        %v3709 = vand.u32 %v2190, 4294901760
        %v3710 = vsub.f32 %v2190, %v3709
        %v3711 = vand.u32 %v3710, 4294901760
        %v3712 = vsub.f32 %v3710, %v3711
        %v3713 = vand.u32 %v3712, 4294901760
        %3714 = vmatmul.mubr.f32.gmra.mrb[0].mxu0 %v3713
        %v3715 = vpop.f32.mrb[0].mxu0
        %v3716 = vadd.f32 %v3526, %v3715
        %v3717 = vpop.f32.mrb[0].mxu0
        %3718 = vmatprep.mubr.f32.mxu0 0.0
        %v3719 = vand.u32 %v2191, 4294901760
        %v3720 = vsub.f32 %v2191, %v3719
        %v3721 = vand.u32 %v3720, 4294901760
        %v3722 = vsub.f32 %v3720, %v3721
        %v3723 = vand.u32 %v3722, 4294901760
        %3724 = vmatmul.mubr.f32.gmra.mrb[0].mxu0 %v3723
        %v3725 = vpop.f32.mrb[0].mxu0
        %v3726 = vadd.f32 %v3526, %v3725
        %v3727 = vpop.f32.mrb[0].mxu0
        %3728 = vmatprep.mubr.f32.mxu0 0.0
        %v3729 = vand.u32 %v2192, 4294901760
        %v3730 = vsub.f32 %v2192, %v3729
        %v3731 = vand.u32 %v3730, 4294901760
        %v3732 = vsub.f32 %v3730, %v3731
        %v3733 = vand.u32 %v3732, 4294901760
        %3734 = vmatmul.mubr.f32.gmra.mrb[0].mxu0 %v3733
        %v3735 = vpop.f32.mrb[0].mxu0
        %v3736 = vadd.f32 %v3526, %v3735
        %v3737 = vpop.f32.mrb[0].mxu0
        %3738 = vmatprep.mubr.f32.mxu0 0.0
        %v3739 = vand.u32 %v2193, 4294901760
        %v3740 = vsub.f32 %v2193, %v3739
        %v3741 = vand.u32 %v3740, 4294901760
        %v3742 = vsub.f32 %v3740, %v3741
        %v3743 = vand.u32 %v3742, 4294901760
        %3744 = vmatmul.mubr.f32.gmra.mrb[0].mxu0 %v3743
        %v3745 = vpop.f32.mrb[0].mxu0
        %v3746 = vadd.f32 %v3526, %v3745
        %v3747 = vpop.f32.mrb[0].mxu0
        %3748 = vmatprep.mubr.f32.mxu0 0.0
        %v3749 = vand.u32 %v2194, 4294901760
        %v3750 = vsub.f32 %v2194, %v3749
        %v3751 = vand.u32 %v3750, 4294901760
        %v3752 = vsub.f32 %v3750, %v3751
        %v3753 = vand.u32 %v3752, 4294901760
        %3754 = vmatmul.mubr.f32.gmra.mrb[0].mxu0 %v3753
        %v3755 = vpop.f32.mrb[0].mxu0
        %v3756 = vadd.f32 %v3526, %v3755
        %v3757 = vpop.f32.mrb[0].mxu0
        %3758 = vmatprep.mubr.f32.mxu0 0.0
        %v3759 = vand.u32 %v2195, 4294901760
        %v3760 = vsub.f32 %v2195, %v3759
        %v3761 = vand.u32 %v3760, 4294901760
        %v3762 = vsub.f32 %v3760, %v3761
        %v3763 = vand.u32 %v3762, 4294901760
        %3764 = vmatmul.mubr.f32.gmra.mrb[0].mxu0 %v3763
        %v3765 = vpop.f32.mrb[0].mxu0
        %v3766 = vadd.f32 %v3526, %v3765
        %v3767 = vpop.f32.mrb[0].mxu0
        %3768 = vdwg.mxu0
        %3769 = vmatprep.subr.mxu0 0.0
        %v3770 = vand.u32 %v3505, 4294901760
        %v3771 = vsub.f32 %v3505, %v3770
        %v3772 = vand.u32 %v3771, 4294901760
        %v3773 = vsub.f32 %v3771, %v3772
        %v3774 = vand.u32 %v3773, 4294901760
        %3775 = vmatpush1.msra.mxu0 %v3774
        %3776 = vmatprep.subr.mxu0 0.0
        %v3777 = vand.u32 %v3506, 4294901760
        %v3778 = vsub.f32 %v3506, %v3777
        %v3779 = vand.u32 %v3778, 4294901760
        %v3780 = vsub.f32 %v3778, %v3779
        %v3781 = vand.u32 %v3780, 4294901760
        %3782 = vmatpush1.msra.mxu0 %v3781
        %3783 = vmatprep.subr.mxu0 0.0
        %v3784 = vand.u32 %v3507, 4294901760
        %v3785 = vsub.f32 %v3507, %v3784
        %v3786 = vand.u32 %v3785, 4294901760
        %v3787 = vsub.f32 %v3785, %v3786
        %v3788 = vand.u32 %v3787, 4294901760
        %3789 = vmatpush1.msra.mxu0 %v3788
        %3790 = vmatprep.subr.mxu0 0.0
        %v3791 = vand.u32 %v3508, 4294901760
        %v3792 = vsub.f32 %v3508, %v3791
        %v3793 = vand.u32 %v3792, 4294901760
        %v3794 = vsub.f32 %v3792, %v3793
        %v3795 = vand.u32 %v3794, 4294901760
        %3796 = vmatpush1.msra.mxu0 %v3795
        %3797 = vmatprep.subr.mxu0 0.0
        %v3798 = vand.u32 %v3509, 4294901760
        %v3799 = vsub.f32 %v3509, %v3798
        %v3800 = vand.u32 %v3799, 4294901760
        %v3801 = vsub.f32 %v3799, %v3800
        %v3802 = vand.u32 %v3801, 4294901760
        %3803 = vmatpush1.msra.mxu0 %v3802
        %3804 = vmatprep.subr.mxu0 0.0
        %v3805 = vand.u32 %v3510, 4294901760
        %v3806 = vsub.f32 %v3510, %v3805
        %v3807 = vand.u32 %v3806, 4294901760
        %v3808 = vsub.f32 %v3806, %v3807
        %v3809 = vand.u32 %v3808, 4294901760
        %3810 = vmatpush1.msra.mxu0 %v3809
        %3811 = vmatprep.subr.mxu0 0.0
        %v3812 = vand.u32 %v3511, 4294901760
        %v3813 = vsub.f32 %v3511, %v3812
        %v3814 = vand.u32 %v3813, 4294901760
        %v3815 = vsub.f32 %v3813, %v3814
        %v3816 = vand.u32 %v3815, 4294901760
        %3817 = vmatpush1.msra.mxu0 %v3816
        %3818 = vmatprep.subr.mxu0 0.0
        %v3819 = vand.u32 %v3512, 4294901760
        %v3820 = vsub.f32 %v3512, %v3819
        %v3821 = vand.u32 %v3820, 4294901760
        %v3822 = vsub.f32 %v3820, %v3821
        %v3823 = vand.u32 %v3822, 4294901760
        %3824 = vmatpush1.msra.mxu0 %v3823
        %3825 = vmatprep.subr.mxu0 0.0
        %v3826 = vand.u32 %v3513, 4294901760
        %v3827 = vsub.f32 %v3513, %v3826
        %v3828 = vand.u32 %v3827, 4294901760
        %v3829 = vsub.f32 %v3827, %v3828
        %v3830 = vand.u32 %v3829, 4294901760
        %3831 = vmatpush1.msra.mxu0 %v3830
        %3832 = vmatprep.subr.mxu0 0.0
        %v3833 = vand.u32 %v3514, 4294901760
        %v3834 = vsub.f32 %v3514, %v3833
        %v3835 = vand.u32 %v3834, 4294901760
        %v3836 = vsub.f32 %v3834, %v3835
        %v3837 = vand.u32 %v3836, 4294901760
        %3838 = vmatpush1.msra.mxu0 %v3837
        %3839 = vmatprep.subr.mxu0 0.0
        %v3840 = vand.u32 %v3515, 4294901760
        %v3841 = vsub.f32 %v3515, %v3840
        %v3842 = vand.u32 %v3841, 4294901760
        %v3843 = vsub.f32 %v3841, %v3842
        %v3844 = vand.u32 %v3843, 4294901760
        %3845 = vmatpush1.msra.mxu0 %v3844
        %3846 = vmatprep.subr.mxu0 0.0
        %v3847 = vand.u32 %v3516, 4294901760
        %v3848 = vsub.f32 %v3516, %v3847
        %v3849 = vand.u32 %v3848, 4294901760
        %v3850 = vsub.f32 %v3848, %v3849
        %v3851 = vand.u32 %v3850, 4294901760
        %3852 = vmatpush1.msra.mxu0 %v3851
        %3853 = vmatprep.subr.mxu0 0.0
        %v3854 = vand.u32 %v3517, 4294901760
        %v3855 = vsub.f32 %v3517, %v3854
        %v3856 = vand.u32 %v3855, 4294901760
        %v3857 = vsub.f32 %v3855, %v3856
        %v3858 = vand.u32 %v3857, 4294901760
        %3859 = vmatpush1.msra.mxu0 %v3858
        %3860 = vmatprep.subr.mxu0 0.0
        %v3861 = vand.u32 %v3518, 4294901760
        %v3862 = vsub.f32 %v3518, %v3861
        %v3863 = vand.u32 %v3862, 4294901760
        %v3864 = vsub.f32 %v3862, %v3863
        %v3865 = vand.u32 %v3864, 4294901760
        %3866 = vmatpush1.msra.mxu0 %v3865
        %3867 = vmatprep.subr.mxu0 0.0
        %v3868 = vand.u32 %v3519, 4294901760
        %v3869 = vsub.f32 %v3519, %v3868
        %v3870 = vand.u32 %v3869, 4294901760
        %v3871 = vsub.f32 %v3869, %v3870
        %v3872 = vand.u32 %v3871, 4294901760
        %3873 = vmatpush1.msra.mxu0 %v3872
        %3874 = vmatprep.subr.mxu0 0.0
        %v3875 = vand.u32 %v3520, 4294901760
        %v3876 = vsub.f32 %v3520, %v3875
        %v3877 = vand.u32 %v3876, 4294901760
        %v3878 = vsub.f32 %v3876, %v3877
        %v3879 = vand.u32 %v3878, 4294901760
        %3880 = vmatpush1.msra.mxu0 %v3879
        %3881 = vmatprep.subr.mxu0 0.0
        %3882 = vmatpush1.msra.mxu0 0.0
        %3883 = vmatprep.subr.mxu0 0.0
        %3884 = vmatpush1.msra.mxu0 0.0
        %3885 = vmatprep.subr.mxu0 0.0
        %3886 = vmatpush1.msra.mxu0 0.0
        %3887 = vmatprep.subr.mxu0 0.0
        %3888 = vmatpush1.msra.mxu0 0.0
        %3889 = vmatprep.subr.mxu0 0.0
        %3890 = vmatpush1.msra.mxu0 0.0
        %3891 = vmatprep.subr.mxu0 0.0
        %3892 = vmatpush1.msra.mxu0 0.0
        %3893 = vmatprep.subr.mxu0 0.0
        %3894 = vmatpush1.msra.mxu0 0.0
        %3895 = vmatprep.subr.mxu0 0.0
        %3896 = vmatpush1.msra.mxu0 0.0
        %3897 = vmatprep.subr.mxu0 0.0
        %3898 = vmatpush1.msra.mxu0 0.0
        %3899 = vmatprep.subr.mxu0 0.0
        %3900 = vmatpush1.msra.mxu0 0.0
        %3901 = vmatprep.subr.mxu0 0.0
        %3902 = vmatpush1.msra.mxu0 0.0
        %3903 = vmatprep.subr.mxu0 0.0
        %3904 = vmatpush1.msra.mxu0 0.0
        %3905 = vmatprep.subr.mxu0 0.0
        %3906 = vmatpush1.msra.mxu0 0.0
        %3907 = vmatprep.subr.mxu0 0.0
        %3908 = vmatpush1.msra.mxu0 0.0
        %3909 = vmatprep.subr.mxu0 0.0
        %3910 = vmatpush1.msra.mxu0 0.0
        %3911 = vmatprep.subr.mxu0 0.0
        %3912 = vmatpush1.msra.mxu0 0.0
        %3913 = vmatprep.mubr.f32.mxu0 0.0
        %v3914 = vand.u32 %v2180, 4294901760
        %3915 = vmatmul.mubr.f32.gmra.mrb[0].mxu0 %v3914
        %v3916 = vpop.f32.mrb[0].mxu0
        %v3917 = vadd.f32 %v3616, %v3916
        %v3918 = vpop.f32.mrb[0].mxu0
        %3919 = vmatprep.mubr.f32.mxu0 0.0
        %v3920 = vand.u32 %v2181, 4294901760
        %3921 = vmatmul.mubr.f32.gmra.mrb[0].mxu0 %v3920
        %v3922 = vpop.f32.mrb[0].mxu0
        %v3923 = vadd.f32 %v3626, %v3922
        %v3924 = vpop.f32.mrb[0].mxu0
        %3925 = vmatprep.mubr.f32.mxu0 0.0
        %v3926 = vand.u32 %v2182, 4294901760
        %3927 = vmatmul.mubr.f32.gmra.mrb[0].mxu0 %v3926
        %v3928 = vpop.f32.mrb[0].mxu0
        %v3929 = vadd.f32 %v3636, %v3928
        %v3930 = vpop.f32.mrb[0].mxu0
        %3931 = vmatprep.mubr.f32.mxu0 0.0
        %v3932 = vand.u32 %v2183, 4294901760
        %3933 = vmatmul.mubr.f32.gmra.mrb[0].mxu0 %v3932
        %v3934 = vpop.f32.mrb[0].mxu0
        %v3935 = vadd.f32 %v3646, %v3934
        %v3936 = vpop.f32.mrb[0].mxu0
        %3937 = vmatprep.mubr.f32.mxu0 0.0
        %v3938 = vand.u32 %v2184, 4294901760
        %3939 = vmatmul.mubr.f32.gmra.mrb[0].mxu0 %v3938
        %v3940 = vpop.f32.mrb[0].mxu0
        %v3941 = vadd.f32 %v3656, %v3940
        %v3942 = vpop.f32.mrb[0].mxu0
        %3943 = vmatprep.mubr.f32.mxu0 0.0
        %v3944 = vand.u32 %v2185, 4294901760
        %3945 = vmatmul.mubr.f32.gmra.mrb[0].mxu0 %v3944
        %v3946 = vpop.f32.mrb[0].mxu0
        %v3947 = vadd.f32 %v3666, %v3946
        %v3948 = vpop.f32.mrb[0].mxu0
        %3949 = vmatprep.mubr.f32.mxu0 0.0
        %v3950 = vand.u32 %v2186, 4294901760
        %3951 = vmatmul.mubr.f32.gmra.mrb[0].mxu0 %v3950
        %v3952 = vpop.f32.mrb[0].mxu0
        %v3953 = vadd.f32 %v3676, %v3952
        %v3954 = vpop.f32.mrb[0].mxu0
        %3955 = vmatprep.mubr.f32.mxu0 0.0
        %v3956 = vand.u32 %v2187, 4294901760
        %3957 = vmatmul.mubr.f32.gmra.mrb[0].mxu0 %v3956
        %v3958 = vpop.f32.mrb[0].mxu0
        %v3959 = vadd.f32 %v3686, %v3958
        %v3960 = vpop.f32.mrb[0].mxu0
        %3961 = vmatprep.mubr.f32.mxu0 0.0
        %v3962 = vand.u32 %v2188, 4294901760
        %3963 = vmatmul.mubr.f32.gmra.mrb[0].mxu0 %v3962
        %v3964 = vpop.f32.mrb[0].mxu0
        %v3965 = vadd.f32 %v3696, %v3964
        %v3966 = vpop.f32.mrb[0].mxu0
        %3967 = vmatprep.mubr.f32.mxu0 0.0
        %v3968 = vand.u32 %v2189, 4294901760
        %3969 = vmatmul.mubr.f32.gmra.mrb[0].mxu0 %v3968
        %v3970 = vpop.f32.mrb[0].mxu0
        %v3971 = vadd.f32 %v3706, %v3970
        %v3972 = vpop.f32.mrb[0].mxu0
        %3973 = vmatprep.mubr.f32.mxu0 0.0
        %v3974 = vand.u32 %v2190, 4294901760
        %3975 = vmatmul.mubr.f32.gmra.mrb[0].mxu0 %v3974
        %v3976 = vpop.f32.mrb[0].mxu0
        %v3977 = vadd.f32 %v3716, %v3976
        %v3978 = vpop.f32.mrb[0].mxu0
        %3979 = vmatprep.mubr.f32.mxu0 0.0
        %v3980 = vand.u32 %v2191, 4294901760
        %3981 = vmatmul.mubr.f32.gmra.mrb[0].mxu0 %v3980
        %v3982 = vpop.f32.mrb[0].mxu0
        %v3983 = vadd.f32 %v3726, %v3982
        %v3984 = vpop.f32.mrb[0].mxu0
        %3985 = vmatprep.mubr.f32.mxu0 0.0
        %v3986 = vand.u32 %v2192, 4294901760
        %3987 = vmatmul.mubr.f32.gmra.mrb[0].mxu0 %v3986
        %v3988 = vpop.f32.mrb[0].mxu0
        %v3989 = vadd.f32 %v3736, %v3988
        %v3990 = vpop.f32.mrb[0].mxu0
        %3991 = vmatprep.mubr.f32.mxu0 0.0
        %v3992 = vand.u32 %v2193, 4294901760
        %3993 = vmatmul.mubr.f32.gmra.mrb[0].mxu0 %v3992
        %v3994 = vpop.f32.mrb[0].mxu0
        %v3995 = vadd.f32 %v3746, %v3994
        %v3996 = vpop.f32.mrb[0].mxu0
        %3997 = vmatprep.mubr.f32.mxu0 0.0
        %v3998 = vand.u32 %v2194, 4294901760
        %3999 = vmatmul.mubr.f32.gmra.mrb[0].mxu0 %v3998
        %v4000 = vpop.f32.mrb[0].mxu0
        %v4001 = vadd.f32 %v3756, %v4000
        %v4002 = vpop.f32.mrb[0].mxu0
        %4003 = vmatprep.mubr.f32.mxu0 0.0
        %v4004 = vand.u32 %v2195, 4294901760
        %4005 = vmatmul.mubr.f32.gmra.mrb[0].mxu0 %v4004
        %v4006 = vpop.f32.mrb[0].mxu0
        %v4007 = vadd.f32 %v3766, %v4006
        %v4008 = vpop.f32.mrb[0].mxu0
        %4009 = vdwg.mxu0
        %4010 = vmatprep.subr.mxu0 0.0
        %v4011 = vand.u32 %v3505, 4294901760
        %v4012 = vsub.f32 %v3505, %v4011
        %4013 = vmatpush1.msra.mxu0 %v4012
        %4014 = vmatprep.subr.mxu0 0.0
        %v4015 = vand.u32 %v3506, 4294901760
        %v4016 = vsub.f32 %v3506, %v4015
        %4017 = vmatpush1.msra.mxu0 %v4016
        %4018 = vmatprep.subr.mxu0 0.0
        %v4019 = vand.u32 %v3507, 4294901760
        %v4020 = vsub.f32 %v3507, %v4019
        %4021 = vmatpush1.msra.mxu0 %v4020
        %4022 = vmatprep.subr.mxu0 0.0
        %v4023 = vand.u32 %v3508, 4294901760
        %v4024 = vsub.f32 %v3508, %v4023
        %4025 = vmatpush1.msra.mxu0 %v4024
        %4026 = vmatprep.subr.mxu0 0.0
        %v4027 = vand.u32 %v3509, 4294901760
        %v4028 = vsub.f32 %v3509, %v4027
        %4029 = vmatpush1.msra.mxu0 %v4028
        %4030 = vmatprep.subr.mxu0 0.0
        %v4031 = vand.u32 %v3510, 4294901760
        %v4032 = vsub.f32 %v3510, %v4031
        %4033 = vmatpush1.msra.mxu0 %v4032
        %4034 = vmatprep.subr.mxu0 0.0
        %v4035 = vand.u32 %v3511, 4294901760
        %v4036 = vsub.f32 %v3511, %v4035
        %4037 = vmatpush1.msra.mxu0 %v4036
        %4038 = vmatprep.subr.mxu0 0.0
        %v4039 = vand.u32 %v3512, 4294901760
        %v4040 = vsub.f32 %v3512, %v4039
        %4041 = vmatpush1.msra.mxu0 %v4040
        %4042 = vmatprep.subr.mxu0 0.0
        %v4043 = vand.u32 %v3513, 4294901760
        %v4044 = vsub.f32 %v3513, %v4043
        %4045 = vmatpush1.msra.mxu0 %v4044
        %4046 = vmatprep.subr.mxu0 0.0
        %v4047 = vand.u32 %v3514, 4294901760
        %v4048 = vsub.f32 %v3514, %v4047
        %4049 = vmatpush1.msra.mxu0 %v4048
        %4050 = vmatprep.subr.mxu0 0.0
        %v4051 = vand.u32 %v3515, 4294901760
        %v4052 = vsub.f32 %v3515, %v4051
        %4053 = vmatpush1.msra.mxu0 %v4052
        %4054 = vmatprep.subr.mxu0 0.0
        %v4055 = vand.u32 %v3516, 4294901760
        %v4056 = vsub.f32 %v3516, %v4055
        %4057 = vmatpush1.msra.mxu0 %v4056
        %4058 = vmatprep.subr.mxu0 0.0
        %v4059 = vand.u32 %v3517, 4294901760
        %v4060 = vsub.f32 %v3517, %v4059
        %4061 = vmatpush1.msra.mxu0 %v4060
        %4062 = vmatprep.subr.mxu0 0.0
        %v4063 = vand.u32 %v3518, 4294901760
        %v4064 = vsub.f32 %v3518, %v4063
        %4065 = vmatpush1.msra.mxu0 %v4064
        %4066 = vmatprep.subr.mxu0 0.0
        %v4067 = vand.u32 %v3519, 4294901760
        %v4068 = vsub.f32 %v3519, %v4067
        %4069 = vmatpush1.msra.mxu0 %v4068
        %4070 = vmatprep.subr.mxu0 0.0
        %v4071 = vand.u32 %v3520, 4294901760
        %v4072 = vsub.f32 %v3520, %v4071
        %4073 = vmatpush1.msra.mxu0 %v4072
        %4074 = vmatprep.subr.mxu0 0.0
        %4075 = vmatpush1.msra.mxu0 0.0
        %4076 = vmatprep.subr.mxu0 0.0
        %4077 = vmatpush1.msra.mxu0 0.0
        %4078 = vmatprep.subr.mxu0 0.0
        %4079 = vmatpush1.msra.mxu0 0.0
        %4080 = vmatprep.subr.mxu0 0.0
        %4081 = vmatpush1.msra.mxu0 0.0
        %4082 = vmatprep.subr.mxu0 0.0
        %4083 = vmatpush1.msra.mxu0 0.0
        %4084 = vmatprep.subr.mxu0 0.0
        %4085 = vmatpush1.msra.mxu0 0.0
        %4086 = vmatprep.subr.mxu0 0.0
        %4087 = vmatpush1.msra.mxu0 0.0
        %4088 = vmatprep.subr.mxu0 0.0
        %4089 = vmatpush1.msra.mxu0 0.0
        %4090 = vmatprep.subr.mxu0 0.0
        %4091 = vmatpush1.msra.mxu0 0.0
        %4092 = vmatprep.subr.mxu0 0.0
        %4093 = vmatpush1.msra.mxu0 0.0
        %4094 = vmatprep.subr.mxu0 0.0
        %4095 = vmatpush1.msra.mxu0 0.0
        %4096 = vmatprep.subr.mxu0 0.0
        %4097 = vmatpush1.msra.mxu0 0.0
        %4098 = vmatprep.subr.mxu0 0.0
        %4099 = vmatpush1.msra.mxu0 0.0
        %4100 = vmatprep.subr.mxu0 0.0
        %4101 = vmatpush1.msra.mxu0 0.0
        %4102 = vmatprep.subr.mxu0 0.0
        %4103 = vmatpush1.msra.mxu0 0.0
        %4104 = vmatprep.subr.mxu0 0.0
        %4105 = vmatpush1.msra.mxu0 0.0
        %4106 = vmatprep.mubr.f32.mxu0 0.0
        %v4107 = vand.u32 %v2180, 4294901760
        %v4108 = vsub.f32 %v2180, %v4107
        %4109 = vmatmul.mubr.f32.gmra.mrb[0].mxu0 %v4108
        %v4110 = vpop.f32.mrb[0].mxu0
        %v4111 = vadd.f32 %v3917, %v4110
        %v4112 = vpop.f32.mrb[0].mxu0
        %4113 = vmatprep.mubr.f32.mxu0 0.0
        %v4114 = vand.u32 %v2181, 4294901760
        %v4115 = vsub.f32 %v2181, %v4114
        %4116 = vmatmul.mubr.f32.gmra.mrb[0].mxu0 %v4115
        %v4117 = vpop.f32.mrb[0].mxu0
        %v4118 = vadd.f32 %v3923, %v4117
        %v4119 = vpop.f32.mrb[0].mxu0
        %4120 = vmatprep.mubr.f32.mxu0 0.0
        %v4121 = vand.u32 %v2182, 4294901760
        %v4122 = vsub.f32 %v2182, %v4121
        %4123 = vmatmul.mubr.f32.gmra.mrb[0].mxu0 %v4122
        %v4124 = vpop.f32.mrb[0].mxu0
        %v4125 = vadd.f32 %v3929, %v4124
        %v4126 = vpop.f32.mrb[0].mxu0
        %4127 = vmatprep.mubr.f32.mxu0 0.0
        %v4128 = vand.u32 %v2183, 4294901760
        %v4129 = vsub.f32 %v2183, %v4128
        %4130 = vmatmul.mubr.f32.gmra.mrb[0].mxu0 %v4129
        %v4131 = vpop.f32.mrb[0].mxu0
        %v4132 = vadd.f32 %v3935, %v4131
        %v4133 = vpop.f32.mrb[0].mxu0
        %4134 = vmatprep.mubr.f32.mxu0 0.0
        %v4135 = vand.u32 %v2184, 4294901760
        %v4136 = vsub.f32 %v2184, %v4135
        %4137 = vmatmul.mubr.f32.gmra.mrb[0].mxu0 %v4136
        %v4138 = vpop.f32.mrb[0].mxu0
        %v4139 = vadd.f32 %v3941, %v4138
        %v4140 = vpop.f32.mrb[0].mxu0
        %4141 = vmatprep.mubr.f32.mxu0 0.0
        %v4142 = vand.u32 %v2185, 4294901760
        %v4143 = vsub.f32 %v2185, %v4142
        %4144 = vmatmul.mubr.f32.gmra.mrb[0].mxu0 %v4143
        %v4145 = vpop.f32.mrb[0].mxu0
        %v4146 = vadd.f32 %v3947, %v4145
        %v4147 = vpop.f32.mrb[0].mxu0
        %4148 = vmatprep.mubr.f32.mxu0 0.0
        %v4149 = vand.u32 %v2186, 4294901760
        %v4150 = vsub.f32 %v2186, %v4149
        %4151 = vmatmul.mubr.f32.gmra.mrb[0].mxu0 %v4150
        %v4152 = vpop.f32.mrb[0].mxu0
        %v4153 = vadd.f32 %v3953, %v4152
        %v4154 = vpop.f32.mrb[0].mxu0
        %4155 = vmatprep.mubr.f32.mxu0 0.0
        %v4156 = vand.u32 %v2187, 4294901760
        %v4157 = vsub.f32 %v2187, %v4156
        %4158 = vmatmul.mubr.f32.gmra.mrb[0].mxu0 %v4157
        %v4159 = vpop.f32.mrb[0].mxu0
        %v4160 = vadd.f32 %v3959, %v4159
        %v4161 = vpop.f32.mrb[0].mxu0
        %4162 = vmatprep.mubr.f32.mxu0 0.0
        %v4163 = vand.u32 %v2188, 4294901760
        %v4164 = vsub.f32 %v2188, %v4163
        %4165 = vmatmul.mubr.f32.gmra.mrb[0].mxu0 %v4164
        %v4166 = vpop.f32.mrb[0].mxu0
        %v4167 = vadd.f32 %v3965, %v4166
        %v4168 = vpop.f32.mrb[0].mxu0
        %4169 = vmatprep.mubr.f32.mxu0 0.0
        %v4170 = vand.u32 %v2189, 4294901760
        %v4171 = vsub.f32 %v2189, %v4170
        %4172 = vmatmul.mubr.f32.gmra.mrb[0].mxu0 %v4171
        %v4173 = vpop.f32.mrb[0].mxu0
        %v4174 = vadd.f32 %v3971, %v4173
        %v4175 = vpop.f32.mrb[0].mxu0
        %4176 = vmatprep.mubr.f32.mxu0 0.0
        %v4177 = vand.u32 %v2190, 4294901760
        %v4178 = vsub.f32 %v2190, %v4177
        %4179 = vmatmul.mubr.f32.gmra.mrb[0].mxu0 %v4178
        %v4180 = vpop.f32.mrb[0].mxu0
        %v4181 = vadd.f32 %v3977, %v4180
        %v4182 = vpop.f32.mrb[0].mxu0
        %4183 = vmatprep.mubr.f32.mxu0 0.0
        %v4184 = vand.u32 %v2191, 4294901760
        %v4185 = vsub.f32 %v2191, %v4184
        %4186 = vmatmul.mubr.f32.gmra.mrb[0].mxu0 %v4185
        %v4187 = vpop.f32.mrb[0].mxu0
        %v4188 = vadd.f32 %v3983, %v4187
        %v4189 = vpop.f32.mrb[0].mxu0
        %4190 = vmatprep.mubr.f32.mxu0 0.0
        %v4191 = vand.u32 %v2192, 4294901760
        %v4192 = vsub.f32 %v2192, %v4191
        %4193 = vmatmul.mubr.f32.gmra.mrb[0].mxu0 %v4192
        %v4194 = vpop.f32.mrb[0].mxu0
        %v4195 = vadd.f32 %v3989, %v4194
        %v4196 = vpop.f32.mrb[0].mxu0
        %4197 = vmatprep.mubr.f32.mxu0 0.0
        %v4198 = vand.u32 %v2193, 4294901760
        %v4199 = vsub.f32 %v2193, %v4198
        %4200 = vmatmul.mubr.f32.gmra.mrb[0].mxu0 %v4199
        %v4201 = vpop.f32.mrb[0].mxu0
        %v4202 = vadd.f32 %v3995, %v4201
        %v4203 = vpop.f32.mrb[0].mxu0
        %4204 = vmatprep.mubr.f32.mxu0 0.0
        %v4205 = vand.u32 %v2194, 4294901760
        %v4206 = vsub.f32 %v2194, %v4205
        %4207 = vmatmul.mubr.f32.gmra.mrb[0].mxu0 %v4206
        %v4208 = vpop.f32.mrb[0].mxu0
        %v4209 = vadd.f32 %v4001, %v4208
        %v4210 = vpop.f32.mrb[0].mxu0
        %4211 = vmatprep.mubr.f32.mxu0 0.0
        %v4212 = vand.u32 %v2195, 4294901760
        %v4213 = vsub.f32 %v2195, %v4212
        %4214 = vmatmul.mubr.f32.gmra.mrb[0].mxu0 %v4213
        %v4215 = vpop.f32.mrb[0].mxu0
        %v4216 = vadd.f32 %v4007, %v4215
        %v4217 = vpop.f32.mrb[0].mxu0
        %4218 = vdwg.mxu0
        %4219 = vmatprep.subr.mxu0 0.0
        %v4220 = vand.u32 %v3505, 4294901760
        %4221 = vmatpush1.msra.mxu0 %v4220
        %4222 = vmatprep.subr.mxu0 0.0
        %v4223 = vand.u32 %v3506, 4294901760
        %4224 = vmatpush1.msra.mxu0 %v4223
        %4225 = vmatprep.subr.mxu0 0.0
        %v4226 = vand.u32 %v3507, 4294901760
        %4227 = vmatpush1.msra.mxu0 %v4226
        %4228 = vmatprep.subr.mxu0 0.0
        %v4229 = vand.u32 %v3508, 4294901760
        %4230 = vmatpush1.msra.mxu0 %v4229
        %4231 = vmatprep.subr.mxu0 0.0
        %v4232 = vand.u32 %v3509, 4294901760
        %4233 = vmatpush1.msra.mxu0 %v4232
        %4234 = vmatprep.subr.mxu0 0.0
        %v4235 = vand.u32 %v3510, 4294901760
        %4236 = vmatpush1.msra.mxu0 %v4235
        %4237 = vmatprep.subr.mxu0 0.0
        %v4238 = vand.u32 %v3511, 4294901760
        %4239 = vmatpush1.msra.mxu0 %v4238
        %4240 = vmatprep.subr.mxu0 0.0
        %v4241 = vand.u32 %v3512, 4294901760
        %4242 = vmatpush1.msra.mxu0 %v4241
        %4243 = vmatprep.subr.mxu0 0.0
        %v4244 = vand.u32 %v3513, 4294901760
        %4245 = vmatpush1.msra.mxu0 %v4244
        %4246 = vmatprep.subr.mxu0 0.0
        %v4247 = vand.u32 %v3514, 4294901760
        %4248 = vmatpush1.msra.mxu0 %v4247
        %4249 = vmatprep.subr.mxu0 0.0
        %v4250 = vand.u32 %v3515, 4294901760
        %4251 = vmatpush1.msra.mxu0 %v4250
        %4252 = vmatprep.subr.mxu0 0.0
        %v4253 = vand.u32 %v3516, 4294901760
        %4254 = vmatpush1.msra.mxu0 %v4253
        %4255 = vmatprep.subr.mxu0 0.0
        %v4256 = vand.u32 %v3517, 4294901760
        %4257 = vmatpush1.msra.mxu0 %v4256
        %4258 = vmatprep.subr.mxu0 0.0
        %v4259 = vand.u32 %v3518, 4294901760
        %4260 = vmatpush1.msra.mxu0 %v4259
        %4261 = vmatprep.subr.mxu0 0.0
        %v4262 = vand.u32 %v3519, 4294901760
        %4263 = vmatpush1.msra.mxu0 %v4262
        %4264 = vmatprep.subr.mxu0 0.0
        %v4265 = vand.u32 %v3520, 4294901760
        %4266 = vmatpush1.msra.mxu0 %v4265
        %4267 = vmatprep.subr.mxu0 0.0
        %4268 = vmatpush1.msra.mxu0 0.0
        %4269 = vmatprep.subr.mxu0 0.0
        %4270 = vmatpush1.msra.mxu0 0.0
        %4271 = vmatprep.subr.mxu0 0.0
        %4272 = vmatpush1.msra.mxu0 0.0
        %4273 = vmatprep.subr.mxu0 0.0
        %4274 = vmatpush1.msra.mxu0 0.0
        %4275 = vmatprep.subr.mxu0 0.0
        %4276 = vmatpush1.msra.mxu0 0.0
        %4277 = vmatprep.subr.mxu0 0.0
        %4278 = vmatpush1.msra.mxu0 0.0
        %4279 = vmatprep.subr.mxu0 0.0
        %4280 = vmatpush1.msra.mxu0 0.0
        %4281 = vmatprep.subr.mxu0 0.0
        %4282 = vmatpush1.msra.mxu0 0.0
        %4283 = vmatprep.subr.mxu0 0.0
        %4284 = vmatpush1.msra.mxu0 0.0
        %4285 = vmatprep.subr.mxu0 0.0
        %4286 = vmatpush1.msra.mxu0 0.0
        %4287 = vmatprep.subr.mxu0 0.0
        %4288 = vmatpush1.msra.mxu0 0.0
        %4289 = vmatprep.subr.mxu0 0.0
        %4290 = vmatpush1.msra.mxu0 0.0
        %4291 = vmatprep.subr.mxu0 0.0
        %4292 = vmatpush1.msra.mxu0 0.0
        %4293 = vmatprep.subr.mxu0 0.0
        %4294 = vmatpush1.msra.mxu0 0.0
        %4295 = vmatprep.subr.mxu0 0.0
        %4296 = vmatpush1.msra.mxu0 0.0
        %4297 = vmatprep.subr.mxu0 0.0
        %4298 = vmatpush1.msra.mxu0 0.0
        %4299 = vmatprep.mubr.f32.mxu0 0.0
        %v4300 = vand.u32 %v2180, 4294901760
        %v4301 = vsub.f32 %v2180, %v4300
        %v4302 = vand.u32 %v4301, 4294901760
        %4303 = vmatmul.mubr.f32.gmra.mrb[0].mxu0 %v4302
        %v4304 = vpop.f32.mrb[0].mxu0
        %v4305 = vadd.f32 %v4111, %v4304
        %v4306 = vpop.f32.mrb[0].mxu0
        %4307 = vmatprep.mubr.f32.mxu0 0.0
        %v4308 = vand.u32 %v2181, 4294901760
        %v4309 = vsub.f32 %v2181, %v4308
        %v4310 = vand.u32 %v4309, 4294901760
        %4311 = vmatmul.mubr.f32.gmra.mrb[0].mxu0 %v4310
        %v4312 = vpop.f32.mrb[0].mxu0
        %v4313 = vadd.f32 %v4118, %v4312
        %v4314 = vpop.f32.mrb[0].mxu0
        %4315 = vmatprep.mubr.f32.mxu0 0.0
        %v4316 = vand.u32 %v2182, 4294901760
        %v4317 = vsub.f32 %v2182, %v4316
        %v4318 = vand.u32 %v4317, 4294901760
        %4319 = vmatmul.mubr.f32.gmra.mrb[0].mxu0 %v4318
        %v4320 = vpop.f32.mrb[0].mxu0
        %v4321 = vadd.f32 %v4125, %v4320
        %v4322 = vpop.f32.mrb[0].mxu0
        %4323 = vmatprep.mubr.f32.mxu0 0.0
        %v4324 = vand.u32 %v2183, 4294901760
        %v4325 = vsub.f32 %v2183, %v4324
        %v4326 = vand.u32 %v4325, 4294901760
        %4327 = vmatmul.mubr.f32.gmra.mrb[0].mxu0 %v4326
        %v4328 = vpop.f32.mrb[0].mxu0
        %v4329 = vadd.f32 %v4132, %v4328
        %v4330 = vpop.f32.mrb[0].mxu0
        %4331 = vmatprep.mubr.f32.mxu0 0.0
        %v4332 = vand.u32 %v2184, 4294901760
        %v4333 = vsub.f32 %v2184, %v4332
        %v4334 = vand.u32 %v4333, 4294901760
        %4335 = vmatmul.mubr.f32.gmra.mrb[0].mxu0 %v4334
        %v4336 = vpop.f32.mrb[0].mxu0
        %v4337 = vadd.f32 %v4139, %v4336
        %v4338 = vpop.f32.mrb[0].mxu0
        %4339 = vmatprep.mubr.f32.mxu0 0.0
        %v4340 = vand.u32 %v2185, 4294901760
        %v4341 = vsub.f32 %v2185, %v4340
        %v4342 = vand.u32 %v4341, 4294901760
        %4343 = vmatmul.mubr.f32.gmra.mrb[0].mxu0 %v4342
        %v4344 = vpop.f32.mrb[0].mxu0
        %v4345 = vadd.f32 %v4146, %v4344
        %v4346 = vpop.f32.mrb[0].mxu0
        %4347 = vmatprep.mubr.f32.mxu0 0.0
        %v4348 = vand.u32 %v2186, 4294901760
        %v4349 = vsub.f32 %v2186, %v4348
        %v4350 = vand.u32 %v4349, 4294901760
        %4351 = vmatmul.mubr.f32.gmra.mrb[0].mxu0 %v4350
        %v4352 = vpop.f32.mrb[0].mxu0
        %v4353 = vadd.f32 %v4153, %v4352
        %v4354 = vpop.f32.mrb[0].mxu0
        %4355 = vmatprep.mubr.f32.mxu0 0.0
        %v4356 = vand.u32 %v2187, 4294901760
        %v4357 = vsub.f32 %v2187, %v4356
        %v4358 = vand.u32 %v4357, 4294901760
        %4359 = vmatmul.mubr.f32.gmra.mrb[0].mxu0 %v4358
        %v4360 = vpop.f32.mrb[0].mxu0
        %v4361 = vadd.f32 %v4160, %v4360
        %v4362 = vpop.f32.mrb[0].mxu0
        %4363 = vmatprep.mubr.f32.mxu0 0.0
        %v4364 = vand.u32 %v2188, 4294901760
        %v4365 = vsub.f32 %v2188, %v4364
        %v4366 = vand.u32 %v4365, 4294901760
        %4367 = vmatmul.mubr.f32.gmra.mrb[0].mxu0 %v4366
        %v4368 = vpop.f32.mrb[0].mxu0
        %v4369 = vadd.f32 %v4167, %v4368
        %v4370 = vpop.f32.mrb[0].mxu0
        %4371 = vmatprep.mubr.f32.mxu0 0.0
        %v4372 = vand.u32 %v2189, 4294901760
        %v4373 = vsub.f32 %v2189, %v4372
        %v4374 = vand.u32 %v4373, 4294901760
        %4375 = vmatmul.mubr.f32.gmra.mrb[0].mxu0 %v4374
        %v4376 = vpop.f32.mrb[0].mxu0
        %v4377 = vadd.f32 %v4174, %v4376
        %v4378 = vpop.f32.mrb[0].mxu0
        %4379 = vmatprep.mubr.f32.mxu0 0.0
        %v4380 = vand.u32 %v2190, 4294901760
        %v4381 = vsub.f32 %v2190, %v4380
        %v4382 = vand.u32 %v4381, 4294901760
        %4383 = vmatmul.mubr.f32.gmra.mrb[0].mxu0 %v4382
        %v4384 = vpop.f32.mrb[0].mxu0
        %v4385 = vadd.f32 %v4181, %v4384
        %v4386 = vpop.f32.mrb[0].mxu0
        %4387 = vmatprep.mubr.f32.mxu0 0.0
        %v4388 = vand.u32 %v2191, 4294901760
        %v4389 = vsub.f32 %v2191, %v4388
        %v4390 = vand.u32 %v4389, 4294901760
        %4391 = vmatmul.mubr.f32.gmra.mrb[0].mxu0 %v4390
        %v4392 = vpop.f32.mrb[0].mxu0
        %v4393 = vadd.f32 %v4188, %v4392
        %v4394 = vpop.f32.mrb[0].mxu0
        %4395 = vmatprep.mubr.f32.mxu0 0.0
        %v4396 = vand.u32 %v2192, 4294901760
        %v4397 = vsub.f32 %v2192, %v4396
        %v4398 = vand.u32 %v4397, 4294901760
        %4399 = vmatmul.mubr.f32.gmra.mrb[0].mxu0 %v4398
        %v4400 = vpop.f32.mrb[0].mxu0
        %v4401 = vadd.f32 %v4195, %v4400
        %v4402 = vpop.f32.mrb[0].mxu0
        %4403 = vmatprep.mubr.f32.mxu0 0.0
        %v4404 = vand.u32 %v2193, 4294901760
        %v4405 = vsub.f32 %v2193, %v4404
        %v4406 = vand.u32 %v4405, 4294901760
        %4407 = vmatmul.mubr.f32.gmra.mrb[0].mxu0 %v4406
        %v4408 = vpop.f32.mrb[0].mxu0
        %v4409 = vadd.f32 %v4202, %v4408
        %v4410 = vpop.f32.mrb[0].mxu0
        %4411 = vmatprep.mubr.f32.mxu0 0.0
        %v4412 = vand.u32 %v2194, 4294901760
        %v4413 = vsub.f32 %v2194, %v4412
        %v4414 = vand.u32 %v4413, 4294901760
        %4415 = vmatmul.mubr.f32.gmra.mrb[0].mxu0 %v4414
        %v4416 = vpop.f32.mrb[0].mxu0
        %v4417 = vadd.f32 %v4209, %v4416
        %v4418 = vpop.f32.mrb[0].mxu0
        %4419 = vmatprep.mubr.f32.mxu0 0.0
        %v4420 = vand.u32 %v2195, 4294901760
        %v4421 = vsub.f32 %v2195, %v4420
        %v4422 = vand.u32 %v4421, 4294901760
        %4423 = vmatmul.mubr.f32.gmra.mrb[0].mxu0 %v4422
        %v4424 = vpop.f32.mrb[0].mxu0
        %v4425 = vadd.f32 %v4216, %v4424
        %v4426 = vpop.f32.mrb[0].mxu0
        %4427 = vdwg.mxu0
        %4428 = vmatprep.subr.mxu0 0.0
        %v4429 = vand.u32 %v3505, 4294901760
        %v4430 = vsub.f32 %v3505, %v4429
        %v4431 = vand.u32 %v4430, 4294901760
        %4432 = vmatpush1.msra.mxu0 %v4431
        %4433 = vmatprep.subr.mxu0 0.0
        %v4434 = vand.u32 %v3506, 4294901760
        %v4435 = vsub.f32 %v3506, %v4434
        %v4436 = vand.u32 %v4435, 4294901760
        %4437 = vmatpush1.msra.mxu0 %v4436
        %4438 = vmatprep.subr.mxu0 0.0
        %v4439 = vand.u32 %v3507, 4294901760
        %v4440 = vsub.f32 %v3507, %v4439
        %v4441 = vand.u32 %v4440, 4294901760
        %4442 = vmatpush1.msra.mxu0 %v4441
        %4443 = vmatprep.subr.mxu0 0.0
        %v4444 = vand.u32 %v3508, 4294901760
        %v4445 = vsub.f32 %v3508, %v4444
        %v4446 = vand.u32 %v4445, 4294901760
        %4447 = vmatpush1.msra.mxu0 %v4446
        %4448 = vmatprep.subr.mxu0 0.0
        %v4449 = vand.u32 %v3509, 4294901760
        %v4450 = vsub.f32 %v3509, %v4449
        %v4451 = vand.u32 %v4450, 4294901760
        %4452 = vmatpush1.msra.mxu0 %v4451
        %4453 = vmatprep.subr.mxu0 0.0
        %v4454 = vand.u32 %v3510, 4294901760
        %v4455 = vsub.f32 %v3510, %v4454
        %v4456 = vand.u32 %v4455, 4294901760
        %4457 = vmatpush1.msra.mxu0 %v4456
        %4458 = vmatprep.subr.mxu0 0.0
        %v4459 = vand.u32 %v3511, 4294901760
        %v4460 = vsub.f32 %v3511, %v4459
        %v4461 = vand.u32 %v4460, 4294901760
        %4462 = vmatpush1.msra.mxu0 %v4461
        %4463 = vmatprep.subr.mxu0 0.0
        %v4464 = vand.u32 %v3512, 4294901760
        %v4465 = vsub.f32 %v3512, %v4464
        %v4466 = vand.u32 %v4465, 4294901760
        %4467 = vmatpush1.msra.mxu0 %v4466
        %4468 = vmatprep.subr.mxu0 0.0
        %v4469 = vand.u32 %v3513, 4294901760
        %v4470 = vsub.f32 %v3513, %v4469
        %v4471 = vand.u32 %v4470, 4294901760
        %4472 = vmatpush1.msra.mxu0 %v4471
        %4473 = vmatprep.subr.mxu0 0.0
        %v4474 = vand.u32 %v3514, 4294901760
        %v4475 = vsub.f32 %v3514, %v4474
        %v4476 = vand.u32 %v4475, 4294901760
        %4477 = vmatpush1.msra.mxu0 %v4476
        %4478 = vmatprep.subr.mxu0 0.0
        %v4479 = vand.u32 %v3515, 4294901760
        %v4480 = vsub.f32 %v3515, %v4479
        %v4481 = vand.u32 %v4480, 4294901760
        %4482 = vmatpush1.msra.mxu0 %v4481
        %4483 = vmatprep.subr.mxu0 0.0
        %v4484 = vand.u32 %v3516, 4294901760
        %v4485 = vsub.f32 %v3516, %v4484
        %v4486 = vand.u32 %v4485, 4294901760
        %4487 = vmatpush1.msra.mxu0 %v4486
        %4488 = vmatprep.subr.mxu0 0.0
        %v4489 = vand.u32 %v3517, 4294901760
        %v4490 = vsub.f32 %v3517, %v4489
        %v4491 = vand.u32 %v4490, 4294901760
        %4492 = vmatpush1.msra.mxu0 %v4491
        %4493 = vmatprep.subr.mxu0 0.0
        %v4494 = vand.u32 %v3518, 4294901760
        %v4495 = vsub.f32 %v3518, %v4494
        %v4496 = vand.u32 %v4495, 4294901760
        %4497 = vmatpush1.msra.mxu0 %v4496
        %4498 = vmatprep.subr.mxu0 0.0
        %v4499 = vand.u32 %v3519, 4294901760
        %v4500 = vsub.f32 %v3519, %v4499
        %v4501 = vand.u32 %v4500, 4294901760
        %4502 = vmatpush1.msra.mxu0 %v4501
        %4503 = vmatprep.subr.mxu0 0.0
        %v4504 = vand.u32 %v3520, 4294901760
        %v4505 = vsub.f32 %v3520, %v4504
        %v4506 = vand.u32 %v4505, 4294901760
        %4507 = vmatpush1.msra.mxu0 %v4506
        %4508 = vmatprep.subr.mxu0 0.0
        %4509 = vmatpush1.msra.mxu0 0.0
        %4510 = vmatprep.subr.mxu0 0.0
        %4511 = vmatpush1.msra.mxu0 0.0
        %4512 = vmatprep.subr.mxu0 0.0
        %4513 = vmatpush1.msra.mxu0 0.0
        %4514 = vmatprep.subr.mxu0 0.0
        %4515 = vmatpush1.msra.mxu0 0.0
        %4516 = vmatprep.subr.mxu0 0.0
        %4517 = vmatpush1.msra.mxu0 0.0
        %4518 = vmatprep.subr.mxu0 0.0
        %4519 = vmatpush1.msra.mxu0 0.0
        %4520 = vmatprep.subr.mxu0 0.0
        %4521 = vmatpush1.msra.mxu0 0.0
        %4522 = vmatprep.subr.mxu0 0.0
        %4523 = vmatpush1.msra.mxu0 0.0
        %4524 = vmatprep.subr.mxu0 0.0
        %4525 = vmatpush1.msra.mxu0 0.0
        %4526 = vmatprep.subr.mxu0 0.0
        %4527 = vmatpush1.msra.mxu0 0.0
        %4528 = vmatprep.subr.mxu0 0.0
        %4529 = vmatpush1.msra.mxu0 0.0
        %4530 = vmatprep.subr.mxu0 0.0
        %4531 = vmatpush1.msra.mxu0 0.0
        %4532 = vmatprep.subr.mxu0 0.0
        %4533 = vmatpush1.msra.mxu0 0.0
        %4534 = vmatprep.subr.mxu0 0.0
        %4535 = vmatpush1.msra.mxu0 0.0
        %4536 = vmatprep.subr.mxu0 0.0
        %4537 = vmatpush1.msra.mxu0 0.0
        %4538 = vmatprep.subr.mxu0 0.0
        %4539 = vmatpush1.msra.mxu0 0.0
        %4540 = vmatprep.mubr.f32.mxu0 0.0
        %v4541 = vand.u32 %v2180, 4294901760
        %4542 = vmatmul.mubr.f32.gmra.mrb[0].mxu0 %v4541
        %v4543 = vpop.f32.mrb[0].mxu0
        %v4544 = vadd.f32 %v4305, %v4543
        %v4545 = vpop.f32.mrb[0].mxu0
        %4546 = vmatprep.mubr.f32.mxu0 0.0
        %v4547 = vand.u32 %v2181, 4294901760
        %4548 = vmatmul.mubr.f32.gmra.mrb[0].mxu0 %v4547
        %v4549 = vpop.f32.mrb[0].mxu0
        %v4550 = vadd.f32 %v4313, %v4549
        %v4551 = vpop.f32.mrb[0].mxu0
        %4552 = vmatprep.mubr.f32.mxu0 0.0
        %v4553 = vand.u32 %v2182, 4294901760
        %4554 = vmatmul.mubr.f32.gmra.mrb[0].mxu0 %v4553
        %v4555 = vpop.f32.mrb[0].mxu0
        %v4556 = vadd.f32 %v4321, %v4555
        %v4557 = vpop.f32.mrb[0].mxu0
        %4558 = vmatprep.mubr.f32.mxu0 0.0
        %v4559 = vand.u32 %v2183, 4294901760
        %4560 = vmatmul.mubr.f32.gmra.mrb[0].mxu0 %v4559
        %v4561 = vpop.f32.mrb[0].mxu0
        %v4562 = vadd.f32 %v4329, %v4561
        %v4563 = vpop.f32.mrb[0].mxu0
        %4564 = vmatprep.mubr.f32.mxu0 0.0
        %v4565 = vand.u32 %v2184, 4294901760
        %4566 = vmatmul.mubr.f32.gmra.mrb[0].mxu0 %v4565
        %v4567 = vpop.f32.mrb[0].mxu0
        %v4568 = vadd.f32 %v4337, %v4567
        %v4569 = vpop.f32.mrb[0].mxu0
        %4570 = vmatprep.mubr.f32.mxu0 0.0
        %v4571 = vand.u32 %v2185, 4294901760
        %4572 = vmatmul.mubr.f32.gmra.mrb[0].mxu0 %v4571
        %v4573 = vpop.f32.mrb[0].mxu0
        %v4574 = vadd.f32 %v4345, %v4573
        %v4575 = vpop.f32.mrb[0].mxu0
        %4576 = vmatprep.mubr.f32.mxu0 0.0
        %v4577 = vand.u32 %v2186, 4294901760
        %4578 = vmatmul.mubr.f32.gmra.mrb[0].mxu0 %v4577
        %v4579 = vpop.f32.mrb[0].mxu0
        %v4580 = vadd.f32 %v4353, %v4579
        %v4581 = vpop.f32.mrb[0].mxu0
        %4582 = vmatprep.mubr.f32.mxu0 0.0
        %v4583 = vand.u32 %v2187, 4294901760
        %4584 = vmatmul.mubr.f32.gmra.mrb[0].mxu0 %v4583
        %v4585 = vpop.f32.mrb[0].mxu0
        %v4586 = vadd.f32 %v4361, %v4585
        %v4587 = vpop.f32.mrb[0].mxu0
        %4588 = vmatprep.mubr.f32.mxu0 0.0
        %v4589 = vand.u32 %v2188, 4294901760
        %4590 = vmatmul.mubr.f32.gmra.mrb[0].mxu0 %v4589
        %v4591 = vpop.f32.mrb[0].mxu0
        %v4592 = vadd.f32 %v4369, %v4591
        %v4593 = vpop.f32.mrb[0].mxu0
        %4594 = vmatprep.mubr.f32.mxu0 0.0
        %v4595 = vand.u32 %v2189, 4294901760
        %4596 = vmatmul.mubr.f32.gmra.mrb[0].mxu0 %v4595
        %v4597 = vpop.f32.mrb[0].mxu0
        %v4598 = vadd.f32 %v4377, %v4597
        %v4599 = vpop.f32.mrb[0].mxu0
        %4600 = vmatprep.mubr.f32.mxu0 0.0
        %v4601 = vand.u32 %v2190, 4294901760
        %4602 = vmatmul.mubr.f32.gmra.mrb[0].mxu0 %v4601
        %v4603 = vpop.f32.mrb[0].mxu0
        %v4604 = vadd.f32 %v4385, %v4603
        %v4605 = vpop.f32.mrb[0].mxu0
        %4606 = vmatprep.mubr.f32.mxu0 0.0
        %v4607 = vand.u32 %v2191, 4294901760
        %4608 = vmatmul.mubr.f32.gmra.mrb[0].mxu0 %v4607
        %v4609 = vpop.f32.mrb[0].mxu0
        %v4610 = vadd.f32 %v4393, %v4609
        %v4611 = vpop.f32.mrb[0].mxu0
        %4612 = vmatprep.mubr.f32.mxu0 0.0
        %v4613 = vand.u32 %v2192, 4294901760
        %4614 = vmatmul.mubr.f32.gmra.mrb[0].mxu0 %v4613
        %v4615 = vpop.f32.mrb[0].mxu0
        %v4616 = vadd.f32 %v4401, %v4615
        %v4617 = vpop.f32.mrb[0].mxu0
        %4618 = vmatprep.mubr.f32.mxu0 0.0
        %v4619 = vand.u32 %v2193, 4294901760
        %4620 = vmatmul.mubr.f32.gmra.mrb[0].mxu0 %v4619
        %v4621 = vpop.f32.mrb[0].mxu0
        %v4622 = vadd.f32 %v4409, %v4621
        %v4623 = vpop.f32.mrb[0].mxu0
        %4624 = vmatprep.mubr.f32.mxu0 0.0
        %v4625 = vand.u32 %v2194, 4294901760
        %4626 = vmatmul.mubr.f32.gmra.mrb[0].mxu0 %v4625
        %v4627 = vpop.f32.mrb[0].mxu0
        %v4628 = vadd.f32 %v4417, %v4627
        %v4629 = vpop.f32.mrb[0].mxu0
        %4630 = vmatprep.mubr.f32.mxu0 0.0
        %v4631 = vand.u32 %v2195, 4294901760
        %4632 = vmatmul.mubr.f32.gmra.mrb[0].mxu0 %v4631
        %v4633 = vpop.f32.mrb[0].mxu0
        %v4634 = vadd.f32 %v4425, %v4633
        %v4635 = vpop.f32.mrb[0].mxu0
        %4636 = vdwg.mxu0
        %4637 = vmatprep.subr.mxu0 0.0
        %v4638 = vand.u32 %v3505, 4294901760
        %4639 = vmatpush1.msra.mxu0 %v4638
        %4640 = vmatprep.subr.mxu0 0.0
        %v4641 = vand.u32 %v3506, 4294901760
        %4642 = vmatpush1.msra.mxu0 %v4641
        %4643 = vmatprep.subr.mxu0 0.0
        %v4644 = vand.u32 %v3507, 4294901760
        %4645 = vmatpush1.msra.mxu0 %v4644
        %4646 = vmatprep.subr.mxu0 0.0
        %v4647 = vand.u32 %v3508, 4294901760
        %4648 = vmatpush1.msra.mxu0 %v4647
        %4649 = vmatprep.subr.mxu0 0.0
        %v4650 = vand.u32 %v3509, 4294901760
        %4651 = vmatpush1.msra.mxu0 %v4650
        %4652 = vmatprep.subr.mxu0 0.0
        %v4653 = vand.u32 %v3510, 4294901760
        %4654 = vmatpush1.msra.mxu0 %v4653
        %4655 = vmatprep.subr.mxu0 0.0
        %v4656 = vand.u32 %v3511, 4294901760
        %4657 = vmatpush1.msra.mxu0 %v4656
        %4658 = vmatprep.subr.mxu0 0.0
        %v4659 = vand.u32 %v3512, 4294901760
        %4660 = vmatpush1.msra.mxu0 %v4659
        %4661 = vmatprep.subr.mxu0 0.0
        %v4662 = vand.u32 %v3513, 4294901760
        %4663 = vmatpush1.msra.mxu0 %v4662
        %4664 = vmatprep.subr.mxu0 0.0
        %v4665 = vand.u32 %v3514, 4294901760
        %4666 = vmatpush1.msra.mxu0 %v4665
        %4667 = vmatprep.subr.mxu0 0.0
        %v4668 = vand.u32 %v3515, 4294901760
        %4669 = vmatpush1.msra.mxu0 %v4668
        %4670 = vmatprep.subr.mxu0 0.0
        %v4671 = vand.u32 %v3516, 4294901760
        %4672 = vmatpush1.msra.mxu0 %v4671
        %4673 = vmatprep.subr.mxu0 0.0
        %v4674 = vand.u32 %v3517, 4294901760
        %4675 = vmatpush1.msra.mxu0 %v4674
        %4676 = vmatprep.subr.mxu0 0.0
        %v4677 = vand.u32 %v3518, 4294901760
        %4678 = vmatpush1.msra.mxu0 %v4677
        %4679 = vmatprep.subr.mxu0 0.0
        %v4680 = vand.u32 %v3519, 4294901760
        %4681 = vmatpush1.msra.mxu0 %v4680
        %4682 = vmatprep.subr.mxu0 0.0
        %v4683 = vand.u32 %v3520, 4294901760
        %4684 = vmatpush1.msra.mxu0 %v4683
        %4685 = vmatprep.subr.mxu0 0.0
        %4686 = vmatpush1.msra.mxu0 0.0
        %4687 = vmatprep.subr.mxu0 0.0
        %4688 = vmatpush1.msra.mxu0 0.0
        %4689 = vmatprep.subr.mxu0 0.0
        %4690 = vmatpush1.msra.mxu0 0.0
        %4691 = vmatprep.subr.mxu0 0.0
        %4692 = vmatpush1.msra.mxu0 0.0
        %4693 = vmatprep.subr.mxu0 0.0
        %4694 = vmatpush1.msra.mxu0 0.0
        %4695 = vmatprep.subr.mxu0 0.0
        %4696 = vmatpush1.msra.mxu0 0.0
        %4697 = vmatprep.subr.mxu0 0.0
        %4698 = vmatpush1.msra.mxu0 0.0
        %4699 = vmatprep.subr.mxu0 0.0
        %4700 = vmatpush1.msra.mxu0 0.0
        %4701 = vmatprep.subr.mxu0 0.0
        %4702 = vmatpush1.msra.mxu0 0.0
        %4703 = vmatprep.subr.mxu0 0.0
        %4704 = vmatpush1.msra.mxu0 0.0
        %4705 = vmatprep.subr.mxu0 0.0
        %4706 = vmatpush1.msra.mxu0 0.0
        %4707 = vmatprep.subr.mxu0 0.0
        %4708 = vmatpush1.msra.mxu0 0.0
        %4709 = vmatprep.subr.mxu0 0.0
        %4710 = vmatpush1.msra.mxu0 0.0
        %4711 = vmatprep.subr.mxu0 0.0
        %4712 = vmatpush1.msra.mxu0 0.0
        %4713 = vmatprep.subr.mxu0 0.0
        %4714 = vmatpush1.msra.mxu0 0.0
        %4715 = vmatprep.subr.mxu0 0.0
        %4716 = vmatpush1.msra.mxu0 0.0
        %4717 = vmatprep.mubr.f32.mxu0 0.0
        %v4718 = vand.u32 %v2180, 4294901760
        %4719 = vmatmul.mubr.f32.gmra.mrb[0].mxu0 %v4718
        %v4720 = vpop.f32.mrb[0].mxu0
        %v4721 = vadd.f32 %v4544, %v4720
        %v4722 = vpop.f32.mrb[0].mxu0
        %4723 = vmatprep.mubr.f32.mxu0 0.0
        %v4724 = vand.u32 %v2181, 4294901760
        %4725 = vmatmul.mubr.f32.gmra.mrb[0].mxu0 %v4724
        %v4726 = vpop.f32.mrb[0].mxu0
        %v4727 = vadd.f32 %v4550, %v4726
        %v4728 = vpop.f32.mrb[0].mxu0
        %4729 = vmatprep.mubr.f32.mxu0 0.0
        %v4730 = vand.u32 %v2182, 4294901760
        %4731 = vmatmul.mubr.f32.gmra.mrb[0].mxu0 %v4730
        %v4732 = vpop.f32.mrb[0].mxu0
        %v4733 = vadd.f32 %v4556, %v4732
        %v4734 = vpop.f32.mrb[0].mxu0
        %4735 = vmatprep.mubr.f32.mxu0 0.0
        %v4736 = vand.u32 %v2183, 4294901760
        %4737 = vmatmul.mubr.f32.gmra.mrb[0].mxu0 %v4736
        %v4738 = vpop.f32.mrb[0].mxu0
        %v4739 = vadd.f32 %v4562, %v4738
        %v4740 = vpop.f32.mrb[0].mxu0
        %4741 = vmatprep.mubr.f32.mxu0 0.0
        %v4742 = vand.u32 %v2184, 4294901760
        %4743 = vmatmul.mubr.f32.gmra.mrb[0].mxu0 %v4742
        %v4744 = vpop.f32.mrb[0].mxu0
        %v4745 = vadd.f32 %v4568, %v4744
        %v4746 = vpop.f32.mrb[0].mxu0
        %4747 = vmatprep.mubr.f32.mxu0 0.0
        %v4748 = vand.u32 %v2185, 4294901760
        %4749 = vmatmul.mubr.f32.gmra.mrb[0].mxu0 %v4748
        %v4750 = vpop.f32.mrb[0].mxu0
        %v4751 = vadd.f32 %v4574, %v4750
        %v4752 = vpop.f32.mrb[0].mxu0
        %4753 = vmatprep.mubr.f32.mxu0 0.0
        %v4754 = vand.u32 %v2186, 4294901760
        %4755 = vmatmul.mubr.f32.gmra.mrb[0].mxu0 %v4754
        %v4756 = vpop.f32.mrb[0].mxu0
        %v4757 = vadd.f32 %v4580, %v4756
        %v4758 = vpop.f32.mrb[0].mxu0
        %4759 = vmatprep.mubr.f32.mxu0 0.0
        %v4760 = vand.u32 %v2187, 4294901760
        %4761 = vmatmul.mubr.f32.gmra.mrb[0].mxu0 %v4760
        %v4762 = vpop.f32.mrb[0].mxu0
        %v4763 = vadd.f32 %v4586, %v4762
        %v4764 = vpop.f32.mrb[0].mxu0
        %4765 = vmatprep.mubr.f32.mxu0 0.0
        %v4766 = vand.u32 %v2188, 4294901760
        %4767 = vmatmul.mubr.f32.gmra.mrb[0].mxu0 %v4766
        %v4768 = vpop.f32.mrb[0].mxu0
        %v4769 = vadd.f32 %v4592, %v4768
        %v4770 = vpop.f32.mrb[0].mxu0
        %4771 = vmatprep.mubr.f32.mxu0 0.0
        %v4772 = vand.u32 %v2189, 4294901760
        %4773 = vmatmul.mubr.f32.gmra.mrb[0].mxu0 %v4772
        %v4774 = vpop.f32.mrb[0].mxu0
        %v4775 = vadd.f32 %v4598, %v4774
        %v4776 = vpop.f32.mrb[0].mxu0
        %4777 = vmatprep.mubr.f32.mxu0 0.0
        %v4778 = vand.u32 %v2190, 4294901760
        %4779 = vmatmul.mubr.f32.gmra.mrb[0].mxu0 %v4778
        %v4780 = vpop.f32.mrb[0].mxu0
        %v4781 = vadd.f32 %v4604, %v4780
        %v4782 = vpop.f32.mrb[0].mxu0
        %4783 = vmatprep.mubr.f32.mxu0 0.0
        %v4784 = vand.u32 %v2191, 4294901760
        %4785 = vmatmul.mubr.f32.gmra.mrb[0].mxu0 %v4784
        %v4786 = vpop.f32.mrb[0].mxu0
        %v4787 = vadd.f32 %v4610, %v4786
        %v4788 = vpop.f32.mrb[0].mxu0
        %4789 = vmatprep.mubr.f32.mxu0 0.0
        %v4790 = vand.u32 %v2192, 4294901760
        %4791 = vmatmul.mubr.f32.gmra.mrb[0].mxu0 %v4790
        %v4792 = vpop.f32.mrb[0].mxu0
        %v4793 = vadd.f32 %v4616, %v4792
        %v4794 = vpop.f32.mrb[0].mxu0
        %4795 = vmatprep.mubr.f32.mxu0 0.0
        %v4796 = vand.u32 %v2193, 4294901760
        %4797 = vmatmul.mubr.f32.gmra.mrb[0].mxu0 %v4796
        %v4798 = vpop.f32.mrb[0].mxu0
        %v4799 = vadd.f32 %v4622, %v4798
        %v4800 = vpop.f32.mrb[0].mxu0
        %4801 = vmatprep.mubr.f32.mxu0 0.0
        %v4802 = vand.u32 %v2194, 4294901760
        %4803 = vmatmul.mubr.f32.gmra.mrb[0].mxu0 %v4802
        %v4804 = vpop.f32.mrb[0].mxu0
        %v4805 = vadd.f32 %v4628, %v4804
        %v4806 = vpop.f32.mrb[0].mxu0
        %4807 = vmatprep.mubr.f32.mxu0 0.0
        %v4808 = vand.u32 %v2195, 4294901760
        %4809 = vmatmul.mubr.f32.gmra.mrb[0].mxu0 %v4808
        %v4810 = vpop.f32.mrb[0].mxu0
        %v4811 = vadd.f32 %v4634, %v4810
        %v4812 = vpop.f32.mrb[0].mxu0
        %4813 = vdwg.mxu0
        %vm4814 = vcmp.ge.f32.partialorder %v3412, 0.0
        %vm4815 = vcmp.ge.f32.partialorder %v3418, 0.0
        %vm4816 = vcmp.ge.f32.partialorder %v3424, 0.0
        %vm4817 = vcmp.ge.f32.partialorder %v3430, 0.0
        %vm4818 = vcmp.ge.f32.partialorder %v3436, 0.0
        %vm4819 = vcmp.ge.f32.partialorder %v3442, 0.0
        %vm4820 = vcmp.ge.f32.partialorder %v3448, 0.0
        %vm4821 = vcmp.ge.f32.partialorder %v3454, 0.0
        %vm4822 = vcmp.ge.f32.partialorder %v3460, 0.0
        %vm4823 = vcmp.ge.f32.partialorder %v3466, 0.0
        %vm4824 = vcmp.ge.f32.partialorder %v3472, 0.0
        %vm4825 = vcmp.ge.f32.partialorder %v3478, 0.0
        %vm4826 = vcmp.ge.f32.partialorder %v3484, 0.0
        %vm4827 = vcmp.ge.f32.partialorder %v3490, 0.0
        %vm4828 = vcmp.ge.f32.partialorder %v3496, 0.0
        %vm4829 = vcmp.ge.f32.partialorder %v3502, 0.0
        %v4830 = vmul.f32 %v3412, 0.01
        %v4831 = vmul.f32 %v3418, 0.01
        %v4832 = vmul.f32 %v3424, 0.01
        %v4833 = vmul.f32 %v3430, 0.01
        %v4834 = vmul.f32 %v3436, 0.01
        %v4835 = vmul.f32 %v3442, 0.01
        %v4836 = vmul.f32 %v3448, 0.01
        %v4837 = vmul.f32 %v3454, 0.01
        %v4838 = vmul.f32 %v3460, 0.01
        %v4839 = vmul.f32 %v3466, 0.01
        %v4840 = vmul.f32 %v3472, 0.01
        %v4841 = vmul.f32 %v3478, 0.01
        %v4842 = vmul.f32 %v3484, 0.01
        %v4843 = vmul.f32 %v3490, 0.01
        %v4844 = vmul.f32 %v3496, 0.01
        %v4845 = vmul.f32 %v3502, 0.01
        %v4846 = vsel %vm4814, %v3412, %v4830
        %v4847 = vsel %vm4815, %v3418, %v4831
        %v4848 = vsel %vm4816, %v3424, %v4832
        %v4849 = vsel %vm4817, %v3430, %v4833
        %v4850 = vsel %vm4818, %v3436, %v4834
        %v4851 = vsel %vm4819, %v3442, %v4835
        %v4852 = vsel %vm4820, %v3448, %v4836
        %v4853 = vsel %vm4821, %v3454, %v4837
        %v4854 = vsel %vm4822, %v3460, %v4838
        %v4855 = vsel %vm4823, %v3466, %v4839
        %v4856 = vsel %vm4824, %v3472, %v4840
        %v4857 = vsel %vm4825, %v3478, %v4841
        %v4858 = vsel %vm4826, %v3484, %v4842
        %v4859 = vsel %vm4827, %v3490, %v4843
        %v4860 = vsel %vm4828, %v3496, %v4844
        %v4861 = vsel %vm4829, %v3502, %v4845
        %vm4862 = vcmp.ge.f32.partialorder %v4721, 0.0
        %vm4863 = vcmp.ge.f32.partialorder %v4727, 0.0
        %vm4864 = vcmp.ge.f32.partialorder %v4733, 0.0
        %vm4865 = vcmp.ge.f32.partialorder %v4739, 0.0
        %vm4866 = vcmp.ge.f32.partialorder %v4745, 0.0
        %vm4867 = vcmp.ge.f32.partialorder %v4751, 0.0
        %vm4868 = vcmp.ge.f32.partialorder %v4757, 0.0
        %vm4869 = vcmp.ge.f32.partialorder %v4763, 0.0
        %vm4870 = vcmp.ge.f32.partialorder %v4769, 0.0
        %vm4871 = vcmp.ge.f32.partialorder %v4775, 0.0
        %vm4872 = vcmp.ge.f32.partialorder %v4781, 0.0
        %vm4873 = vcmp.ge.f32.partialorder %v4787, 0.0
        %vm4874 = vcmp.ge.f32.partialorder %v4793, 0.0
        %vm4875 = vcmp.ge.f32.partialorder %v4799, 0.0
        %vm4876 = vcmp.ge.f32.partialorder %v4805, 0.0
        %vm4877 = vcmp.ge.f32.partialorder %v4811, 0.0
        %v4878 = vmul.f32 %v4721, 0.01
        %v4879 = vmul.f32 %v4727, 0.01
        %v4880 = vmul.f32 %v4733, 0.01
        %v4881 = vmul.f32 %v4739, 0.01
        %v4882 = vmul.f32 %v4745, 0.01
        %v4883 = vmul.f32 %v4751, 0.01
        %v4884 = vmul.f32 %v4757, 0.01
        %v4885 = vmul.f32 %v4763, 0.01
        %v4886 = vmul.f32 %v4769, 0.01
        %v4887 = vmul.f32 %v4775, 0.01
        %v4888 = vmul.f32 %v4781, 0.01
        %v4889 = vmul.f32 %v4787, 0.01
        %v4890 = vmul.f32 %v4793, 0.01
        %v4891 = vmul.f32 %v4799, 0.01
        %v4892 = vmul.f32 %v4805, 0.01
        %v4893 = vmul.f32 %v4811, 0.01
        %v4894 = vsel %vm4862, %v4721, %v4878
        %v4895 = vsel %vm4863, %v4727, %v4879
        %v4896 = vsel %vm4864, %v4733, %v4880
        %v4897 = vsel %vm4865, %v4739, %v4881
        %v4898 = vsel %vm4866, %v4745, %v4882
        %v4899 = vsel %vm4867, %v4751, %v4883
        %v4900 = vsel %vm4868, %v4757, %v4884
        %v4901 = vsel %vm4869, %v4763, %v4885
        %v4902 = vsel %vm4870, %v4769, %v4886
        %v4903 = vsel %vm4871, %v4775, %v4887
        %v4904 = vsel %vm4872, %v4781, %v4888
        %v4905 = vsel %vm4873, %v4787, %v4889
        %v4906 = vsel %vm4874, %v4793, %v4890
        %v4907 = vsel %vm4875, %v4799, %v4891
        %v4908 = vsel %vm4876, %v4805, %v4892
        %v4909 = vsel %vm4877, %v4811, %v4893
        %v4910 = vadd.f32 %v4846, %v4894
        %v4911 = vadd.f32 %v4847, %v4895
        %v4912 = vadd.f32 %v4848, %v4896
        %v4913 = vadd.f32 %v4849, %v4897
        %v4914 = vadd.f32 %v4850, %v4898
        %v4915 = vadd.f32 %v4851, %v4899
        %v4916 = vadd.f32 %v4852, %v4900
        %v4917 = vadd.f32 %v4853, %v4901
        %v4918 = vadd.f32 %v4854, %v4902
        %v4919 = vadd.f32 %v4855, %v4903
        %v4920 = vadd.f32 %v4856, %v4904
        %v4921 = vadd.f32 %v4857, %v4905
        %v4922 = vadd.f32 %v4858, %v4906
        %v4923 = vadd.f32 %v4859, %v4907
        %v4924 = vadd.f32 %v4860, %v4908
        %v4925 = vadd.f32 %v4861, %v4909
        %4926 = vst [vmem:[%s378] sm:$0xff] %v4910
        %4927 = vst [vmem:[%s378 + $0x8] sm:$0xff] %v4911
        %4928 = vst [vmem:[%s378 + $0x10] sm:$0xff] %v4912
        %4929 = vst [vmem:[%s378 + $0x18] sm:$0xff] %v4913
        %4930 = vst [vmem:[%s378 + $0x20] sm:$0xff] %v4914
        %4931 = vst [vmem:[%s378 + $0x28] sm:$0xff] %v4915
        %4932 = vst [vmem:[%s378 + $0x30] sm:$0xff] %v4916
        %4933 = vst [vmem:[%s378 + $0x38] sm:$0xff] %v4917
        %4934 = vst [vmem:[%s378 + $0x40] sm:$0xff] %v4918
        %4935 = vst [vmem:[%s378 + $0x48] sm:$0xff] %v4919
        %4936 = vst [vmem:[%s378 + $0x50] sm:$0xff] %v4920
        %4937 = vst [vmem:[%s378 + $0x58] sm:$0xff] %v4921
        %4938 = vst [vmem:[%s378 + $0x60] sm:$0xff] %v4922
        %4939 = vst [vmem:[%s378 + $0x68] sm:$0xff] %v4923
        %4940 = vst [vmem:[%s378 + $0x70] sm:$0xff] %v4924
        %4941 = vst [vmem:[%s378 + $0x78] sm:$0xff] %v4925
        %s4942 = sand.u32 %s191, 1
        %s4943 = scalar_lea.sflag [#allocation4], %s4942
        %s4944 = sand.u32 %s191, 1
        %s4945 = smul.addr %s4944, 128
        %s4946 = scalar_lea.vmem [#allocation11], %s4945
        // Predicated region
        $region69: #{tpu_custom_call.1} parent=47 // pred_check
          %p4947 = pneg %p201
        $region70: #{tpu_custom_call.1} parent=47 // pred_check_branch
          %4949 = sbr.rel (%p4947) target = $region72
        $region71: #{tpu_custom_call.1} parent=47 // pred_region
          %s4950 = smul.u32 16, %s26
          %s4952 = ssub.s32 2048, 2048
          %4953 = vsyncadd %s4943, %s4952
          %s4954 = smul.addr %s4950, 128
          %s4955 = scalar_lea.hbm %s7, %s4954
          %s4956 = sshll.u32 %s4946, 4
          %s4957 = int_to_ptr.vmem [resolvable:$true] %s4956
          %4962 = dma.vmem_to_hbm [thread:$0]  %s4957, 2048, %s4955, %s4943, 128, 128, 8
        $region72: #{tpu_custom_call.1} parent=47 // pred_fallthru
          _
      $region48: #{tpu_custom_call.1} parent=5 // pred_fallthru
        _
      %p4963 = scmp.le.s32.totalorder 2, %s21
      // Predicated region
      $region73: #{tpu_custom_call.1} parent=5 // pred_check
        %p4964 = pneg %p4963
      $region74: #{tpu_custom_call.1} parent=5 // pred_check_branch
        %4966 = sbr.rel (%p4964) target = $region76
      $region75: #{tpu_custom_call.1} parent=5 // pred_region
        %s4967 = ssub.s32 %s21, 2
        // Predicated region
        $region77: #{tpu_custom_call.1} parent=75 // pred_check
          %p4968 = pneg %p207
        $region78: #{tpu_custom_call.1} parent=75 // pred_check_branch
          %4970 = sbr.rel (%p4968) target = $region80
        $region79: #{tpu_custom_call.1} parent=75 // pred_region
          %s4971 = sand.u32 %s192, 1
          %s4972 = scalar_lea.sflag [#allocation4], %s4971
          %s4973 = sand.u32 %s192, 1
          %s4974 = smul.addr %s4973, 128
          %s4975 = scalar_lea.vmem [#allocation11], %s4974
          %4976 = dma.done %s4972, 2048
        $region80: #{tpu_custom_call.1} parent=75 // pred_fallthru
          _
      $region76: #{tpu_custom_call.1} parent=5 // pred_fallthru
        _
    $region6: #{tpu_custom_call.1} parent=1 // loop_footer
      %s25 = sadd.s32 1, %s21
    $region7: #{tpu_custom_call.1} parent=1 // loop_footer_branch
      %20 = sbr.rel target = $region3
    $region8: #{tpu_custom_call.1} parent=1 // loop_exit
      _
    %4977 = vsyncpa [#allocation3], 1
    %s4978 = scalar_lea.sflag [#allocation3], 1
    %4979 = vsyncpa %s4978, 1
    %4980 = vsyncpa [#allocation6], 1
    %4981 = vsyncpa [#allocation10], 1
    %4982 = vsyncpa [#allocation4], 1
    %s4983 = scalar_lea.sflag [#allocation4], 1
    %4984 = vsyncpa %s4983, 1

</llo_original>
